<compile_context>
chip_gen: v7x
topology: tpu7x:2x2x1
jax: 0.10.0
libtpu: 0.0.40
codegen_flags: <defaults>
</compile_context>

<pallas_src>
import numpy as np
import jax
import jax.numpy as jnp
from jax import lax
from jax.experimental import pallas as pl
from jax.experimental.pallas import tpu as pltpu

# Small deterministic problem size.
B, T, I, H, O = 2, 8, 4, 32, 8       # B must be a power of two (iota tricks)
HH = H // 2      # 16
H2 = 2 * H       # 64 (bidirectional feature width)
G2 = 8 * H       # 256 (fused fwd+bwd gate width)
N = T * B        # 16 flattened sequence rows (row = t*B + b)
LN_EPS = 1e-5


# ---------------- packed-parameter layout (shared by packer and kernel) -----
def _pad8(n):
    return ((n + 7) // 8) * 8


_W_SHAPE = {
    "fpr_w": (I, H + O),   # [feature_projection | residual_proj] fused
    "wih0": (2 * H, G2),   # block-diag over [input(k) | input(T-1-k)]
    "whh0": (2 * H, G2),   # block-diag over [h_fwd | h_bwd]
    "wih1": (4 * H, G2),
    "whh1": (2 * H, G2),
    "aw1": (H2, H2),
    "f1w": (H2, H),
    "f2w": (H, HH),
    "f3w": (HH, O),
}
_W_ORDER = ["fpr_w", "wih0", "whh0", "wih1", "whh1", "aw1", "f1w", "f2w", "f3w"]
_W_OFF = {}
_r = 0
for _n in _W_ORDER:
    _W_OFF[_n] = _r
    _r += _pad8(_W_SHAPE[_n][0])
W_ROWS = _r
W_LANES = G2

_B_ROW = {"fpr_b": 0, "b0": 1, "b1": 2, "ln_g": 3, "ln_b": 4, "ab1": 5,
          "aw2": 6, "ab2": 7, "f1b": 8, "f2b": 9, "f3b": 10}
_B_WIDTH = {"fpr_b": H + O, "b0": G2, "b1": G2, "ln_g": H2, "ln_b": H2,
            "ab1": H2, "aw2": H2, "ab2": 1, "f1b": H, "f2b": HH, "f3b": O}
B_ROWS = len(_B_ROW)


# ------------------------------- kernel -------------------------------------
def time_attention_rnn_kernel(x_ref, w_ref, b_ref, out_ref):
    f32 = jnp.float32

    def wv(name):
        r0 = _W_OFF[name]
        rr, cc = _W_SHAPE[name]
        return w_ref[r0:r0 + rr, 0:cc]

    def bv(name):
        r = _B_ROW[name]
        return b_ref[r:r + 1, 0:_B_WIDTH[name]]

    # ---- constant index matrices (iota only; B is a power of two) ----------
    row = lax.broadcasted_iota(jnp.int32, (N, N), 0)
    col = lax.broadcasted_iota(jnp.int32, (N, N), 1)
    b_of = jnp.bitwise_and(row, B - 1)
    # (T-1-t)*B + b  ==  (T-1)*B - row + 2*b      (since row = t*B + b)
    rev_target = (T - 1) * B - row + 2 * b_of
    Rp = (col == rev_target).astype(f32)                         # (N, N) time reversal

    sel_col = lax.broadcasted_iota(jnp.int32, (B, N), 1)
    sel_row = lax.broadcasted_iota(jnp.int32, (B, N), 0)
    sel = (jnp.bitwise_and(sel_col, B - 1) == sel_row).astype(f32)   # (B, N)
    selT_r = lax.broadcasted_iota(jnp.int32, (N, B), 0)
    selT_c = lax.broadcasted_iota(jnp.int32, (N, B), 1)
    selT_bool = jnp.bitwise_and(selT_r, B - 1) == selT_c
    selT = selT_bool.astype(f32)                                     # (N, B)

    # ---- 1) fused feature + residual projection: one (N,I)@(I,H+O) matmul --
    x2d = x_ref[...]                                                 # (N, I)
    fpr = jnp.dot(x2d, wv("fpr_w"), preferred_element_type=f32) + bv("fpr_b")
    proj = fpr[:, 0:H]                                               # (N, H)
    res = fpr[(T - 1) * B:T * B, H:H + O]                            # (B, O)

    # ---- 2) LSTM; x-side gates hoisted out of the recurrences as values ----
    # layer-0 x-side gates: [proj(t) | proj(T-1-t)] @ block-diag W_ih
    proj_rev = jnp.dot(Rp, proj, preferred_element_type=f32)
    x0 = jnp.concatenate([proj, proj_rev], axis=1)                   # (N, 2H)
    g0 = jnp.dot(x0, wv("wih0"), preferred_element_type=f32) + bv("b0")   # (N, G2)

    # fused fwd+bwd recurrence.  Gate column layout (host-reordered):
    # [i_f, i_b, f_f, f_b, o_f, o_b, g_f, g_b]; state layout [fwd | bwd].
    # Only the (B,2H)@(2H,8H) matmul sits on the serial chain; everything else
    # is register-value arithmetic.
    def run_layer(gx, whh):
        gs = [gx[k * B:(k + 1) * B, :] for k in range(T)]   # value slices, off-chain
        hcat = jnp.zeros((B, 2 * H), f32)
        ccat = jnp.zeros((B, 2 * H), f32)
        hs = []
        for k in range(T):                                  # static unroll, T is small
            g = gs[k] + jnp.dot(hcat, whh, preferred_element_type=f32)   # (B, 8H)
            a = jax.nn.sigmoid(g[:, 0:6 * H])    # i,f,o gates of both directions
            gg = jnp.tanh(g[:, 6 * H:8 * H])     # cell gates of both directions
            ccat = a[:, 2 * H:4 * H] * ccat + a[:, 0:2 * H] * gg
            hcat = a[:, 4 * H:6 * H] * jnp.tanh(ccat)
            hs.append(hcat)
        return hs

    def merge_dirs(hs):
        # fwd output at time t = hs[t][:, :H]; bwd output at time t = hs[T-1-t][:, H:]
        fwd = jnp.concatenate([hs[t][:, 0:H] for t in range(T)], axis=0)        # (N, H)
        bwd = jnp.concatenate([hs[T - 1 - t][:, H:2 * H] for t in range(T)], axis=0)
        return jnp.concatenate([fwd, bwd], axis=1)                               # (N, 2H)

    hs0 = run_layer(g0, wv("whh0"))
    o0 = merge_dirs(hs0)                                             # (N, 2H)

    # layer-1 x-side gates (dropout = identity in inference)
    o0_rev = jnp.dot(Rp, o0, preferred_element_type=f32)
    x1 = jnp.concatenate([o0, o0_rev], axis=1)                       # (N, 4H)
    g1 = jnp.dot(x1, wv("wih1"), preferred_element_type=f32) + bv("b1")

    hs1 = run_layer(g1, wv("whh1"))
    o1 = merge_dirs(hs1)                                             # (N, 2H)

    # ---- 3) LayerNorm + attention, vectorized over all N rows --------------
    mu = jnp.mean(o1, axis=-1, keepdims=True)
    var = jnp.mean((o1 - mu) ** 2, axis=-1, keepdims=True)
    ln = (o1 - mu) * lax.rsqrt(var + LN_EPS) * bv("ln_g") + bv("ln_b")

    a1 = jnp.tanh(jnp.dot(ln, wv("aw1"), preferred_element_type=f32) + bv("ab1"))
    scores = jnp.sum(a1 * bv("aw2"), axis=-1, keepdims=True) + bv("ab2")  # (N, 1)

    # softmax over time, PER-BATCH max for numerical robustness
    masked = jnp.where(selT_bool, scores, -jnp.inf)                  # (N, B)
    m_b = jnp.max(masked, axis=0, keepdims=True)                     # (1, B)
    m_rows = jnp.sum(selT * m_b, axis=1, keepdims=True)              # (N, 1)
    e = jnp.exp(scores - m_rows)                                     # (N, 1)
    denom = jnp.dot(sel, e, preferred_element_type=f32)              # (B, 1)
    ctx = jnp.dot(sel, e * ln, preferred_element_type=f32)           # (B, 2H)
    context = ctx * pl.reciprocal(denom, approx=True)

    # ---- 4) fc head (dropout = identity in inference) -----------------------
    h1 = jnp.maximum(
        jnp.dot(context, wv("f1w"), preferred_element_type=f32) + bv("f1b"), 0.0)
    h2 = jnp.maximum(
        jnp.dot(h1, wv("f2w"), preferred_element_type=f32) + bv("f2b"), 0.0)
    out = jnp.dot(h2, wv("f3w"), preferred_element_type=f32) + bv("f3b")

    # ---- 5) add residual projection of the last time step -------------------
    out_ref[...] = out + res


# ------------------------- host-side parameter packing ----------------------
def _gate_perm_cols(w, direction):
    """Place natural-order (i,f,g,o) gate columns of one direction into the
    fused 8H-wide layout [i_f, i_b, f_f, f_b, o_f, o_b, g_f, g_b]."""
    i_, f_, g_, o_ = (w[:, 0:H], w[:, H:2 * H], w[:, 2 * H:3 * H], w[:, 3 * H:4 * H])
    z = jnp.zeros_like(i_)
    blocks = ([i_, z, f_, z, o_, z, g_, z] if direction == 0
              else [z, i_, z, f_, z, o_, z, g_])
    return jnp.concatenate(blocks, axis=1)


def pack_params(params):
    (fp_w, fp_b,
     wih0f, whh0f, b0f, wih0b, whh0b, b0b,
     wih1f, whh1f, b1f, wih1b, whh1b, b1b,
     ln_g, ln_b, aw1, ab1, aw2, ab2,
     f1w, f1b, f2w, f2b, f3w, f3b, rw, rb) = params

    wih0 = jnp.concatenate([_gate_perm_cols(wih0f, 0), _gate_perm_cols(wih0b, 1)], axis=0)
    whh0 = jnp.concatenate([_gate_perm_cols(whh0f, 0), _gate_perm_cols(whh0b, 1)], axis=0)
    wih1 = jnp.concatenate([_gate_perm_cols(wih1f, 0), _gate_perm_cols(wih1b, 1)], axis=0)
    whh1 = jnp.concatenate([_gate_perm_cols(whh1f, 0), _gate_perm_cols(whh1b, 1)], axis=0)
    b0 = _gate_perm_cols(b0f, 0) + _gate_perm_cols(b0b, 1)
    b1 = _gate_perm_cols(b1f, 0) + _gate_perm_cols(b1b, 1)

    fpr_w = jnp.concatenate([fp_w, rw], axis=1)                      # (I, H+O)
    fpr_b = jnp.concatenate([fp_b, rb], axis=1)                      # (1, H+O)

    wmats = {"fpr_w": fpr_w, "wih0": wih0, "whh0": whh0, "wih1": wih1,
             "whh1": whh1, "aw1": aw1, "f1w": f1w, "f2w": f2w, "f3w": f3w}
    wblob = jnp.zeros((W_ROWS, W_LANES), jnp.float32)
    for name in _W_ORDER:
        rr, cc = _W_SHAPE[name]
        wblob = wblob.at[_W_OFF[name]:_W_OFF[name] + rr, 0:cc].set(wmats[name])

    bvecs = {"fpr_b": fpr_b, "b0": b0, "b1": b1, "ln_g": ln_g, "ln_b": ln_b,
             "ab1": ab1, "aw2": aw2, "ab2": ab2, "f1b": f1b, "f2b": f2b,
             "f3b": f3b}
    bblob = jnp.zeros((B_ROWS, W_LANES), jnp.float32)
    for name, vec in bvecs.items():
        bblob = bblob.at[_B_ROW[name]:_B_ROW[name] + 1, 0:_B_WIDTH[name]].set(vec)
    return wblob, bblob


def time_attention_rnn(x, params):
    """x: (B, T, I) batch-first, like the PyTorch module."""
    wblob, bblob = pack_params(params)
    # time-major, flattened to (T*B, I): row = t*B + b
    x2d = jnp.transpose(x, (1, 0, 2)).reshape(T * B, I).astype(jnp.float32)
    vmem = pltpu.MemorySpace.VMEM
    return pl.pallas_call(
        time_attention_rnn_kernel,
        out_shape=jax.ShapeDtypeStruct((B, O), jnp.float32),
        in_specs=[pl.BlockSpec(memory_space=vmem)] * 3,
        out_specs=pl.BlockSpec(memory_space=vmem),
    )(x2d, wblob, bblob)


# ------------------------- params / reference / test ------------------------
def init_params(key):
    """Deterministic synthetic parameters matching the module's shapes."""
    ks = iter(jax.random.split(key, 64))

    def w(shape, scale=0.1):
        return scale * jax.random.normal(next(ks), shape, jnp.float32)

    params = []
    params += [w((I, H)), w((1, H))]                                  # feature_projection
    for in_dim in (H, H, H2, H2):                                     # l0f, l0b, l1f, l1b
        params += [w((in_dim, 4 * H)), w((H, 4 * H)), w((1, 4 * H))]  # (b = b_ih + b_hh)
    params += [jnp.ones((1, H2), jnp.float32), jnp.zeros((1, H2), jnp.float32)]  # layer_norm
    params += [w((H2, H2)), w((1, H2)), w((1, H2)), w((1, 1))]        # attention (w2 as row)
    params += [w((H2, H)), w((1, H)), w((H, HH)), w((1, HH)), w((HH, O)), w((1, O))]  # fc
    params += [w((I, O)), w((1, O))]                                  # residual_proj
    return params


def reference(x, params):
    """Pure-JAX reference with identical math (for sanity checking)."""
    (fp_w, fp_b,
     wih0f, whh0f, b0f, wih0b, whh0b, b0b,
     wih1f, whh1f, b1f, wih1b, whh1b, b1b,
     ln_g, ln_b, aw1, ab1, aw2, ab2,
     f1w, f1b, f2w, f2b, f3w, f3b, rw, rb) = params

    residual = x[:, -1, :]
    h = x @ fp_w + fp_b                                               # (B,T,H)

    def run_dir(seq, w_ih, w_hh, b, reverse):
        s = seq[:, ::-1, :] if reverse else seq

        def step(carry, xt):
            hh, cc = carry
            g = xt @ w_ih + hh @ w_hh + b
            i_g = jax.nn.sigmoid(g[:, 0 * H:1 * H])
            f_g = jax.nn.sigmoid(g[:, 1 * H:2 * H])
            g_g = jnp.tanh(g[:, 2 * H:3 * H])
            o_g = jax.nn.sigmoid(g[:, 3 * H:4 * H])
            cc = f_g * cc + i_g * g_g
            hh = o_g * jnp.tanh(cc)
            return (hh, cc), hh

        z = jnp.zeros((x.shape[0], H), jnp.float32)
        _, ys = lax.scan(step, (z, z), jnp.swapaxes(s, 0, 1))
        ys = jnp.swapaxes(ys, 0, 1)
        return ys[:, ::-1, :] if reverse else ys

    o0 = jnp.concatenate([run_dir(h, wih0f, whh0f, b0f, False),
                          run_dir(h, wih0b, whh0b, b0b, True)], axis=-1)
    o1 = jnp.concatenate([run_dir(o0, wih1f, whh1f, b1f, False),
                          run_dir(o0, wih1b, whh1b, b1b, True)], axis=-1)
    mu = o1.mean(-1, keepdims=True)
    var = ((o1 - mu) ** 2).mean(-1, keepdims=True)
    ln = (o1 - mu) / jnp.sqrt(var + LN_EPS) * ln_g + ln_b             # (B,T,2H)
    sc = jnp.sum(jnp.tanh(ln @ aw1 + ab1) * aw2, -1, keepdims=True) + ab2
    wts = jax.nn.softmax(sc, axis=1)
    ctx = jnp.sum(wts * ln, axis=1)                                   # (B,2H)
    y = jnp.maximum(ctx @ f1w + f1b, 0.0)
    y = jnp.maximum(y @ f2w + f2b, 0.0)
    y = y @ f3w + f3b
    return y + (residual @ rw + rb)


if __name__ == "__main__":
    key = jax.random.PRNGKey(0)
    kx, kp = jax.random.split(key)
    x = jax.random.normal(kx, (B, T, I), jnp.float32)
    params = init_params(kp)

    out = time_attention_rnn(x, params)
    out = jax.block_until_ready(out)

    ref = reference(x, params)
    out_np, ref_np = np.asarray(out), np.asarray(ref)
    assert out_np.shape == (B, O)
    assert np.all(np.isfinite(out_np))
    np.testing.assert_allclose(out_np, ref_np, atol=2e-2, rtol=2e-2)
    print("KERNEL_OK")
</pallas_src>

<mosaic_0001>
module attributes {stable_mosaic.version = 11 : i64} {
  func.func @time_attention_rnn_kernel(%arg0: memref<16x4xf32, #tpu.memory_space<vmem>>, %arg1: memref<504x256xf32, #tpu.memory_space<vmem>>, %arg2: memref<11x256xf32, #tpu.memory_space<vmem>>, %arg3: memref<2x8xf32, #tpu.memory_space<vmem>>) attributes {dimension_semantics = [], scalar_prefetch = 0 : i64, scratch_operands = 0 : i64, tpu.core_type = #tpu.core_type<tc>} {
    %0 = tpu.iota {dimensions = array<i32: 0>} : vector<16x16xi32>
    %1 = tpu.iota {dimensions = array<i32: 1>} : vector<16x16xi32>
    %c1_i32 = arith.constant 1 : i32
    %2 = vector.broadcast %c1_i32 : i32 to vector<16x16xi32>
    %3 = arith.andi %0, %2 : vector<16x16xi32>
    %c14_i32 = arith.constant 14 : i32
    %4 = vector.broadcast %c14_i32 : i32 to vector<16x16xi32>
    %5 = arith.subi %4, %0 : vector<16x16xi32>
    %c2_i32 = arith.constant 2 : i32
    %6 = vector.broadcast %c2_i32 : i32 to vector<16x16xi32>
    %7 = arith.muli %6, %3 : vector<16x16xi32>
    %8 = arith.addi %5, %7 : vector<16x16xi32>
    %9 = arith.cmpi eq, %1, %8 : vector<16x16xi32>
    %10 = arith.extui %9 : vector<16x16xi1> to vector<16x16xi32>
    %11 = arith.sitofp %10 : vector<16x16xi32> to vector<16x16xf32>
    %12 = tpu.iota {dimensions = array<i32: 1>} : vector<2x16xi32>
    %13 = tpu.iota {dimensions = array<i32: 0>} : vector<2x16xi32>
    %c1_i32_0 = arith.constant 1 : i32
    %14 = vector.broadcast %c1_i32_0 : i32 to vector<2x16xi32>
    %15 = arith.andi %12, %14 : vector<2x16xi32>
    %16 = arith.cmpi eq, %15, %13 : vector<2x16xi32>
    %17 = arith.extui %16 : vector<2x16xi1> to vector<2x16xi32>
    %18 = arith.sitofp %17 : vector<2x16xi32> to vector<2x16xf32>
    %19 = tpu.iota {dimensions = array<i32: 0>} : vector<16x2xi32>
    %20 = tpu.iota {dimensions = array<i32: 1>} : vector<16x2xi32>
    %c1_i32_1 = arith.constant 1 : i32
    %21 = vector.broadcast %c1_i32_1 : i32 to vector<16x2xi32>
    %22 = arith.andi %19, %21 : vector<16x2xi32>
    %23 = arith.cmpi eq, %22, %20 : vector<16x2xi32>
    %24 = arith.extui %23 : vector<16x2xi1> to vector<16x2xi32>
    %25 = arith.sitofp %24 : vector<16x2xi32> to vector<16x2xf32>
    %c0 = arith.constant 0 : index
    %c0_2 = arith.constant 0 : index
    %26 = vector.load %arg0[%c0, %c0_2] : memref<16x4xf32, #tpu.memory_space<vmem>>, vector<16x4xf32>
    %c0_3 = arith.constant 0 : index
    %c0_4 = arith.constant 0 : index
    %27 = vector.load %arg1[%c0_3, %c0_4] : memref<504x256xf32, #tpu.memory_space<vmem>>, vector<4x40xf32>
    %cst = arith.constant dense<0.000000e+00> : vector<16x40xf32>
    %28 = tpu.matmul %26, %27, %cst {dimension_numbers = #tpu.dot_dimension_numbers<[1], [0], [0], [1], [0, 0, 1, 1], [], []>} : vector<16x4xf32>, vector<4x40xf32>, vector<16x40xf32> -> vector<16x40xf32>
    %c0_5 = arith.constant 0 : index
    %c0_6 = arith.constant 0 : index
    %29 = vector.load %arg2[%c0_5, %c0_6] : memref<11x256xf32, #tpu.memory_space<vmem>>, vector<1x40xf32>
    %30 = vector.broadcast %29 : vector<1x40xf32> to vector<16x40xf32>
    %31 = arith.addf %28, %30 : vector<16x40xf32>
    %32 = vector.extract_strided_slice %31 {offsets = [0, 0], sizes = [16, 32], strides = [1, 1]} : vector<16x40xf32> to vector<16x32xf32>
    %33 = vector.extract_strided_slice %31 {offsets = [14, 32], sizes = [2, 8], strides = [1, 1]} : vector<16x40xf32> to vector<2x8xf32>
    %cst_7 = arith.constant dense<0.000000e+00> : vector<16x32xf32>
    %34 = tpu.matmul %11, %32, %cst_7 {dimension_numbers = #tpu.dot_dimension_numbers<[1], [0], [0], [1], [0, 0, 1, 1], [], []>} : vector<16x16xf32>, vector<16x32xf32>, vector<16x32xf32> -> vector<16x32xf32>
    %35 = tpu.concatenate %32, %34 in 1 : vector<16x32xf32>, vector<16x32xf32> -> vector<16x64xf32>
    %c8 = arith.constant 8 : index
    %c0_8 = arith.constant 0 : index
    %36 = vector.load %arg1[%c8, %c0_8] : memref<504x256xf32, #tpu.memory_space<vmem>>, vector<64x256xf32>
    %cst_9 = arith.constant dense<0.000000e+00> : vector<16x256xf32>
    %37 = tpu.matmul %35, %36, %cst_9 {dimension_numbers = #tpu.dot_dimension_numbers<[1], [0], [0], [1], [0, 0, 1, 1], [], []>} : vector<16x64xf32>, vector<64x256xf32>, vector<16x256xf32> -> vector<16x256xf32>
    %c1 = arith.constant 1 : index
    %c0_10 = arith.constant 0 : index
    %38 = vector.load %arg2[%c1, %c0_10] : memref<11x256xf32, #tpu.memory_space<vmem>>, vector<1x256xf32>
    %39 = vector.broadcast %38 : vector<1x256xf32> to vector<16x256xf32>
    %40 = arith.addf %37, %39 : vector<16x256xf32>
    %c72 = arith.constant 72 : index
    %c0_11 = arith.constant 0 : index
    %41 = vector.load %arg1[%c72, %c0_11] : memref<504x256xf32, #tpu.memory_space<vmem>>, vector<64x256xf32>
    %42 = vector.extract_strided_slice %40 {offsets = [0, 0], sizes = [2, 256], strides = [1, 1]} : vector<16x256xf32> to vector<2x256xf32>
    %43 = vector.extract_strided_slice %40 {offsets = [2, 0], sizes = [2, 256], strides = [1, 1]} : vector<16x256xf32> to vector<2x256xf32>
    %44 = vector.extract_strided_slice %40 {offsets = [4, 0], sizes = [2, 256], strides = [1, 1]} : vector<16x256xf32> to vector<2x256xf32>
    %45 = vector.extract_strided_slice %40 {offsets = [6, 0], sizes = [2, 256], strides = [1, 1]} : vector<16x256xf32> to vector<2x256xf32>
    %46 = vector.extract_strided_slice %40 {offsets = [8, 0], sizes = [2, 256], strides = [1, 1]} : vector<16x256xf32> to vector<2x256xf32>
    %47 = vector.extract_strided_slice %40 {offsets = [10, 0], sizes = [2, 256], strides = [1, 1]} : vector<16x256xf32> to vector<2x256xf32>
    %48 = vector.extract_strided_slice %40 {offsets = [12, 0], sizes = [2, 256], strides = [1, 1]} : vector<16x256xf32> to vector<2x256xf32>
    %49 = vector.extract_strided_slice %40 {offsets = [14, 0], sizes = [2, 256], strides = [1, 1]} : vector<16x256xf32> to vector<2x256xf32>
    %cst_12 = arith.constant 0.000000e+00 : f32
    %50 = vector.broadcast %cst_12 : f32 to vector<2x64xf32>
    %cst_13 = arith.constant 0.000000e+00 : f32
    %51 = vector.broadcast %cst_13 : f32 to vector<2x64xf32>
    %cst_14 = arith.constant dense<0.000000e+00> : vector<2x256xf32>
    %52 = tpu.matmul %50, %41, %cst_14 {dimension_numbers = #tpu.dot_dimension_numbers<[1], [0], [0], [1], [0, 0, 1, 1], [], []>} : vector<2x64xf32>, vector<64x256xf32>, vector<2x256xf32> -> vector<2x256xf32>
    %53 = arith.addf %42, %52 : vector<2x256xf32>
    %54 = vector.extract_strided_slice %53 {offsets = [0, 0], sizes = [2, 192], strides = [1, 1]} : vector<2x256xf32> to vector<2x192xf32>
    %55 = arith.negf %54 : vector<2x192xf32>
    %56 = math.exp %55 : vector<2x192xf32>
    %cst_15 = arith.constant 1.000000e+00 : f32
    %57 = vector.broadcast %cst_15 : f32 to vector<2x192xf32>
    %58 = arith.addf %57, %56 : vector<2x192xf32>
    %59 = arith.divf %57, %58 : vector<2x192xf32>
    %60 = vector.extract_strided_slice %53 {offsets = [0, 192], sizes = [2, 64], strides = [1, 1]} : vector<2x256xf32> to vector<2x64xf32>
    %61 = math.tanh %60 : vector<2x64xf32>
    %62 = vector.extract_strided_slice %59 {offsets = [0, 64], sizes = [2, 64], strides = [1, 1]} : vector<2x192xf32> to vector<2x64xf32>
    %63 = arith.mulf %62, %51 : vector<2x64xf32>
    %64 = vector.extract_strided_slice %59 {offsets = [0, 0], sizes = [2, 64], strides = [1, 1]} : vector<2x192xf32> to vector<2x64xf32>
    %65 = arith.mulf %64, %61 : vector<2x64xf32>
    %66 = arith.addf %63, %65 : vector<2x64xf32>
    %67 = vector.extract_strided_slice %59 {offsets = [0, 128], sizes = [2, 64], strides = [1, 1]} : vector<2x192xf32> to vector<2x64xf32>
    %68 = math.tanh %66 : vector<2x64xf32>
    %69 = arith.mulf %67, %68 : vector<2x64xf32>
    %cst_16 = arith.constant dense<0.000000e+00> : vector<2x256xf32>
    %70 = tpu.matmul %69, %41, %cst_16 {dimension_numbers = #tpu.dot_dimension_numbers<[1], [0], [0], [1], [0, 0, 1, 1], [], []>} : vector<2x64xf32>, vector<64x256xf32>, vector<2x256xf32> -> vector<2x256xf32>
    %71 = arith.addf %43, %70 : vector<2x256xf32>
    %72 = vector.extract_strided_slice %71 {offsets = [0, 0], sizes = [2, 192], strides = [1, 1]} : vector<2x256xf32> to vector<2x192xf32>
    %73 = arith.negf %72 : vector<2x192xf32>
    %74 = math.exp %73 : vector<2x192xf32>
    %cst_17 = arith.constant 1.000000e+00 : f32
    %75 = vector.broadcast %cst_17 : f32 to vector<2x192xf32>
    %76 = arith.addf %75, %74 : vector<2x192xf32>
    %77 = arith.divf %75, %76 : vector<2x192xf32>
    %78 = vector.extract_strided_slice %71 {offsets = [0, 192], sizes = [2, 64], strides = [1, 1]} : vector<2x256xf32> to vector<2x64xf32>
    %79 = math.tanh %78 : vector<2x64xf32>
    %80 = vector.extract_strided_slice %77 {offsets = [0, 64], sizes = [2, 64], strides = [1, 1]} : vector<2x192xf32> to vector<2x64xf32>
    %81 = arith.mulf %80, %66 : vector<2x64xf32>
    %82 = vector.extract_strided_slice %77 {offsets = [0, 0], sizes = [2, 64], strides = [1, 1]} : vector<2x192xf32> to vector<2x64xf32>
    %83 = arith.mulf %82, %79 : vector<2x64xf32>
    %84 = arith.addf %81, %83 : vector<2x64xf32>
    %85 = vector.extract_strided_slice %77 {offsets = [0, 128], sizes = [2, 64], strides = [1, 1]} : vector<2x192xf32> to vector<2x64xf32>
    %86 = math.tanh %84 : vector<2x64xf32>
    %87 = arith.mulf %85, %86 : vector<2x64xf32>
    %cst_18 = arith.constant dense<0.000000e+00> : vector<2x256xf32>
    %88 = tpu.matmul %87, %41, %cst_18 {dimension_numbers = #tpu.dot_dimension_numbers<[1], [0], [0], [1], [0, 0, 1, 1], [], []>} : vector<2x64xf32>, vector<64x256xf32>, vector<2x256xf32> -> vector<2x256xf32>
    %89 = arith.addf %44, %88 : vector<2x256xf32>
    %90 = vector.extract_strided_slice %89 {offsets = [0, 0], sizes = [2, 192], strides = [1, 1]} : vector<2x256xf32> to vector<2x192xf32>
    %91 = arith.negf %90 : vector<2x192xf32>
    %92 = math.exp %91 : vector<2x192xf32>
    %cst_19 = arith.constant 1.000000e+00 : f32
    %93 = vector.broadcast %cst_19 : f32 to vector<2x192xf32>
    %94 = arith.addf %93, %92 : vector<2x192xf32>
    %95 = arith.divf %93, %94 : vector<2x192xf32>
    %96 = vector.extract_strided_slice %89 {offsets = [0, 192], sizes = [2, 64], strides = [1, 1]} : vector<2x256xf32> to vector<2x64xf32>
    %97 = math.tanh %96 : vector<2x64xf32>
    %98 = vector.extract_strided_slice %95 {offsets = [0, 64], sizes = [2, 64], strides = [1, 1]} : vector<2x192xf32> to vector<2x64xf32>
    %99 = arith.mulf %98, %84 : vector<2x64xf32>
    %100 = vector.extract_strided_slice %95 {offsets = [0, 0], sizes = [2, 64], strides = [1, 1]} : vector<2x192xf32> to vector<2x64xf32>
    %101 = arith.mulf %100, %97 : vector<2x64xf32>
    %102 = arith.addf %99, %101 : vector<2x64xf32>
    %103 = vector.extract_strided_slice %95 {offsets = [0, 128], sizes = [2, 64], strides = [1, 1]} : vector<2x192xf32> to vector<2x64xf32>
    %104 = math.tanh %102 : vector<2x64xf32>
    %105 = arith.mulf %103, %104 : vector<2x64xf32>
    %cst_20 = arith.constant dense<0.000000e+00> : vector<2x256xf32>
    %106 = tpu.matmul %105, %41, %cst_20 {dimension_numbers = #tpu.dot_dimension_numbers<[1], [0], [0], [1], [0, 0, 1, 1], [], []>} : vector<2x64xf32>, vector<64x256xf32>, vector<2x256xf32> -> vector<2x256xf32>
    %107 = arith.addf %45, %106 : vector<2x256xf32>
    %108 = vector.extract_strided_slice %107 {offsets = [0, 0], sizes = [2, 192], strides = [1, 1]} : vector<2x256xf32> to vector<2x192xf32>
    %109 = arith.negf %108 : vector<2x192xf32>
    %110 = math.exp %109 : vector<2x192xf32>
    %cst_21 = arith.constant 1.000000e+00 : f32
    %111 = vector.broadcast %cst_21 : f32 to vector<2x192xf32>
    %112 = arith.addf %111, %110 : vector<2x192xf32>
    %113 = arith.divf %111, %112 : vector<2x192xf32>
    %114 = vector.extract_strided_slice %107 {offsets = [0, 192], sizes = [2, 64], strides = [1, 1]} : vector<2x256xf32> to vector<2x64xf32>
    %115 = math.tanh %114 : vector<2x64xf32>
    %116 = vector.extract_strided_slice %113 {offsets = [0, 64], sizes = [2, 64], strides = [1, 1]} : vector<2x192xf32> to vector<2x64xf32>
    %117 = arith.mulf %116, %102 : vector<2x64xf32>
    %118 = vector.extract_strided_slice %113 {offsets = [0, 0], sizes = [2, 64], strides = [1, 1]} : vector<2x192xf32> to vector<2x64xf32>
    %119 = arith.mulf %118, %115 : vector<2x64xf32>
    %120 = arith.addf %117, %119 : vector<2x64xf32>
    %121 = vector.extract_strided_slice %113 {offsets = [0, 128], sizes = [2, 64], strides = [1, 1]} : vector<2x192xf32> to vector<2x64xf32>
    %122 = math.tanh %120 : vector<2x64xf32>
    %123 = arith.mulf %121, %122 : vector<2x64xf32>
    %cst_22 = arith.constant dense<0.000000e+00> : vector<2x256xf32>
    %124 = tpu.matmul %123, %41, %cst_22 {dimension_numbers = #tpu.dot_dimension_numbers<[1], [0], [0], [1], [0, 0, 1, 1], [], []>} : vector<2x64xf32>, vector<64x256xf32>, vector<2x256xf32> -> vector<2x256xf32>
    %125 = arith.addf %46, %124 : vector<2x256xf32>
    %126 = vector.extract_strided_slice %125 {offsets = [0, 0], sizes = [2, 192], strides = [1, 1]} : vector<2x256xf32> to vector<2x192xf32>
    %127 = arith.negf %126 : vector<2x192xf32>
    %128 = math.exp %127 : vector<2x192xf32>
    %cst_23 = arith.constant 1.000000e+00 : f32
    %129 = vector.broadcast %cst_23 : f32 to vector<2x192xf32>
    %130 = arith.addf %129, %128 : vector<2x192xf32>
    %131 = arith.divf %129, %130 : vector<2x192xf32>
    %132 = vector.extract_strided_slice %125 {offsets = [0, 192], sizes = [2, 64], strides = [1, 1]} : vector<2x256xf32> to vector<2x64xf32>
    %133 = math.tanh %132 : vector<2x64xf32>
    %134 = vector.extract_strided_slice %131 {offsets = [0, 64], sizes = [2, 64], strides = [1, 1]} : vector<2x192xf32> to vector<2x64xf32>
    %135 = arith.mulf %134, %120 : vector<2x64xf32>
    %136 = vector.extract_strided_slice %131 {offsets = [0, 0], sizes = [2, 64], strides = [1, 1]} : vector<2x192xf32> to vector<2x64xf32>
    %137 = arith.mulf %136, %133 : vector<2x64xf32>
    %138 = arith.addf %135, %137 : vector<2x64xf32>
    %139 = vector.extract_strided_slice %131 {offsets = [0, 128], sizes = [2, 64], strides = [1, 1]} : vector<2x192xf32> to vector<2x64xf32>
    %140 = math.tanh %138 : vector<2x64xf32>
    %141 = arith.mulf %139, %140 : vector<2x64xf32>
    %cst_24 = arith.constant dense<0.000000e+00> : vector<2x256xf32>
    %142 = tpu.matmul %141, %41, %cst_24 {dimension_numbers = #tpu.dot_dimension_numbers<[1], [0], [0], [1], [0, 0, 1, 1], [], []>} : vector<2x64xf32>, vector<64x256xf32>, vector<2x256xf32> -> vector<2x256xf32>
    %143 = arith.addf %47, %142 : vector<2x256xf32>
    %144 = vector.extract_strided_slice %143 {offsets = [0, 0], sizes = [2, 192], strides = [1, 1]} : vector<2x256xf32> to vector<2x192xf32>
    %145 = arith.negf %144 : vector<2x192xf32>
    %146 = math.exp %145 : vector<2x192xf32>
    %cst_25 = arith.constant 1.000000e+00 : f32
    %147 = vector.broadcast %cst_25 : f32 to vector<2x192xf32>
    %148 = arith.addf %147, %146 : vector<2x192xf32>
    %149 = arith.divf %147, %148 : vector<2x192xf32>
    %150 = vector.extract_strided_slice %143 {offsets = [0, 192], sizes = [2, 64], strides = [1, 1]} : vector<2x256xf32> to vector<2x64xf32>
    %151 = math.tanh %150 : vector<2x64xf32>
    %152 = vector.extract_strided_slice %149 {offsets = [0, 64], sizes = [2, 64], strides = [1, 1]} : vector<2x192xf32> to vector<2x64xf32>
    %153 = arith.mulf %152, %138 : vector<2x64xf32>
    %154 = vector.extract_strided_slice %149 {offsets = [0, 0], sizes = [2, 64], strides = [1, 1]} : vector<2x192xf32> to vector<2x64xf32>
    %155 = arith.mulf %154, %151 : vector<2x64xf32>
    %156 = arith.addf %153, %155 : vector<2x64xf32>
    %157 = vector.extract_strided_slice %149 {offsets = [0, 128], sizes = [2, 64], strides = [1, 1]} : vector<2x192xf32> to vector<2x64xf32>
    %158 = math.tanh %156 : vector<2x64xf32>
    %159 = arith.mulf %157, %158 : vector<2x64xf32>
    %cst_26 = arith.constant dense<0.000000e+00> : vector<2x256xf32>
    %160 = tpu.matmul %159, %41, %cst_26 {dimension_numbers = #tpu.dot_dimension_numbers<[1], [0], [0], [1], [0, 0, 1, 1], [], []>} : vector<2x64xf32>, vector<64x256xf32>, vector<2x256xf32> -> vector<2x256xf32>
    %161 = arith.addf %48, %160 : vector<2x256xf32>
    %162 = vector.extract_strided_slice %161 {offsets = [0, 0], sizes = [2, 192], strides = [1, 1]} : vector<2x256xf32> to vector<2x192xf32>
    %163 = arith.negf %162 : vector<2x192xf32>
    %164 = math.exp %163 : vector<2x192xf32>
    %cst_27 = arith.constant 1.000000e+00 : f32
    %165 = vector.broadcast %cst_27 : f32 to vector<2x192xf32>
    %166 = arith.addf %165, %164 : vector<2x192xf32>
    %167 = arith.divf %165, %166 : vector<2x192xf32>
    %168 = vector.extract_strided_slice %161 {offsets = [0, 192], sizes = [2, 64], strides = [1, 1]} : vector<2x256xf32> to vector<2x64xf32>
    %169 = math.tanh %168 : vector<2x64xf32>
    %170 = vector.extract_strided_slice %167 {offsets = [0, 64], sizes = [2, 64], strides = [1, 1]} : vector<2x192xf32> to vector<2x64xf32>
    %171 = arith.mulf %170, %156 : vector<2x64xf32>
    %172 = vector.extract_strided_slice %167 {offsets = [0, 0], sizes = [2, 64], strides = [1, 1]} : vector<2x192xf32> to vector<2x64xf32>
    %173 = arith.mulf %172, %169 : vector<2x64xf32>
    %174 = arith.addf %171, %173 : vector<2x64xf32>
    %175 = vector.extract_strided_slice %167 {offsets = [0, 128], sizes = [2, 64], strides = [1, 1]} : vector<2x192xf32> to vector<2x64xf32>
    %176 = math.tanh %174 : vector<2x64xf32>
    %177 = arith.mulf %175, %176 : vector<2x64xf32>
    %cst_28 = arith.constant dense<0.000000e+00> : vector<2x256xf32>
    %178 = tpu.matmul %177, %41, %cst_28 {dimension_numbers = #tpu.dot_dimension_numbers<[1], [0], [0], [1], [0, 0, 1, 1], [], []>} : vector<2x64xf32>, vector<64x256xf32>, vector<2x256xf32> -> vector<2x256xf32>
    %179 = arith.addf %49, %178 : vector<2x256xf32>
    %180 = vector.extract_strided_slice %179 {offsets = [0, 0], sizes = [2, 192], strides = [1, 1]} : vector<2x256xf32> to vector<2x192xf32>
    %181 = arith.negf %180 : vector<2x192xf32>
    %182 = math.exp %181 : vector<2x192xf32>
    %cst_29 = arith.constant 1.000000e+00 : f32
    %183 = vector.broadcast %cst_29 : f32 to vector<2x192xf32>
    %184 = arith.addf %183, %182 : vector<2x192xf32>
    %185 = arith.divf %183, %184 : vector<2x192xf32>
    %186 = vector.extract_strided_slice %179 {offsets = [0, 192], sizes = [2, 64], strides = [1, 1]} : vector<2x256xf32> to vector<2x64xf32>
    %187 = math.tanh %186 : vector<2x64xf32>
    %188 = vector.extract_strided_slice %185 {offsets = [0, 64], sizes = [2, 64], strides = [1, 1]} : vector<2x192xf32> to vector<2x64xf32>
    %189 = arith.mulf %188, %174 : vector<2x64xf32>
    %190 = vector.extract_strided_slice %185 {offsets = [0, 0], sizes = [2, 64], strides = [1, 1]} : vector<2x192xf32> to vector<2x64xf32>
    %191 = arith.mulf %190, %187 : vector<2x64xf32>
    %192 = arith.addf %189, %191 : vector<2x64xf32>
    %193 = vector.extract_strided_slice %185 {offsets = [0, 128], sizes = [2, 64], strides = [1, 1]} : vector<2x192xf32> to vector<2x64xf32>
    %194 = math.tanh %192 : vector<2x64xf32>
    %195 = arith.mulf %193, %194 : vector<2x64xf32>
    %196 = vector.extract_strided_slice %69 {offsets = [0, 0], sizes = [2, 32], strides = [1, 1]} : vector<2x64xf32> to vector<2x32xf32>
    %197 = vector.extract_strided_slice %87 {offsets = [0, 0], sizes = [2, 32], strides = [1, 1]} : vector<2x64xf32> to vector<2x32xf32>
    %198 = vector.extract_strided_slice %105 {offsets = [0, 0], sizes = [2, 32], strides = [1, 1]} : vector<2x64xf32> to vector<2x32xf32>
    %199 = vector.extract_strided_slice %123 {offsets = [0, 0], sizes = [2, 32], strides = [1, 1]} : vector<2x64xf32> to vector<2x32xf32>
    %200 = vector.extract_strided_slice %141 {offsets = [0, 0], sizes = [2, 32], strides = [1, 1]} : vector<2x64xf32> to vector<2x32xf32>
    %201 = vector.extract_strided_slice %159 {offsets = [0, 0], sizes = [2, 32], strides = [1, 1]} : vector<2x64xf32> to vector<2x32xf32>
    %202 = vector.extract_strided_slice %177 {offsets = [0, 0], sizes = [2, 32], strides = [1, 1]} : vector<2x64xf32> to vector<2x32xf32>
    %203 = vector.extract_strided_slice %195 {offsets = [0, 0], sizes = [2, 32], strides = [1, 1]} : vector<2x64xf32> to vector<2x32xf32>
    %204 = tpu.concatenate %196, %197, %198, %199, %200, %201, %202, %203 in 0 : vector<2x32xf32>, vector<2x32xf32>, vector<2x32xf32>, vector<2x32xf32>, vector<2x32xf32>, vector<2x32xf32>, vector<2x32xf32>, vector<2x32xf32> -> vector<16x32xf32>
    %205 = vector.extract_strided_slice %195 {offsets = [0, 32], sizes = [2, 32], strides = [1, 1]} : vector<2x64xf32> to vector<2x32xf32>
    %206 = vector.extract_strided_slice %177 {offsets = [0, 32], sizes = [2, 32], strides = [1, 1]} : vector<2x64xf32> to vector<2x32xf32>
    %207 = vector.extract_strided_slice %159 {offsets = [0, 32], sizes = [2, 32], strides = [1, 1]} : vector<2x64xf32> to vector<2x32xf32>
    %208 = vector.extract_strided_slice %141 {offsets = [0, 32], sizes = [2, 32], strides = [1, 1]} : vector<2x64xf32> to vector<2x32xf32>
    %209 = vector.extract_strided_slice %123 {offsets = [0, 32], sizes = [2, 32], strides = [1, 1]} : vector<2x64xf32> to vector<2x32xf32>
    %210 = vector.extract_strided_slice %105 {offsets = [0, 32], sizes = [2, 32], strides = [1, 1]} : vector<2x64xf32> to vector<2x32xf32>
    %211 = vector.extract_strided_slice %87 {offsets = [0, 32], sizes = [2, 32], strides = [1, 1]} : vector<2x64xf32> to vector<2x32xf32>
    %212 = vector.extract_strided_slice %69 {offsets = [0, 32], sizes = [2, 32], strides = [1, 1]} : vector<2x64xf32> to vector<2x32xf32>
    %213 = tpu.concatenate %205, %206, %207, %208, %209, %210, %211, %212 in 0 : vector<2x32xf32>, vector<2x32xf32>, vector<2x32xf32>, vector<2x32xf32>, vector<2x32xf32>, vector<2x32xf32>, vector<2x32xf32>, vector<2x32xf32> -> vector<16x32xf32>
    %214 = tpu.concatenate %204, %213 in 1 : vector<16x32xf32>, vector<16x32xf32> -> vector<16x64xf32>
    %cst_30 = arith.constant dense<0.000000e+00> : vector<16x64xf32>
    %215 = tpu.matmul %11, %214, %cst_30 {dimension_numbers = #tpu.dot_dimension_numbers<[1], [0], [0], [1], [0, 0, 1, 1], [], []>} : vector<16x16xf32>, vector<16x64xf32>, vector<16x64xf32> -> vector<16x64xf32>
    %216 = tpu.concatenate %214, %215 in 1 : vector<16x64xf32>, vector<16x64xf32> -> vector<16x128xf32>
    %c136 = arith.constant 136 : index
    %c0_31 = arith.constant 0 : index
    %217 = vector.load %arg1[%c136, %c0_31] : memref<504x256xf32, #tpu.memory_space<vmem>>, vector<128x256xf32>
    %cst_32 = arith.constant dense<0.000000e+00> : vector<16x256xf32>
    %218 = tpu.matmul %216, %217, %cst_32 {dimension_numbers = #tpu.dot_dimension_numbers<[1], [0], [0], [1], [0, 0, 1, 1], [], []>} : vector<16x128xf32>, vector<128x256xf32>, vector<16x256xf32> -> vector<16x256xf32>
    %c2 = arith.constant 2 : index
    %c0_33 = arith.constant 0 : index
    %219 = vector.load %arg2[%c2, %c0_33] : memref<11x256xf32, #tpu.memory_space<vmem>>, vector<1x256xf32>
    %220 = vector.broadcast %219 : vector<1x256xf32> to vector<16x256xf32>
    %221 = arith.addf %218, %220 : vector<16x256xf32>
    %c264 = arith.constant 264 : index
    %c0_34 = arith.constant 0 : index
    %222 = vector.load %arg1[%c264, %c0_34] : memref<504x256xf32, #tpu.memory_space<vmem>>, vector<64x256xf32>
    %223 = vector.extract_strided_slice %221 {offsets = [0, 0], sizes = [2, 256], strides = [1, 1]} : vector<16x256xf32> to vector<2x256xf32>
    %224 = vector.extract_strided_slice %221 {offsets = [2, 0], sizes = [2, 256], strides = [1, 1]} : vector<16x256xf32> to vector<2x256xf32>
    %225 = vector.extract_strided_slice %221 {offsets = [4, 0], sizes = [2, 256], strides = [1, 1]} : vector<16x256xf32> to vector<2x256xf32>
    %226 = vector.extract_strided_slice %221 {offsets = [6, 0], sizes = [2, 256], strides = [1, 1]} : vector<16x256xf32> to vector<2x256xf32>
    %227 = vector.extract_strided_slice %221 {offsets = [8, 0], sizes = [2, 256], strides = [1, 1]} : vector<16x256xf32> to vector<2x256xf32>
    %228 = vector.extract_strided_slice %221 {offsets = [10, 0], sizes = [2, 256], strides = [1, 1]} : vector<16x256xf32> to vector<2x256xf32>
    %229 = vector.extract_strided_slice %221 {offsets = [12, 0], sizes = [2, 256], strides = [1, 1]} : vector<16x256xf32> to vector<2x256xf32>
    %230 = vector.extract_strided_slice %221 {offsets = [14, 0], sizes = [2, 256], strides = [1, 1]} : vector<16x256xf32> to vector<2x256xf32>
    %cst_35 = arith.constant 0.000000e+00 : f32
    %231 = vector.broadcast %cst_35 : f32 to vector<2x64xf32>
    %cst_36 = arith.constant 0.000000e+00 : f32
    %232 = vector.broadcast %cst_36 : f32 to vector<2x64xf32>
    %cst_37 = arith.constant dense<0.000000e+00> : vector<2x256xf32>
    %233 = tpu.matmul %231, %222, %cst_37 {dimension_numbers = #tpu.dot_dimension_numbers<[1], [0], [0], [1], [0, 0, 1, 1], [], []>} : vector<2x64xf32>, vector<64x256xf32>, vector<2x256xf32> -> vector<2x256xf32>
    %234 = arith.addf %223, %233 : vector<2x256xf32>
    %235 = vector.extract_strided_slice %234 {offsets = [0, 0], sizes = [2, 192], strides = [1, 1]} : vector<2x256xf32> to vector<2x192xf32>
    %236 = arith.negf %235 : vector<2x192xf32>
    %237 = math.exp %236 : vector<2x192xf32>
    %cst_38 = arith.constant 1.000000e+00 : f32
    %238 = vector.broadcast %cst_38 : f32 to vector<2x192xf32>
    %239 = arith.addf %238, %237 : vector<2x192xf32>
    %240 = arith.divf %238, %239 : vector<2x192xf32>
    %241 = vector.extract_strided_slice %234 {offsets = [0, 192], sizes = [2, 64], strides = [1, 1]} : vector<2x256xf32> to vector<2x64xf32>
    %242 = math.tanh %241 : vector<2x64xf32>
    %243 = vector.extract_strided_slice %240 {offsets = [0, 64], sizes = [2, 64], strides = [1, 1]} : vector<2x192xf32> to vector<2x64xf32>
    %244 = arith.mulf %243, %232 : vector<2x64xf32>
    %245 = vector.extract_strided_slice %240 {offsets = [0, 0], sizes = [2, 64], strides = [1, 1]} : vector<2x192xf32> to vector<2x64xf32>
    %246 = arith.mulf %245, %242 : vector<2x64xf32>
    %247 = arith.addf %244, %246 : vector<2x64xf32>
    %248 = vector.extract_strided_slice %240 {offsets = [0, 128], sizes = [2, 64], strides = [1, 1]} : vector<2x192xf32> to vector<2x64xf32>
    %249 = math.tanh %247 : vector<2x64xf32>
    %250 = arith.mulf %248, %249 : vector<2x64xf32>
    %cst_39 = arith.constant dense<0.000000e+00> : vector<2x256xf32>
    %251 = tpu.matmul %250, %222, %cst_39 {dimension_numbers = #tpu.dot_dimension_numbers<[1], [0], [0], [1], [0, 0, 1, 1], [], []>} : vector<2x64xf32>, vector<64x256xf32>, vector<2x256xf32> -> vector<2x256xf32>
    %252 = arith.addf %224, %251 : vector<2x256xf32>
    %253 = vector.extract_strided_slice %252 {offsets = [0, 0], sizes = [2, 192], strides = [1, 1]} : vector<2x256xf32> to vector<2x192xf32>
    %254 = arith.negf %253 : vector<2x192xf32>
    %255 = math.exp %254 : vector<2x192xf32>
    %cst_40 = arith.constant 1.000000e+00 : f32
    %256 = vector.broadcast %cst_40 : f32 to vector<2x192xf32>
    %257 = arith.addf %256, %255 : vector<2x192xf32>
    %258 = arith.divf %256, %257 : vector<2x192xf32>
    %259 = vector.extract_strided_slice %252 {offsets = [0, 192], sizes = [2, 64], strides = [1, 1]} : vector<2x256xf32> to vector<2x64xf32>
    %260 = math.tanh %259 : vector<2x64xf32>
    %261 = vector.extract_strided_slice %258 {offsets = [0, 64], sizes = [2, 64], strides = [1, 1]} : vector<2x192xf32> to vector<2x64xf32>
    %262 = arith.mulf %261, %247 : vector<2x64xf32>
    %263 = vector.extract_strided_slice %258 {offsets = [0, 0], sizes = [2, 64], strides = [1, 1]} : vector<2x192xf32> to vector<2x64xf32>
    %264 = arith.mulf %263, %260 : vector<2x64xf32>
    %265 = arith.addf %262, %264 : vector<2x64xf32>
    %266 = vector.extract_strided_slice %258 {offsets = [0, 128], sizes = [2, 64], strides = [1, 1]} : vector<2x192xf32> to vector<2x64xf32>
    %267 = math.tanh %265 : vector<2x64xf32>
    %268 = arith.mulf %266, %267 : vector<2x64xf32>
    %cst_41 = arith.constant dense<0.000000e+00> : vector<2x256xf32>
    %269 = tpu.matmul %268, %222, %cst_41 {dimension_numbers = #tpu.dot_dimension_numbers<[1], [0], [0], [1], [0, 0, 1, 1], [], []>} : vector<2x64xf32>, vector<64x256xf32>, vector<2x256xf32> -> vector<2x256xf32>
    %270 = arith.addf %225, %269 : vector<2x256xf32>
    %271 = vector.extract_strided_slice %270 {offsets = [0, 0], sizes = [2, 192], strides = [1, 1]} : vector<2x256xf32> to vector<2x192xf32>
    %272 = arith.negf %271 : vector<2x192xf32>
    %273 = math.exp %272 : vector<2x192xf32>
    %cst_42 = arith.constant 1.000000e+00 : f32
    %274 = vector.broadcast %cst_42 : f32 to vector<2x192xf32>
    %275 = arith.addf %274, %273 : vector<2x192xf32>
    %276 = arith.divf %274, %275 : vector<2x192xf32>
    %277 = vector.extract_strided_slice %270 {offsets = [0, 192], sizes = [2, 64], strides = [1, 1]} : vector<2x256xf32> to vector<2x64xf32>
    %278 = math.tanh %277 : vector<2x64xf32>
    %279 = vector.extract_strided_slice %276 {offsets = [0, 64], sizes = [2, 64], strides = [1, 1]} : vector<2x192xf32> to vector<2x64xf32>
    %280 = arith.mulf %279, %265 : vector<2x64xf32>
    %281 = vector.extract_strided_slice %276 {offsets = [0, 0], sizes = [2, 64], strides = [1, 1]} : vector<2x192xf32> to vector<2x64xf32>
    %282 = arith.mulf %281, %278 : vector<2x64xf32>
    %283 = arith.addf %280, %282 : vector<2x64xf32>
    %284 = vector.extract_strided_slice %276 {offsets = [0, 128], sizes = [2, 64], strides = [1, 1]} : vector<2x192xf32> to vector<2x64xf32>
    %285 = math.tanh %283 : vector<2x64xf32>
    %286 = arith.mulf %284, %285 : vector<2x64xf32>
    %cst_43 = arith.constant dense<0.000000e+00> : vector<2x256xf32>
    %287 = tpu.matmul %286, %222, %cst_43 {dimension_numbers = #tpu.dot_dimension_numbers<[1], [0], [0], [1], [0, 0, 1, 1], [], []>} : vector<2x64xf32>, vector<64x256xf32>, vector<2x256xf32> -> vector<2x256xf32>
    %288 = arith.addf %226, %287 : vector<2x256xf32>
    %289 = vector.extract_strided_slice %288 {offsets = [0, 0], sizes = [2, 192], strides = [1, 1]} : vector<2x256xf32> to vector<2x192xf32>
    %290 = arith.negf %289 : vector<2x192xf32>
    %291 = math.exp %290 : vector<2x192xf32>
    %cst_44 = arith.constant 1.000000e+00 : f32
    %292 = vector.broadcast %cst_44 : f32 to vector<2x192xf32>
    %293 = arith.addf %292, %291 : vector<2x192xf32>
    %294 = arith.divf %292, %293 : vector<2x192xf32>
    %295 = vector.extract_strided_slice %288 {offsets = [0, 192], sizes = [2, 64], strides = [1, 1]} : vector<2x256xf32> to vector<2x64xf32>
    %296 = math.tanh %295 : vector<2x64xf32>
    %297 = vector.extract_strided_slice %294 {offsets = [0, 64], sizes = [2, 64], strides = [1, 1]} : vector<2x192xf32> to vector<2x64xf32>
    %298 = arith.mulf %297, %283 : vector<2x64xf32>
    %299 = vector.extract_strided_slice %294 {offsets = [0, 0], sizes = [2, 64], strides = [1, 1]} : vector<2x192xf32> to vector<2x64xf32>
    %300 = arith.mulf %299, %296 : vector<2x64xf32>
    %301 = arith.addf %298, %300 : vector<2x64xf32>
    %302 = vector.extract_strided_slice %294 {offsets = [0, 128], sizes = [2, 64], strides = [1, 1]} : vector<2x192xf32> to vector<2x64xf32>
    %303 = math.tanh %301 : vector<2x64xf32>
    %304 = arith.mulf %302, %303 : vector<2x64xf32>
    %cst_45 = arith.constant dense<0.000000e+00> : vector<2x256xf32>
    %305 = tpu.matmul %304, %222, %cst_45 {dimension_numbers = #tpu.dot_dimension_numbers<[1], [0], [0], [1], [0, 0, 1, 1], [], []>} : vector<2x64xf32>, vector<64x256xf32>, vector<2x256xf32> -> vector<2x256xf32>
    %306 = arith.addf %227, %305 : vector<2x256xf32>
    %307 = vector.extract_strided_slice %306 {offsets = [0, 0], sizes = [2, 192], strides = [1, 1]} : vector<2x256xf32> to vector<2x192xf32>
    %308 = arith.negf %307 : vector<2x192xf32>
    %309 = math.exp %308 : vector<2x192xf32>
    %cst_46 = arith.constant 1.000000e+00 : f32
    %310 = vector.broadcast %cst_46 : f32 to vector<2x192xf32>
    %311 = arith.addf %310, %309 : vector<2x192xf32>
    %312 = arith.divf %310, %311 : vector<2x192xf32>
    %313 = vector.extract_strided_slice %306 {offsets = [0, 192], sizes = [2, 64], strides = [1, 1]} : vector<2x256xf32> to vector<2x64xf32>
    %314 = math.tanh %313 : vector<2x64xf32>
    %315 = vector.extract_strided_slice %312 {offsets = [0, 64], sizes = [2, 64], strides = [1, 1]} : vector<2x192xf32> to vector<2x64xf32>
    %316 = arith.mulf %315, %301 : vector<2x64xf32>
    %317 = vector.extract_strided_slice %312 {offsets = [0, 0], sizes = [2, 64], strides = [1, 1]} : vector<2x192xf32> to vector<2x64xf32>
    %318 = arith.mulf %317, %314 : vector<2x64xf32>
    %319 = arith.addf %316, %318 : vector<2x64xf32>
    %320 = vector.extract_strided_slice %312 {offsets = [0, 128], sizes = [2, 64], strides = [1, 1]} : vector<2x192xf32> to vector<2x64xf32>
    %321 = math.tanh %319 : vector<2x64xf32>
    %322 = arith.mulf %320, %321 : vector<2x64xf32>
    %cst_47 = arith.constant dense<0.000000e+00> : vector<2x256xf32>
    %323 = tpu.matmul %322, %222, %cst_47 {dimension_numbers = #tpu.dot_dimension_numbers<[1], [0], [0], [1], [0, 0, 1, 1], [], []>} : vector<2x64xf32>, vector<64x256xf32>, vector<2x256xf32> -> vector<2x256xf32>
    %324 = arith.addf %228, %323 : vector<2x256xf32>
    %325 = vector.extract_strided_slice %324 {offsets = [0, 0], sizes = [2, 192], strides = [1, 1]} : vector<2x256xf32> to vector<2x192xf32>
    %326 = arith.negf %325 : vector<2x192xf32>
    %327 = math.exp %326 : vector<2x192xf32>
    %cst_48 = arith.constant 1.000000e+00 : f32
    %328 = vector.broadcast %cst_48 : f32 to vector<2x192xf32>
    %329 = arith.addf %328, %327 : vector<2x192xf32>
    %330 = arith.divf %328, %329 : vector<2x192xf32>
    %331 = vector.extract_strided_slice %324 {offsets = [0, 192], sizes = [2, 64], strides = [1, 1]} : vector<2x256xf32> to vector<2x64xf32>
    %332 = math.tanh %331 : vector<2x64xf32>
    %333 = vector.extract_strided_slice %330 {offsets = [0, 64], sizes = [2, 64], strides = [1, 1]} : vector<2x192xf32> to vector<2x64xf32>
    %334 = arith.mulf %333, %319 : vector<2x64xf32>
    %335 = vector.extract_strided_slice %330 {offsets = [0, 0], sizes = [2, 64], strides = [1, 1]} : vector<2x192xf32> to vector<2x64xf32>
    %336 = arith.mulf %335, %332 : vector<2x64xf32>
    %337 = arith.addf %334, %336 : vector<2x64xf32>
    %338 = vector.extract_strided_slice %330 {offsets = [0, 128], sizes = [2, 64], strides = [1, 1]} : vector<2x192xf32> to vector<2x64xf32>
    %339 = math.tanh %337 : vector<2x64xf32>
    %340 = arith.mulf %338, %339 : vector<2x64xf32>
    %cst_49 = arith.constant dense<0.000000e+00> : vector<2x256xf32>
    %341 = tpu.matmul %340, %222, %cst_49 {dimension_numbers = #tpu.dot_dimension_numbers<[1], [0], [0], [1], [0, 0, 1, 1], [], []>} : vector<2x64xf32>, vector<64x256xf32>, vector<2x256xf32> -> vector<2x256xf32>
    %342 = arith.addf %229, %341 : vector<2x256xf32>
    %343 = vector.extract_strided_slice %342 {offsets = [0, 0], sizes = [2, 192], strides = [1, 1]} : vector<2x256xf32> to vector<2x192xf32>
    %344 = arith.negf %343 : vector<2x192xf32>
    %345 = math.exp %344 : vector<2x192xf32>
    %cst_50 = arith.constant 1.000000e+00 : f32
    %346 = vector.broadcast %cst_50 : f32 to vector<2x192xf32>
    %347 = arith.addf %346, %345 : vector<2x192xf32>
    %348 = arith.divf %346, %347 : vector<2x192xf32>
    %349 = vector.extract_strided_slice %342 {offsets = [0, 192], sizes = [2, 64], strides = [1, 1]} : vector<2x256xf32> to vector<2x64xf32>
    %350 = math.tanh %349 : vector<2x64xf32>
    %351 = vector.extract_strided_slice %348 {offsets = [0, 64], sizes = [2, 64], strides = [1, 1]} : vector<2x192xf32> to vector<2x64xf32>
    %352 = arith.mulf %351, %337 : vector<2x64xf32>
    %353 = vector.extract_strided_slice %348 {offsets = [0, 0], sizes = [2, 64], strides = [1, 1]} : vector<2x192xf32> to vector<2x64xf32>
    %354 = arith.mulf %353, %350 : vector<2x64xf32>
    %355 = arith.addf %352, %354 : vector<2x64xf32>
    %356 = vector.extract_strided_slice %348 {offsets = [0, 128], sizes = [2, 64], strides = [1, 1]} : vector<2x192xf32> to vector<2x64xf32>
    %357 = math.tanh %355 : vector<2x64xf32>
    %358 = arith.mulf %356, %357 : vector<2x64xf32>
    %cst_51 = arith.constant dense<0.000000e+00> : vector<2x256xf32>
    %359 = tpu.matmul %358, %222, %cst_51 {dimension_numbers = #tpu.dot_dimension_numbers<[1], [0], [0], [1], [0, 0, 1, 1], [], []>} : vector<2x64xf32>, vector<64x256xf32>, vector<2x256xf32> -> vector<2x256xf32>
    %360 = arith.addf %230, %359 : vector<2x256xf32>
    %361 = vector.extract_strided_slice %360 {offsets = [0, 0], sizes = [2, 192], strides = [1, 1]} : vector<2x256xf32> to vector<2x192xf32>
    %362 = arith.negf %361 : vector<2x192xf32>
    %363 = math.exp %362 : vector<2x192xf32>
    %cst_52 = arith.constant 1.000000e+00 : f32
    %364 = vector.broadcast %cst_52 : f32 to vector<2x192xf32>
    %365 = arith.addf %364, %363 : vector<2x192xf32>
    %366 = arith.divf %364, %365 : vector<2x192xf32>
    %367 = vector.extract_strided_slice %360 {offsets = [0, 192], sizes = [2, 64], strides = [1, 1]} : vector<2x256xf32> to vector<2x64xf32>
    %368 = math.tanh %367 : vector<2x64xf32>
    %369 = vector.extract_strided_slice %366 {offsets = [0, 64], sizes = [2, 64], strides = [1, 1]} : vector<2x192xf32> to vector<2x64xf32>
    %370 = arith.mulf %369, %355 : vector<2x64xf32>
    %371 = vector.extract_strided_slice %366 {offsets = [0, 0], sizes = [2, 64], strides = [1, 1]} : vector<2x192xf32> to vector<2x64xf32>
    %372 = arith.mulf %371, %368 : vector<2x64xf32>
    %373 = arith.addf %370, %372 : vector<2x64xf32>
    %374 = vector.extract_strided_slice %366 {offsets = [0, 128], sizes = [2, 64], strides = [1, 1]} : vector<2x192xf32> to vector<2x64xf32>
    %375 = math.tanh %373 : vector<2x64xf32>
    %376 = arith.mulf %374, %375 : vector<2x64xf32>
    %377 = vector.extract_strided_slice %250 {offsets = [0, 0], sizes = [2, 32], strides = [1, 1]} : vector<2x64xf32> to vector<2x32xf32>
    %378 = vector.extract_strided_slice %268 {offsets = [0, 0], sizes = [2, 32], strides = [1, 1]} : vector<2x64xf32> to vector<2x32xf32>
    %379 = vector.extract_strided_slice %286 {offsets = [0, 0], sizes = [2, 32], strides = [1, 1]} : vector<2x64xf32> to vector<2x32xf32>
    %380 = vector.extract_strided_slice %304 {offsets = [0, 0], sizes = [2, 32], strides = [1, 1]} : vector<2x64xf32> to vector<2x32xf32>
    %381 = vector.extract_strided_slice %322 {offsets = [0, 0], sizes = [2, 32], strides = [1, 1]} : vector<2x64xf32> to vector<2x32xf32>
    %382 = vector.extract_strided_slice %340 {offsets = [0, 0], sizes = [2, 32], strides = [1, 1]} : vector<2x64xf32> to vector<2x32xf32>
    %383 = vector.extract_strided_slice %358 {offsets = [0, 0], sizes = [2, 32], strides = [1, 1]} : vector<2x64xf32> to vector<2x32xf32>
    %384 = vector.extract_strided_slice %376 {offsets = [0, 0], sizes = [2, 32], strides = [1, 1]} : vector<2x64xf32> to vector<2x32xf32>
    %385 = tpu.concatenate %377, %378, %379, %380, %381, %382, %383, %384 in 0 : vector<2x32xf32>, vector<2x32xf32>, vector<2x32xf32>, vector<2x32xf32>, vector<2x32xf32>, vector<2x32xf32>, vector<2x32xf32>, vector<2x32xf32> -> vector<16x32xf32>
    %386 = vector.extract_strided_slice %376 {offsets = [0, 32], sizes = [2, 32], strides = [1, 1]} : vector<2x64xf32> to vector<2x32xf32>
    %387 = vector.extract_strided_slice %358 {offsets = [0, 32], sizes = [2, 32], strides = [1, 1]} : vector<2x64xf32> to vector<2x32xf32>
    %388 = vector.extract_strided_slice %340 {offsets = [0, 32], sizes = [2, 32], strides = [1, 1]} : vector<2x64xf32> to vector<2x32xf32>
    %389 = vector.extract_strided_slice %322 {offsets = [0, 32], sizes = [2, 32], strides = [1, 1]} : vector<2x64xf32> to vector<2x32xf32>
    %390 = vector.extract_strided_slice %304 {offsets = [0, 32], sizes = [2, 32], strides = [1, 1]} : vector<2x64xf32> to vector<2x32xf32>
    %391 = vector.extract_strided_slice %286 {offsets = [0, 32], sizes = [2, 32], strides = [1, 1]} : vector<2x64xf32> to vector<2x32xf32>
    %392 = vector.extract_strided_slice %268 {offsets = [0, 32], sizes = [2, 32], strides = [1, 1]} : vector<2x64xf32> to vector<2x32xf32>
    %393 = vector.extract_strided_slice %250 {offsets = [0, 32], sizes = [2, 32], strides = [1, 1]} : vector<2x64xf32> to vector<2x32xf32>
    %394 = tpu.concatenate %386, %387, %388, %389, %390, %391, %392, %393 in 0 : vector<2x32xf32>, vector<2x32xf32>, vector<2x32xf32>, vector<2x32xf32>, vector<2x32xf32>, vector<2x32xf32>, vector<2x32xf32>, vector<2x32xf32> -> vector<16x32xf32>
    %395 = tpu.concatenate %385, %394 in 1 : vector<16x32xf32>, vector<16x32xf32> -> vector<16x64xf32>
    %cst_53 = arith.constant dense<0.000000e+00> : vector<16xf32>
    %396 = vector.multi_reduction <add>, %395, %cst_53 [1] : vector<16x64xf32> to vector<16xf32>
    %397 = vector.shape_cast %396 : vector<16xf32> to vector<16x1xf32>
    %cst_54 = arith.constant 6.400000e+01 : f32
    %398 = vector.broadcast %cst_54 : f32 to vector<16x1xf32>
    %399 = arith.divf %397, %398 : vector<16x1xf32>
    %400 = vector.broadcast %399 : vector<16x1xf32> to vector<16x64xf32>
    %401 = arith.subf %395, %400 : vector<16x64xf32>
    %402 = arith.mulf %401, %401 : vector<16x64xf32>
    %cst_55 = arith.constant dense<0.000000e+00> : vector<16xf32>
    %403 = vector.multi_reduction <add>, %402, %cst_55 [1] : vector<16x64xf32> to vector<16xf32>
    %404 = vector.shape_cast %403 : vector<16xf32> to vector<16x1xf32>
    %cst_56 = arith.constant 6.400000e+01 : f32
    %405 = vector.broadcast %cst_56 : f32 to vector<16x1xf32>
    %406 = arith.divf %404, %405 : vector<16x1xf32>
    %407 = vector.broadcast %399 : vector<16x1xf32> to vector<16x64xf32>
    %408 = arith.subf %395, %407 : vector<16x64xf32>
    %cst_57 = arith.constant 9.99999974E-6 : f32
    %409 = vector.broadcast %cst_57 : f32 to vector<16x1xf32>
    %410 = arith.addf %406, %409 : vector<16x1xf32>
    %411 = math.rsqrt %410 : vector<16x1xf32>
    %412 = vector.broadcast %411 : vector<16x1xf32> to vector<16x64xf32>
    %413 = arith.mulf %408, %412 : vector<16x64xf32>
    %c3 = arith.constant 3 : index
    %c0_58 = arith.constant 0 : index
    %414 = vector.load %arg2[%c3, %c0_58] : memref<11x256xf32, #tpu.memory_space<vmem>>, vector<1x64xf32>
    %415 = vector.broadcast %414 : vector<1x64xf32> to vector<16x64xf32>
    %416 = arith.mulf %413, %415 : vector<16x64xf32>
    %c4 = arith.constant 4 : index
    %c0_59 = arith.constant 0 : index
    %417 = vector.load %arg2[%c4, %c0_59] : memref<11x256xf32, #tpu.memory_space<vmem>>, vector<1x64xf32>
    %418 = vector.broadcast %417 : vector<1x64xf32> to vector<16x64xf32>
    %419 = arith.addf %416, %418 : vector<16x64xf32>
    %c328 = arith.constant 328 : index
    %c0_60 = arith.constant 0 : index
    %420 = vector.load %arg1[%c328, %c0_60] : memref<504x256xf32, #tpu.memory_space<vmem>>, vector<64x64xf32>
    %cst_61 = arith.constant dense<0.000000e+00> : vector<16x64xf32>
    %421 = tpu.matmul %419, %420, %cst_61 {dimension_numbers = #tpu.dot_dimension_numbers<[1], [0], [0], [1], [0, 0, 1, 1], [], []>} : vector<16x64xf32>, vector<64x64xf32>, vector<16x64xf32> -> vector<16x64xf32>
    %c5 = arith.constant 5 : index
    %c0_62 = arith.constant 0 : index
    %422 = vector.load %arg2[%c5, %c0_62] : memref<11x256xf32, #tpu.memory_space<vmem>>, vector<1x64xf32>
    %423 = vector.broadcast %422 : vector<1x64xf32> to vector<16x64xf32>
    %424 = arith.addf %421, %423 : vector<16x64xf32>
    %425 = math.tanh %424 : vector<16x64xf32>
    %c6 = arith.constant 6 : index
    %c0_63 = arith.constant 0 : index
    %426 = vector.load %arg2[%c6, %c0_63] : memref<11x256xf32, #tpu.memory_space<vmem>>, vector<1x64xf32>
    %427 = vector.broadcast %426 : vector<1x64xf32> to vector<16x64xf32>
    %428 = arith.mulf %425, %427 : vector<16x64xf32>
    %cst_64 = arith.constant dense<0.000000e+00> : vector<16xf32>
    %429 = vector.multi_reduction <add>, %428, %cst_64 [1] : vector<16x64xf32> to vector<16xf32>
    %430 = vector.shape_cast %429 : vector<16xf32> to vector<16x1xf32>
    %c7 = arith.constant 7 : index
    %c0_65 = arith.constant 0 : index
    %431 = vector.load %arg2[%c7, %c0_65] : memref<11x256xf32, #tpu.memory_space<vmem>>, vector<1x1xf32>
    %432 = vector.broadcast %431 : vector<1x1xf32> to vector<16x1xf32>
    %433 = arith.addf %430, %432 : vector<16x1xf32>
    %cst_66 = arith.constant 0xFF800000 : f32
    %434 = vector.shape_cast %433 : vector<16x1xf32> to vector<16x1xf32>
    %435 = vector.broadcast %434 : vector<16x1xf32> to vector<16x2xf32>
    %436 = vector.broadcast %cst_66 : f32 to vector<16x2xf32>
    %437 = arith.select %23, %435, %436 : vector<16x2xi1>, vector<16x2xf32>
    %cst_67 = arith.constant dense<0xFF800000> : vector<2xf32>
    %438 = vector.multi_reduction <maximumf>, %437, %cst_67 [0] : vector<16x2xf32> to vector<2xf32>
    %439 = vector.shape_cast %438 : vector<2xf32> to vector<1x2xf32>
    %440 = vector.broadcast %439 : vector<1x2xf32> to vector<16x2xf32>
    %441 = arith.mulf %25, %440 : vector<16x2xf32>
    %cst_68 = arith.constant dense<0.000000e+00> : vector<16xf32>
    %442 = vector.multi_reduction <add>, %441, %cst_68 [1] : vector<16x2xf32> to vector<16xf32>
    %443 = vector.shape_cast %442 : vector<16xf32> to vector<16x1xf32>
    %444 = arith.subf %433, %443 : vector<16x1xf32>
    %445 = math.exp %444 : vector<16x1xf32>
    %cst_69 = arith.constant dense<0.000000e+00> : vector<2x1xf32>
    %446 = tpu.matmul %18, %445, %cst_69 {dimension_numbers = #tpu.dot_dimension_numbers<[1], [0], [0], [1], [0, 0, 1, 1], [], []>} : vector<2x16xf32>, vector<16x1xf32>, vector<2x1xf32> -> vector<2x1xf32>
    %447 = vector.broadcast %445 : vector<16x1xf32> to vector<16x64xf32>
    %448 = arith.mulf %447, %419 : vector<16x64xf32>
    %cst_70 = arith.constant dense<0.000000e+00> : vector<2x64xf32>
    %449 = tpu.matmul %18, %448, %cst_70 {dimension_numbers = #tpu.dot_dimension_numbers<[1], [0], [0], [1], [0, 0, 1, 1], [], []>} : vector<2x16xf32>, vector<16x64xf32>, vector<2x64xf32> -> vector<2x64xf32>
    %450 = tpu.reciprocal %446 {approx = true} : vector<2x1xf32> -> vector<2x1xf32>
    %451 = vector.broadcast %450 : vector<2x1xf32> to vector<2x64xf32>
    %452 = arith.mulf %449, %451 : vector<2x64xf32>
    %c392 = arith.constant 392 : index
    %c0_71 = arith.constant 0 : index
    %453 = vector.load %arg1[%c392, %c0_71] : memref<504x256xf32, #tpu.memory_space<vmem>>, vector<64x32xf32>
    %cst_72 = arith.constant dense<0.000000e+00> : vector<2x32xf32>
    %454 = tpu.matmul %452, %453, %cst_72 {dimension_numbers = #tpu.dot_dimension_numbers<[1], [0], [0], [1], [0, 0, 1, 1], [], []>} : vector<2x64xf32>, vector<64x32xf32>, vector<2x32xf32> -> vector<2x32xf32>
    %c8_73 = arith.constant 8 : index
    %c0_74 = arith.constant 0 : index
    %455 = vector.load %arg2[%c8_73, %c0_74] : memref<11x256xf32, #tpu.memory_space<vmem>>, vector<1x32xf32>
    %456 = vector.broadcast %455 : vector<1x32xf32> to vector<2x32xf32>
    %457 = arith.addf %454, %456 : vector<2x32xf32>
    %cst_75 = arith.constant 0.000000e+00 : f32
    %458 = vector.broadcast %cst_75 : f32 to vector<2x32xf32>
    %459 = arith.maximumf %457, %458 : vector<2x32xf32>
    %c456 = arith.constant 456 : index
    %c0_76 = arith.constant 0 : index
    %460 = vector.load %arg1[%c456, %c0_76] : memref<504x256xf32, #tpu.memory_space<vmem>>, vector<32x16xf32>
    %cst_77 = arith.constant dense<0.000000e+00> : vector<2x16xf32>
    %461 = tpu.matmul %459, %460, %cst_77 {dimension_numbers = #tpu.dot_dimension_numbers<[1], [0], [0], [1], [0, 0, 1, 1], [], []>} : vector<2x32xf32>, vector<32x16xf32>, vector<2x16xf32> -> vector<2x16xf32>
    %c9 = arith.constant 9 : index
    %c0_78 = arith.constant 0 : index
    %462 = vector.load %arg2[%c9, %c0_78] : memref<11x256xf32, #tpu.memory_space<vmem>>, vector<1x16xf32>
    %463 = vector.broadcast %462 : vector<1x16xf32> to vector<2x16xf32>
    %464 = arith.addf %461, %463 : vector<2x16xf32>
    %cst_79 = arith.constant 0.000000e+00 : f32
    %465 = vector.broadcast %cst_79 : f32 to vector<2x16xf32>
    %466 = arith.maximumf %464, %465 : vector<2x16xf32>
    %c488 = arith.constant 488 : index
    %c0_80 = arith.constant 0 : index
    %467 = vector.load %arg1[%c488, %c0_80] : memref<504x256xf32, #tpu.memory_space<vmem>>, vector<16x8xf32>
    %cst_81 = arith.constant dense<0.000000e+00> : vector<2x8xf32>
    %468 = tpu.matmul %466, %467, %cst_81 {dimension_numbers = #tpu.dot_dimension_numbers<[1], [0], [0], [1], [0, 0, 1, 1], [], []>} : vector<2x16xf32>, vector<16x8xf32>, vector<2x8xf32> -> vector<2x8xf32>
    %c10 = arith.constant 10 : index
    %c0_82 = arith.constant 0 : index
    %469 = vector.load %arg2[%c10, %c0_82] : memref<11x256xf32, #tpu.memory_space<vmem>>, vector<1x8xf32>
    %470 = vector.broadcast %469 : vector<1x8xf32> to vector<2x8xf32>
    %471 = arith.addf %468, %470 : vector<2x8xf32>
    %472 = arith.addf %471, %33 : vector<2x8xf32>
    %c0_83 = arith.constant 0 : index
    %c0_84 = arith.constant 0 : index
    %473 = vector.load %arg3[%c0_83, %c0_84] : memref<2x8xf32, #tpu.memory_space<vmem>>, vector<2x8xf32>
    tpu.vector_store %arg3[%c0_83, %c0_84], %472 {strides = array<i32>} : memref<2x8xf32, #tpu.memory_space<vmem>>, vector<2x8xf32>,
    return
  }
}

</mosaic_0001>

<llo_original>
// kernel: tpu_custom_call.1
$region0: #{tpu_custom_call.1}
  #allocation0 [shape = 'u32[]', space=smem, size = 0x4, offset = 0x4, fixed_abs, tag = 'smem constant byte address 0x4 - core index']
  #allocation1 [shape = 'u32[144,128]{1,0:T(1,128)}', space=vmem, size = 0x12000, scoped, tag = 'internal scratch']
  %s0 = inlined_call_operand.vmem [shape: f32[16,4], index: 0, kind: input, shape index: {}]
  %s1 = inlined_call_operand.hbm [shape: f32[504,256], index: 1, kind: input, shape index: {}]
  %s2 = inlined_call_operand.hbm [shape: f32[11,256], index: 2, kind: input, shape index: {}]
  %s3 = inlined_call_operand.hbm [shape: f32[2,8], index: 3, kind: output, shape index: {}]
  %s4 = sld [smem:[#allocation0]]
  $region30: #{tpu_custom_call.1} parent=0
    _
  %s6 = ssub.s32 1, %s4
  %s7 = scalar_select 0, %s6, %s4
  $region1: #{tpu_custom_call.1} parent=0
    #allocation2 [shape = 'u8[516096]{0}', space=vmem, size = 0x7e000, scoped, tag = 'input window, operand 1, single buffered']
    #allocation3 [shape = 's32[1]{0}', space=sflag, size = 0x4, scoped, tag = 'scoped memory for tpu_custom_call.1']
    #allocation4 [shape = 's32[1]{0}', space=sflag, size = 0x4, scoped, tag = 'scoped memory for tpu_custom_call.1']
    #allocation5 [shape = 'u8[16384]{0}', space=vmem, size = 0x4000, scoped, tag = 'input window, operand 2, single buffered']
    #allocation6 [shape = 's32[1]{0}', space=sflag, size = 0x4, scoped, tag = 'scoped memory for tpu_custom_call.1']
    #allocation7 [shape = 'u8[1024]{0}', space=vmem, size = 0x400, scoped, tag = 'output window, operand 0, single buffered']
    %8 = vsyncpa [#allocation3], 0
    %9 = vsyncpa [#allocation6], 0
    %10 = vsyncpa [#allocation4], 0
    // Predicated region
    $region2: #{tpu_custom_call.1} parent=1 // pred_check
      _
    $region3: #{tpu_custom_call.1} parent=1 // pred_check_branch
      %12 = sbr.rel (0) target = $region5
    $region4: #{tpu_custom_call.1} parent=1 // pred_region
      _
    $region5: #{tpu_custom_call.1} parent=1 // pred_fallthru
      _
    // Predicated region
    $region6: #{tpu_custom_call.1} parent=1 // pred_check
      _
    $region7: #{tpu_custom_call.1} parent=1 // pred_check_branch
      %14 = sbr.rel (0) target = $region9
    $region8: #{tpu_custom_call.1} parent=1 // pred_region
      %s16 = ssub.s32 16128, 16128
      %17 = vsyncadd [#allocation3], %s16
      %s18 = sshll.u32 [#allocation2], 4
      %s19 = int_to_ptr.vmem [resolvable:$true] %s18
      %24 = dma.hbm_to_vmem [thread:$0]  %s1, 16128, %s19, [#allocation3], 256, 256, 16
    $region9: #{tpu_custom_call.1} parent=1 // pred_fallthru
      _
    // Predicated region
    $region10: #{tpu_custom_call.1} parent=1 // pred_check
      _
    $region11: #{tpu_custom_call.1} parent=1 // pred_check_branch
      %26 = sbr.rel (0) target = $region13
    $region12: #{tpu_custom_call.1} parent=1 // pred_region
      %s28 = ssub.s32 512, 512
      %29 = vsyncadd [#allocation6], %s28
      %s30 = sshll.u32 [#allocation5], 4
      %s31 = int_to_ptr.vmem [resolvable:$true] %s30
      %36 = dma.hbm_to_vmem [thread:$0]  %s2, 512, %s31, [#allocation6], 256, 256, 16
    $region13: #{tpu_custom_call.1} parent=1 // pred_fallthru
      _
    // Predicated region
    $region14: #{tpu_custom_call.1} parent=1 // pred_check
      _
    $region15: #{tpu_custom_call.1} parent=1 // pred_check_branch
      %38 = sbr.rel (0) target = $region17
    $region16: #{tpu_custom_call.1} parent=1 // pred_region
      %39 = dma.done [#allocation3], 16128
    $region17: #{tpu_custom_call.1} parent=1 // pred_fallthru
      _
    // Predicated region
    $region18: #{tpu_custom_call.1} parent=1 // pred_check
      _
    $region19: #{tpu_custom_call.1} parent=1 // pred_check_branch
      %41 = sbr.rel (0) target = $region21
    $region20: #{tpu_custom_call.1} parent=1 // pred_region
      %42 = dma.done [#allocation6], 512
    $region21: #{tpu_custom_call.1} parent=1 // pred_fallthru
      _
    %v43 = vlaneseq
    %v44 = vshrl.u32 %v43, 7
    %v45 = vadd.s32 %v44, 8
    %v46 = vlaneseq
    %v47 = vand.u32 %v46, 127
    %v48 = vand.u32 %v44, 1
    %v49 = vand.u32 %v45, 1
    %v50 = vsub.s32 14, %v44
    %v51 = vsub.s32 14, %v45
    %v52 = vmul.u32 %v48, 2
    %v53 = vmul.u32 %v49, 2
    %v54 = vadd.s32 %v50, %v52
    %v55 = vadd.s32 %v51, %v53
    %vm56 = vcmp.eq.s32.totalorder %v47, %v54
    %vm57 = vcmp.eq.s32.totalorder %v47, %v55
    %v58 = vsel %vm56, 1, 0
    %v59 = vsel %vm57, 1, 0
    %v60 = vcvt.s32.f32 %v58
    %v61 = vcvt.s32.f32 %v59
    %v62 = vand.u32 %v47, 1
    %vm63 = vcmp.eq.s32.totalorder %v62, %v44
    %v64 = vsel %vm63, 1, 0
    %v65 = vcvt.s32.f32 %v64
    %vm66 = vcmp.eq.s32.totalorder %v48, %v47
    %vm67 = vcmp.eq.s32.totalorder %v49, %v47
    %v68 = vsel %vm66, 1, 0
    %v69 = vsel %vm67, 1, 0
    %v70 = vcvt.s32.f32 %v68
    %v71 = vcvt.s32.f32 %v69
    %v72 = vld [vmem:[%s0] sm:$0xff]
    %v73 = vld [vmem:[%s0 + $0x8] sm:$0xff]
    %v74 = vld [vmem:[#allocation2] sm:$0xf]
    %v75 = vld [vmem:[#allocation5] ss:$0 sm:$0xff]
    %vm76 = vcmask 31744
    %v78 = vsel %vm76, %v72, 0
    %v81 = vsel %vm76, %v73, 0
    %vm83 = vcmask 1043456
    %v85 = vsel %vm83, %v74, 0
    %87 = vmatprep.subr.mxu0 0.0
    %88 = vmatpush1.msra.mxu0 %v85
    %89 = vmatprep.subr.mxu0 0.0
    %90 = vmatpush1.msra.mxu0 0.0
    %91 = vmatprep.subr.mxu0 0.0
    %92 = vmatpush1.msra.mxu0 0.0
    %93 = vmatprep.subr.mxu0 0.0
    %94 = vmatpush1.msra.mxu0 0.0
    %95 = vmatprep.subr.mxu0 0.0
    %96 = vmatpush1.msra.mxu0 0.0
    %97 = vmatprep.subr.mxu0 0.0
    %98 = vmatpush1.msra.mxu0 0.0
    %99 = vmatprep.subr.mxu0 0.0
    %100 = vmatpush1.msra.mxu0 0.0
    %101 = vmatprep.subr.mxu0 0.0
    %102 = vmatpush1.msra.mxu0 0.0
    %103 = vmatprep.subr.mxu0 0.0
    %104 = vmatpush1.msra.mxu0 0.0
    %105 = vmatprep.subr.mxu0 0.0
    %106 = vmatpush1.msra.mxu0 0.0
    %107 = vmatprep.subr.mxu0 0.0
    %108 = vmatpush1.msra.mxu0 0.0
    %109 = vmatprep.subr.mxu0 0.0
    %110 = vmatpush1.msra.mxu0 0.0
    %111 = vmatprep.subr.mxu0 0.0
    %112 = vmatpush1.msra.mxu0 0.0
    %113 = vmatprep.subr.mxu0 0.0
    %114 = vmatpush1.msra.mxu0 0.0
    %115 = vmatprep.subr.mxu0 0.0
    %116 = vmatpush1.msra.mxu0 0.0
    %117 = vmatprep.subr.mxu0 0.0
    %118 = vmatpush1.msra.mxu0 0.0
    %119 = vmatprep.subr.mxu0 0.0
    %120 = vmatpush1.msra.mxu0 0.0
    %121 = vmatprep.subr.mxu0 0.0
    %122 = vmatpush1.msra.mxu0 0.0
    %123 = vmatprep.subr.mxu0 0.0
    %124 = vmatpush1.msra.mxu0 0.0
    %125 = vmatprep.subr.mxu0 0.0
    %126 = vmatpush1.msra.mxu0 0.0
    %127 = vmatprep.subr.mxu0 0.0
    %128 = vmatpush1.msra.mxu0 0.0
    %129 = vmatprep.subr.mxu0 0.0
    %130 = vmatpush1.msra.mxu0 0.0
    %131 = vmatprep.subr.mxu0 0.0
    %132 = vmatpush1.msra.mxu0 0.0
    %133 = vmatprep.subr.mxu0 0.0
    %134 = vmatpush1.msra.mxu0 0.0
    %135 = vmatprep.subr.mxu0 0.0
    %136 = vmatpush1.msra.mxu0 0.0
    %137 = vmatprep.subr.mxu0 0.0
    %138 = vmatpush1.msra.mxu0 0.0
    %139 = vmatprep.subr.mxu0 0.0
    %140 = vmatpush1.msra.mxu0 0.0
    %141 = vmatprep.subr.mxu0 0.0
    %142 = vmatpush1.msra.mxu0 0.0
    %143 = vmatprep.subr.mxu0 0.0
    %144 = vmatpush1.msra.mxu0 0.0
    %145 = vmatprep.subr.mxu0 0.0
    %146 = vmatpush1.msra.mxu0 0.0
    %147 = vmatprep.subr.mxu0 0.0
    %148 = vmatpush1.msra.mxu0 0.0
    %149 = vmatprep.subr.mxu0 0.0
    %150 = vmatpush1.msra.mxu0 0.0
    %151 = vmatprep.mubr.f32.mxu0 0.0
    %152 = vmatmul.mubr.f32.gmra.mrb[0].mxu0 %v78
    %v153 = vpop.f32.mrb[0].mxu0
    %v154 = vadd.f32 %v75, %v153
    %v155 = vpop.f32.mrb[0].mxu0
    %156 = vmatprep.mubr.f32.mxu0 0.0
    %157 = vmatmul.mubr.f32.gmra.mrb[0].mxu0 %v81
    %v158 = vpop.f32.mrb[0].mxu0
    %v159 = vadd.f32 %v75, %v158
    %v160 = vpop.f32.mrb[0].mxu0
    %161 = vdwg.mxu0
    %vm162 = vcmask 130048
    %v164 = vsel %vm162, %v60, 0
    %v167 = vsel %vm162, %v61, 0
    %169 = vmatprep.subr.mxu0 0.0
    %170 = vmatpush1.msra.mxu0 %v154
    %171 = vmatprep.subr.mxu0 0.0
    %172 = vmatpush1.msra.mxu0 %v159
    %173 = vmatprep.subr.mxu0 0.0
    %174 = vmatpush1.msra.mxu0 0.0
    %175 = vmatprep.subr.mxu0 0.0
    %176 = vmatpush1.msra.mxu0 0.0
    %177 = vmatprep.subr.mxu0 0.0
    %178 = vmatpush1.msra.mxu0 0.0
    %179 = vmatprep.subr.mxu0 0.0
    %180 = vmatpush1.msra.mxu0 0.0
    %181 = vmatprep.subr.mxu0 0.0
    %182 = vmatpush1.msra.mxu0 0.0
    %183 = vmatprep.subr.mxu0 0.0
    %184 = vmatpush1.msra.mxu0 0.0
    %185 = vmatprep.subr.mxu0 0.0
    %186 = vmatpush1.msra.mxu0 0.0
    %187 = vmatprep.subr.mxu0 0.0
    %188 = vmatpush1.msra.mxu0 0.0
    %189 = vmatprep.subr.mxu0 0.0
    %190 = vmatpush1.msra.mxu0 0.0
    %191 = vmatprep.subr.mxu0 0.0
    %192 = vmatpush1.msra.mxu0 0.0
    %193 = vmatprep.subr.mxu0 0.0
    %194 = vmatpush1.msra.mxu0 0.0
    %195 = vmatprep.subr.mxu0 0.0
    %196 = vmatpush1.msra.mxu0 0.0
    %197 = vmatprep.subr.mxu0 0.0
    %198 = vmatpush1.msra.mxu0 0.0
    %199 = vmatprep.subr.mxu0 0.0
    %200 = vmatpush1.msra.mxu0 0.0
    %201 = vmatprep.subr.mxu0 0.0
    %202 = vmatpush1.msra.mxu0 0.0
    %203 = vmatprep.subr.mxu0 0.0
    %204 = vmatpush1.msra.mxu0 0.0
    %205 = vmatprep.subr.mxu0 0.0
    %206 = vmatpush1.msra.mxu0 0.0
    %207 = vmatprep.subr.mxu0 0.0
    %208 = vmatpush1.msra.mxu0 0.0
    %209 = vmatprep.subr.mxu0 0.0
    %210 = vmatpush1.msra.mxu0 0.0
    %211 = vmatprep.subr.mxu0 0.0
    %212 = vmatpush1.msra.mxu0 0.0
    %213 = vmatprep.subr.mxu0 0.0
    %214 = vmatpush1.msra.mxu0 0.0
    %215 = vmatprep.subr.mxu0 0.0
    %216 = vmatpush1.msra.mxu0 0.0
    %217 = vmatprep.subr.mxu0 0.0
    %218 = vmatpush1.msra.mxu0 0.0
    %219 = vmatprep.subr.mxu0 0.0
    %220 = vmatpush1.msra.mxu0 0.0
    %221 = vmatprep.subr.mxu0 0.0
    %222 = vmatpush1.msra.mxu0 0.0
    %223 = vmatprep.subr.mxu0 0.0
    %224 = vmatpush1.msra.mxu0 0.0
    %225 = vmatprep.subr.mxu0 0.0
    %226 = vmatpush1.msra.mxu0 0.0
    %227 = vmatprep.subr.mxu0 0.0
    %228 = vmatpush1.msra.mxu0 0.0
    %229 = vmatprep.subr.mxu0 0.0
    %230 = vmatpush1.msra.mxu0 0.0
    %231 = vmatprep.subr.mxu0 0.0
    %232 = vmatpush1.msra.mxu0 0.0
    %233 = vmatprep.mubr.f32.mxu0 0.0
    %234 = vmatmul.mubr.f32.gmra.mrb[0].mxu0 %v164
    %v235 = vpop.f32.mrb[0].mxu0
    %v236 = vadd.f32 0.0, %v235
    %v237 = vpop.f32.mrb[0].mxu0
    %238 = vmatprep.mubr.f32.mxu0 0.0
    %239 = vmatmul.mubr.f32.gmra.mrb[0].mxu0 %v167
    %v240 = vpop.f32.mrb[0].mxu0
    %v241 = vadd.f32 0.0, %v240
    %v242 = vpop.f32.mrb[0].mxu0
    %243 = vdwg.mxu0
    %246 = vrot.lane.b32.xlu0 %v236, 32
    %v247 = vpop.permute.xlu0 %246
    %248 = vrot.lane.b32.xlu0 %v241, 32
    %v249 = vpop.permute.xlu0 %248
    %vm252 = vcmask 261120
    %v253 = vsel %vm252, %v154, %v247
    %v254 = vsel %vm252, %v159, %v249
    %v255 = vld [vmem:[#allocation2 + $0x10] sm:$0xff]
    %v256 = vld [vmem:[#allocation2 + $0x18] sm:$0xff]
    %v257 = vld [vmem:[#allocation2 + $0x20] sm:$0xff]
    %v258 = vld [vmem:[#allocation2 + $0x28] sm:$0xff]
    %v259 = vld [vmem:[#allocation2 + $0x30] sm:$0xff]
    %v260 = vld [vmem:[#allocation2 + $0x38] sm:$0xff]
    %v261 = vld [vmem:[#allocation2 + $0x40] sm:$0xff]
    %v262 = vld [vmem:[#allocation2 + $0x48] sm:$0xff]
    %v263 = vld [vmem:[#allocation2 + $0x50] sm:$0xff]
    %v264 = vld [vmem:[#allocation2 + $0x58] sm:$0xff]
    %v265 = vld [vmem:[#allocation2 + $0x60] sm:$0xff]
    %v266 = vld [vmem:[#allocation2 + $0x68] sm:$0xff]
    %v267 = vld [vmem:[#allocation2 + $0x70] sm:$0xff]
    %v268 = vld [vmem:[#allocation2 + $0x78] sm:$0xff]
    %v269 = vld [vmem:[#allocation2 + $0x80] sm:$0xff]
    %v270 = vld [vmem:[#allocation2 + $0x88] sm:$0xff]
    %s271 = scalar_lea.vmem [#allocation5], 1
    %v272 = vld [vmem:[%s271] ss:$8 sm:$0x3]
    %v274 = vlaneseq
    %v275 = vshrl.u32 %v274, 7
    %v276 = vsub.s32 0, %v275
    %v277 = vrot.slane %v272, %v276
    %v278 = vlaneseq
    %v279 = vshrl.u32 %v278, 7
    %v280 = vsub.s32 1, %v279
    %v281 = vrot.slane %v272, %v280
    %vm284 = vcmask 523264
    %v286 = vsel %vm284, %v253, 0
    %v289 = vsel %vm284, %v254, 0
    %291 = vmatprep.subr.mxu0 %v256
    %292 = vmatpush1.msra.mxu0 %v255
    %293 = vmatprep.subr.mxu0 %v258
    %294 = vmatpush1.msra.mxu0 %v257
    %295 = vmatprep.subr.mxu0 %v260
    %296 = vmatpush1.msra.mxu0 %v259
    %297 = vmatprep.subr.mxu0 %v262
    %298 = vmatpush1.msra.mxu0 %v261
    %299 = vmatprep.subr.mxu0 %v264
    %300 = vmatpush1.msra.mxu0 %v263
    %301 = vmatprep.subr.mxu0 %v266
    %302 = vmatpush1.msra.mxu0 %v265
    %303 = vmatprep.subr.mxu0 %v268
    %304 = vmatpush1.msra.mxu0 %v267
    %305 = vmatprep.subr.mxu0 %v270
    %306 = vmatpush1.msra.mxu0 %v269
    %307 = vmatprep.subr.mxu0 0.0
    %308 = vmatpush1.msra.mxu0 0.0
    %309 = vmatprep.subr.mxu0 0.0
    %310 = vmatpush1.msra.mxu0 0.0
    %311 = vmatprep.subr.mxu0 0.0
    %312 = vmatpush1.msra.mxu0 0.0
    %313 = vmatprep.subr.mxu0 0.0
    %314 = vmatpush1.msra.mxu0 0.0
    %315 = vmatprep.subr.mxu0 0.0
    %316 = vmatpush1.msra.mxu0 0.0
    %317 = vmatprep.subr.mxu0 0.0
    %318 = vmatpush1.msra.mxu0 0.0
    %319 = vmatprep.subr.mxu0 0.0
    %320 = vmatpush1.msra.mxu0 0.0
    %321 = vmatprep.subr.mxu0 0.0
    %322 = vmatpush1.msra.mxu0 0.0
    %323 = vmatprep.subr.mxu0 0.0
    %324 = vmatpush1.msra.mxu0 0.0
    %325 = vmatprep.subr.mxu0 0.0
    %326 = vmatpush1.msra.mxu0 0.0
    %327 = vmatprep.subr.mxu0 0.0
    %328 = vmatpush1.msra.mxu0 0.0
    %329 = vmatprep.subr.mxu0 0.0
    %330 = vmatpush1.msra.mxu0 0.0
    %331 = vmatprep.subr.mxu0 0.0
    %332 = vmatpush1.msra.mxu0 0.0
    %333 = vmatprep.subr.mxu0 0.0
    %334 = vmatpush1.msra.mxu0 0.0
    %335 = vmatprep.subr.mxu0 0.0
    %336 = vmatpush1.msra.mxu0 0.0
    %337 = vmatprep.subr.mxu0 0.0
    %338 = vmatpush1.msra.mxu0 0.0
    %339 = vmatprep.subr.mxu0 0.0
    %340 = vmatpush1.msra.mxu0 0.0
    %341 = vmatprep.subr.mxu0 0.0
    %342 = vmatpush1.msra.mxu0 0.0
    %343 = vmatprep.subr.mxu0 0.0
    %344 = vmatpush1.msra.mxu0 0.0
    %345 = vmatprep.subr.mxu0 0.0
    %346 = vmatpush1.msra.mxu0 0.0
    %347 = vmatprep.subr.mxu0 0.0
    %348 = vmatpush1.msra.mxu0 0.0
    %349 = vmatprep.subr.mxu0 0.0
    %350 = vmatpush1.msra.mxu0 0.0
    %351 = vmatprep.subr.mxu0 0.0
    %352 = vmatpush1.msra.mxu0 0.0
    %353 = vmatprep.subr.mxu0 0.0
    %354 = vmatpush1.msra.mxu0 0.0
    %355 = vmatprep.mubr.f32.mxu0 0.0
    %356 = vmatmul.mubr.f32.gmra.mrb[0].mxu0 %v286
    %v357 = vpop.f32.mrb[0].mxu0
    %v358 = vadd.f32 %v277, %v357
    %v359 = vpop.f32.mrb[0].mxu0
    %v360 = vadd.f32 %v281, %v359
    %361 = vmatprep.mubr.f32.mxu0 0.0
    %362 = vmatmul.mubr.f32.gmra.mrb[0].mxu0 %v289
    %v363 = vpop.f32.mrb[0].mxu0
    %v364 = vadd.f32 %v277, %v363
    %v365 = vpop.f32.mrb[0].mxu0
    %v366 = vadd.f32 %v281, %v365
    %367 = vdwg.mxu0
    %v368 = vld [vmem:[#allocation2 + $0x90] sm:$0xff]
    %v369 = vld [vmem:[#allocation2 + $0x98] sm:$0xff]
    %v370 = vld [vmem:[#allocation2 + $0xa0] sm:$0xff]
    %v371 = vld [vmem:[#allocation2 + $0xa8] sm:$0xff]
    %v372 = vld [vmem:[#allocation2 + $0xb0] sm:$0xff]
    %v373 = vld [vmem:[#allocation2 + $0xb8] sm:$0xff]
    %v374 = vld [vmem:[#allocation2 + $0xc0] sm:$0xff]
    %v375 = vld [vmem:[#allocation2 + $0xc8] sm:$0xff]
    %v376 = vld [vmem:[#allocation2 + $0xd0] sm:$0xff]
    %v377 = vld [vmem:[#allocation2 + $0xd8] sm:$0xff]
    %v378 = vld [vmem:[#allocation2 + $0xe0] sm:$0xff]
    %v379 = vld [vmem:[#allocation2 + $0xe8] sm:$0xff]
    %v380 = vld [vmem:[#allocation2 + $0xf0] sm:$0xff]
    %v381 = vld [vmem:[#allocation2 + $0xf8] sm:$0xff]
    %v382 = vld [vmem:[#allocation2 + $0x100] sm:$0xff]
    %v383 = vld [vmem:[#allocation2 + $0x108] sm:$0xff]
    %v385 = vsel %vm284, 0.0, 0
    %387 = vmatprep.subr.mxu0 %v369
    %388 = vmatpush1.msra.mxu0 %v368
    %389 = vmatprep.subr.mxu0 %v371
    %390 = vmatpush1.msra.mxu0 %v370
    %391 = vmatprep.subr.mxu0 %v373
    %392 = vmatpush1.msra.mxu0 %v372
    %393 = vmatprep.subr.mxu0 %v375
    %394 = vmatpush1.msra.mxu0 %v374
    %395 = vmatprep.subr.mxu0 %v377
    %396 = vmatpush1.msra.mxu0 %v376
    %397 = vmatprep.subr.mxu0 %v379
    %398 = vmatpush1.msra.mxu0 %v378
    %399 = vmatprep.subr.mxu0 %v381
    %400 = vmatpush1.msra.mxu0 %v380
    %401 = vmatprep.subr.mxu0 %v383
    %402 = vmatpush1.msra.mxu0 %v382
    %403 = vmatprep.subr.mxu0 0.0
    %404 = vmatpush1.msra.mxu0 0.0
    %405 = vmatprep.subr.mxu0 0.0
    %406 = vmatpush1.msra.mxu0 0.0
    %407 = vmatprep.subr.mxu0 0.0
    %408 = vmatpush1.msra.mxu0 0.0
    %409 = vmatprep.subr.mxu0 0.0
    %410 = vmatpush1.msra.mxu0 0.0
    %411 = vmatprep.subr.mxu0 0.0
    %412 = vmatpush1.msra.mxu0 0.0
    %413 = vmatprep.subr.mxu0 0.0
    %414 = vmatpush1.msra.mxu0 0.0
    %415 = vmatprep.subr.mxu0 0.0
    %416 = vmatpush1.msra.mxu0 0.0
    %417 = vmatprep.subr.mxu0 0.0
    %418 = vmatpush1.msra.mxu0 0.0
    %419 = vmatprep.subr.mxu0 0.0
    %420 = vmatpush1.msra.mxu0 0.0
    %421 = vmatprep.subr.mxu0 0.0
    %422 = vmatpush1.msra.mxu0 0.0
    %423 = vmatprep.subr.mxu0 0.0
    %424 = vmatpush1.msra.mxu0 0.0
    %425 = vmatprep.subr.mxu0 0.0
    %426 = vmatpush1.msra.mxu0 0.0
    %427 = vmatprep.subr.mxu0 0.0
    %428 = vmatpush1.msra.mxu0 0.0
    %429 = vmatprep.subr.mxu0 0.0
    %430 = vmatpush1.msra.mxu0 0.0
    %431 = vmatprep.subr.mxu0 0.0
    %432 = vmatpush1.msra.mxu0 0.0
    %433 = vmatprep.subr.mxu0 0.0
    %434 = vmatpush1.msra.mxu0 0.0
    %435 = vmatprep.subr.mxu0 0.0
    %436 = vmatpush1.msra.mxu0 0.0
    %437 = vmatprep.subr.mxu0 0.0
    %438 = vmatpush1.msra.mxu0 0.0
    %439 = vmatprep.subr.mxu0 0.0
    %440 = vmatpush1.msra.mxu0 0.0
    %441 = vmatprep.subr.mxu0 0.0
    %442 = vmatpush1.msra.mxu0 0.0
    %443 = vmatprep.subr.mxu0 0.0
    %444 = vmatpush1.msra.mxu0 0.0
    %445 = vmatprep.subr.mxu0 0.0
    %446 = vmatpush1.msra.mxu0 0.0
    %447 = vmatprep.subr.mxu0 0.0
    %448 = vmatpush1.msra.mxu0 0.0
    %449 = vmatprep.subr.mxu0 0.0
    %450 = vmatpush1.msra.mxu0 0.0
    %451 = vmatprep.mubr.f32.mxu0 0.0
    %452 = vmatmul.mubr.f32.gmra.mrb[0].mxu0 %v385
    %v453 = vpop.f32.mrb[0].mxu0
    %v454 = vadd.f32 0.0, %v453
    %v455 = vpop.f32.mrb[0].mxu0
    %v456 = vadd.f32 0.0, %v455
    %457 = vdwg.mxu0
    %v458 = vadd.f32 %v358, %v454
    %v459 = vadd.f32 %v360, %v456
    %v460 = vxor.u32 %v458, 2147483648
    %v461 = vxor.u32 %v459, 2147483648
    %v462 = vmul.f32 %v460, 1.442695
    %v463 = vpow.pop %v462
    %v464 = vmul.f32 %v461, 1.442695
    %v465 = vpow.pop %v464
    %v466 = vadd.f32 %v463, 1.0
    %v467 = vadd.f32 %v465, 1.0
    %v468 = vrcp.pop %v466
    %v469 = vmul.f32 1.0, %v468
    %v470 = vrcp.pop %v467
    %v471 = vmul.f32 1.0, %v470
    %v472 = vtanh.pop %v459
    %v473 = vmul.f32 %v469, 0.0
    %475 = vrot.lane.b32.xlu0 %v472, 64
    %v476 = vpop.permute.xlu0 %475
    %v478 = vmul.f32 %v469, %v476
    %480 = vrot.lane.b32.xlu0 %v478, 64
    %v481 = vpop.permute.xlu0 %480
    %v483 = vadd.f32 %v473, %v481
    %v484 = vtanh.pop %v483
    %486 = vrot.lane.b32.xlu0 %v484, 64
    %v487 = vpop.permute.xlu0 %486
    %v489 = vmul.f32 %v471, %v487
    %v491 = vsel %vm284, %v489, 0
    %493 = vmatprep.subr.mxu0 %v369
    %494 = vmatpush1.msra.mxu0 %v368
    %495 = vmatprep.subr.mxu0 %v371
    %496 = vmatpush1.msra.mxu0 %v370
    %497 = vmatprep.subr.mxu0 %v373
    %498 = vmatpush1.msra.mxu0 %v372
    %499 = vmatprep.subr.mxu0 %v375
    %500 = vmatpush1.msra.mxu0 %v374
    %501 = vmatprep.subr.mxu0 %v377
    %502 = vmatpush1.msra.mxu0 %v376
    %503 = vmatprep.subr.mxu0 %v379
    %504 = vmatpush1.msra.mxu0 %v378
    %505 = vmatprep.subr.mxu0 %v381
    %506 = vmatpush1.msra.mxu0 %v380
    %507 = vmatprep.subr.mxu0 %v383
    %508 = vmatpush1.msra.mxu0 %v382
    %509 = vmatprep.subr.mxu0 0.0
    %510 = vmatpush1.msra.mxu0 0.0
    %511 = vmatprep.subr.mxu0 0.0
    %512 = vmatpush1.msra.mxu0 0.0
    %513 = vmatprep.subr.mxu0 0.0
    %514 = vmatpush1.msra.mxu0 0.0
    %515 = vmatprep.subr.mxu0 0.0
    %516 = vmatpush1.msra.mxu0 0.0
    %517 = vmatprep.subr.mxu0 0.0
    %518 = vmatpush1.msra.mxu0 0.0
    %519 = vmatprep.subr.mxu0 0.0
    %520 = vmatpush1.msra.mxu0 0.0
    %521 = vmatprep.subr.mxu0 0.0
    %522 = vmatpush1.msra.mxu0 0.0
    %523 = vmatprep.subr.mxu0 0.0
    %524 = vmatpush1.msra.mxu0 0.0
    %525 = vmatprep.subr.mxu0 0.0
    %526 = vmatpush1.msra.mxu0 0.0
    %527 = vmatprep.subr.mxu0 0.0
    %528 = vmatpush1.msra.mxu0 0.0
    %529 = vmatprep.subr.mxu0 0.0
    %530 = vmatpush1.msra.mxu0 0.0
    %531 = vmatprep.subr.mxu0 0.0
    %532 = vmatpush1.msra.mxu0 0.0
    %533 = vmatprep.subr.mxu0 0.0
    %534 = vmatpush1.msra.mxu0 0.0
    %535 = vmatprep.subr.mxu0 0.0
    %536 = vmatpush1.msra.mxu0 0.0
    %537 = vmatprep.subr.mxu0 0.0
    %538 = vmatpush1.msra.mxu0 0.0
    %539 = vmatprep.subr.mxu0 0.0
    %540 = vmatpush1.msra.mxu0 0.0
    %541 = vmatprep.subr.mxu0 0.0
    %542 = vmatpush1.msra.mxu0 0.0
    %543 = vmatprep.subr.mxu0 0.0
    %544 = vmatpush1.msra.mxu0 0.0
    %545 = vmatprep.subr.mxu0 0.0
    %546 = vmatpush1.msra.mxu0 0.0
    %547 = vmatprep.subr.mxu0 0.0
    %548 = vmatpush1.msra.mxu0 0.0
    %549 = vmatprep.subr.mxu0 0.0
    %550 = vmatpush1.msra.mxu0 0.0
    %551 = vmatprep.subr.mxu0 0.0
    %552 = vmatpush1.msra.mxu0 0.0
    %553 = vmatprep.subr.mxu0 0.0
    %554 = vmatpush1.msra.mxu0 0.0
    %555 = vmatprep.subr.mxu0 0.0
    %556 = vmatpush1.msra.mxu0 0.0
    %557 = vmatprep.mubr.f32.mxu0 0.0
    %558 = vmatmul.mubr.f32.gmra.mrb[0].mxu0 %v491
    %v559 = vpop.f32.mrb[0].mxu0
    %v560 = vadd.f32 0.0, %v559
    %v561 = vpop.f32.mrb[0].mxu0
    %v562 = vadd.f32 0.0, %v561
    %563 = vdwg.mxu0
    %v566 = vrot.slane %v560, 6
    %v567 = vrot.slane %v562, 6
    %v570 = vadd.f32 %v358, %v566
    %v571 = vadd.f32 %v360, %v567
    %v572 = vxor.u32 %v570, 2147483648
    %v573 = vxor.u32 %v571, 2147483648
    %v574 = vmul.f32 %v572, 1.442695
    %v575 = vpow.pop %v574
    %v576 = vmul.f32 %v573, 1.442695
    %v577 = vpow.pop %v576
    %v578 = vadd.f32 %v575, 1.0
    %v579 = vadd.f32 %v577, 1.0
    %v580 = vrcp.pop %v578
    %v581 = vmul.f32 1.0, %v580
    %v582 = vrcp.pop %v579
    %v583 = vmul.f32 1.0, %v582
    %v584 = vtanh.pop %v571
    %v586 = vrot.slane %v483, 6
    %v588 = vmul.f32 %v581, %v586
    %590 = vrot.lane.b32.xlu0 %v584, 64
    %v591 = vpop.permute.xlu0 %590
    %v593 = vmul.f32 %v581, %v591
    %595 = vrot.lane.b32.xlu0 %v593, 64
    %v596 = vpop.permute.xlu0 %595
    %v598 = vadd.f32 %v588, %v596
    %v599 = vtanh.pop %v598
    %601 = vrot.lane.b32.xlu0 %v599, 64
    %v602 = vpop.permute.xlu0 %601
    %v604 = vmul.f32 %v583, %v602
    %v606 = vrot.slane %v604, 2
    %v607 = vsel %vm284, %v606, 0
    %609 = vmatprep.subr.mxu0 %v369
    %610 = vmatpush1.msra.mxu0 %v368
    %611 = vmatprep.subr.mxu0 %v371
    %612 = vmatpush1.msra.mxu0 %v370
    %613 = vmatprep.subr.mxu0 %v373
    %614 = vmatpush1.msra.mxu0 %v372
    %615 = vmatprep.subr.mxu0 %v375
    %616 = vmatpush1.msra.mxu0 %v374
    %617 = vmatprep.subr.mxu0 %v377
    %618 = vmatpush1.msra.mxu0 %v376
    %619 = vmatprep.subr.mxu0 %v379
    %620 = vmatpush1.msra.mxu0 %v378
    %621 = vmatprep.subr.mxu0 %v381
    %622 = vmatpush1.msra.mxu0 %v380
    %623 = vmatprep.subr.mxu0 %v383
    %624 = vmatpush1.msra.mxu0 %v382
    %625 = vmatprep.subr.mxu0 0.0
    %626 = vmatpush1.msra.mxu0 0.0
    %627 = vmatprep.subr.mxu0 0.0
    %628 = vmatpush1.msra.mxu0 0.0
    %629 = vmatprep.subr.mxu0 0.0
    %630 = vmatpush1.msra.mxu0 0.0
    %631 = vmatprep.subr.mxu0 0.0
    %632 = vmatpush1.msra.mxu0 0.0
    %633 = vmatprep.subr.mxu0 0.0
    %634 = vmatpush1.msra.mxu0 0.0
    %635 = vmatprep.subr.mxu0 0.0
    %636 = vmatpush1.msra.mxu0 0.0
    %637 = vmatprep.subr.mxu0 0.0
    %638 = vmatpush1.msra.mxu0 0.0
    %639 = vmatprep.subr.mxu0 0.0
    %640 = vmatpush1.msra.mxu0 0.0
    %641 = vmatprep.subr.mxu0 0.0
    %642 = vmatpush1.msra.mxu0 0.0
    %643 = vmatprep.subr.mxu0 0.0
    %644 = vmatpush1.msra.mxu0 0.0
    %645 = vmatprep.subr.mxu0 0.0
    %646 = vmatpush1.msra.mxu0 0.0
    %647 = vmatprep.subr.mxu0 0.0
    %648 = vmatpush1.msra.mxu0 0.0
    %649 = vmatprep.subr.mxu0 0.0
    %650 = vmatpush1.msra.mxu0 0.0
    %651 = vmatprep.subr.mxu0 0.0
    %652 = vmatpush1.msra.mxu0 0.0
    %653 = vmatprep.subr.mxu0 0.0
    %654 = vmatpush1.msra.mxu0 0.0
    %655 = vmatprep.subr.mxu0 0.0
    %656 = vmatpush1.msra.mxu0 0.0
    %657 = vmatprep.subr.mxu0 0.0
    %658 = vmatpush1.msra.mxu0 0.0
    %659 = vmatprep.subr.mxu0 0.0
    %660 = vmatpush1.msra.mxu0 0.0
    %661 = vmatprep.subr.mxu0 0.0
    %662 = vmatpush1.msra.mxu0 0.0
    %663 = vmatprep.subr.mxu0 0.0
    %664 = vmatpush1.msra.mxu0 0.0
    %665 = vmatprep.subr.mxu0 0.0
    %666 = vmatpush1.msra.mxu0 0.0
    %667 = vmatprep.subr.mxu0 0.0
    %668 = vmatpush1.msra.mxu0 0.0
    %669 = vmatprep.subr.mxu0 0.0
    %670 = vmatpush1.msra.mxu0 0.0
    %671 = vmatprep.subr.mxu0 0.0
    %672 = vmatpush1.msra.mxu0 0.0
    %673 = vmatprep.mubr.f32.mxu0 0.0
    %674 = vmatmul.mubr.f32.gmra.mrb[0].mxu0 %v607
    %v675 = vpop.f32.mrb[0].mxu0
    %v676 = vadd.f32 0.0, %v675
    %v677 = vpop.f32.mrb[0].mxu0
    %v678 = vadd.f32 0.0, %v677
    %679 = vdwg.mxu0
    %v682 = vrot.slane %v676, 4
    %v683 = vrot.slane %v678, 4
    %v686 = vadd.f32 %v358, %v682
    %v687 = vadd.f32 %v360, %v683
    %v688 = vxor.u32 %v686, 2147483648
    %v689 = vxor.u32 %v687, 2147483648
    %v690 = vmul.f32 %v688, 1.442695
    %v691 = vpow.pop %v690
    %v692 = vmul.f32 %v689, 1.442695
    %v693 = vpow.pop %v692
    %v694 = vadd.f32 %v691, 1.0
    %v695 = vadd.f32 %v693, 1.0
    %v696 = vrcp.pop %v694
    %v697 = vmul.f32 1.0, %v696
    %v698 = vrcp.pop %v695
    %v699 = vmul.f32 1.0, %v698
    %v700 = vtanh.pop %v687
    %v702 = vrot.slane %v598, 6
    %v704 = vmul.f32 %v697, %v702
    %706 = vrot.lane.b32.xlu0 %v700, 64
    %v707 = vpop.permute.xlu0 %706
    %v709 = vmul.f32 %v697, %v707
    %711 = vrot.lane.b32.xlu0 %v709, 64
    %v712 = vpop.permute.xlu0 %711
    %v714 = vadd.f32 %v704, %v712
    %v715 = vtanh.pop %v714
    %717 = vrot.lane.b32.xlu0 %v715, 64
    %v718 = vpop.permute.xlu0 %717
    %v720 = vmul.f32 %v699, %v718
    %v722 = vrot.slane %v720, 4
    %v723 = vsel %vm284, %v722, 0
    %725 = vmatprep.subr.mxu0 %v369
    %726 = vmatpush1.msra.mxu0 %v368
    %727 = vmatprep.subr.mxu0 %v371
    %728 = vmatpush1.msra.mxu0 %v370
    %729 = vmatprep.subr.mxu0 %v373
    %730 = vmatpush1.msra.mxu0 %v372
    %731 = vmatprep.subr.mxu0 %v375
    %732 = vmatpush1.msra.mxu0 %v374
    %733 = vmatprep.subr.mxu0 %v377
    %734 = vmatpush1.msra.mxu0 %v376
    %735 = vmatprep.subr.mxu0 %v379
    %736 = vmatpush1.msra.mxu0 %v378
    %737 = vmatprep.subr.mxu0 %v381
    %738 = vmatpush1.msra.mxu0 %v380
    %739 = vmatprep.subr.mxu0 %v383
    %740 = vmatpush1.msra.mxu0 %v382
    %741 = vmatprep.subr.mxu0 0.0
    %742 = vmatpush1.msra.mxu0 0.0
    %743 = vmatprep.subr.mxu0 0.0
    %744 = vmatpush1.msra.mxu0 0.0
    %745 = vmatprep.subr.mxu0 0.0
    %746 = vmatpush1.msra.mxu0 0.0
    %747 = vmatprep.subr.mxu0 0.0
    %748 = vmatpush1.msra.mxu0 0.0
    %749 = vmatprep.subr.mxu0 0.0
    %750 = vmatpush1.msra.mxu0 0.0
    %751 = vmatprep.subr.mxu0 0.0
    %752 = vmatpush1.msra.mxu0 0.0
    %753 = vmatprep.subr.mxu0 0.0
    %754 = vmatpush1.msra.mxu0 0.0
    %755 = vmatprep.subr.mxu0 0.0
    %756 = vmatpush1.msra.mxu0 0.0
    %757 = vmatprep.subr.mxu0 0.0
    %758 = vmatpush1.msra.mxu0 0.0
    %759 = vmatprep.subr.mxu0 0.0
    %760 = vmatpush1.msra.mxu0 0.0
    %761 = vmatprep.subr.mxu0 0.0
    %762 = vmatpush1.msra.mxu0 0.0
    %763 = vmatprep.subr.mxu0 0.0
    %764 = vmatpush1.msra.mxu0 0.0
    %765 = vmatprep.subr.mxu0 0.0
    %766 = vmatpush1.msra.mxu0 0.0
    %767 = vmatprep.subr.mxu0 0.0
    %768 = vmatpush1.msra.mxu0 0.0
    %769 = vmatprep.subr.mxu0 0.0
    %770 = vmatpush1.msra.mxu0 0.0
    %771 = vmatprep.subr.mxu0 0.0
    %772 = vmatpush1.msra.mxu0 0.0
    %773 = vmatprep.subr.mxu0 0.0
    %774 = vmatpush1.msra.mxu0 0.0
    %775 = vmatprep.subr.mxu0 0.0
    %776 = vmatpush1.msra.mxu0 0.0
    %777 = vmatprep.subr.mxu0 0.0
    %778 = vmatpush1.msra.mxu0 0.0
    %779 = vmatprep.subr.mxu0 0.0
    %780 = vmatpush1.msra.mxu0 0.0
    %781 = vmatprep.subr.mxu0 0.0
    %782 = vmatpush1.msra.mxu0 0.0
    %783 = vmatprep.subr.mxu0 0.0
    %784 = vmatpush1.msra.mxu0 0.0
    %785 = vmatprep.subr.mxu0 0.0
    %786 = vmatpush1.msra.mxu0 0.0
    %787 = vmatprep.subr.mxu0 0.0
    %788 = vmatpush1.msra.mxu0 0.0
    %789 = vmatprep.mubr.f32.mxu0 0.0
    %790 = vmatmul.mubr.f32.gmra.mrb[0].mxu0 %v723
    %v791 = vpop.f32.mrb[0].mxu0
    %v792 = vadd.f32 0.0, %v791
    %v793 = vpop.f32.mrb[0].mxu0
    %v794 = vadd.f32 0.0, %v793
    %795 = vdwg.mxu0
    %v798 = vrot.slane %v792, 2
    %v799 = vrot.slane %v794, 2
    %v802 = vadd.f32 %v358, %v798
    %v803 = vadd.f32 %v360, %v799
    %v804 = vxor.u32 %v802, 2147483648
    %v805 = vxor.u32 %v803, 2147483648
    %v806 = vmul.f32 %v804, 1.442695
    %v807 = vpow.pop %v806
    %v808 = vmul.f32 %v805, 1.442695
    %v809 = vpow.pop %v808
    %v810 = vadd.f32 %v807, 1.0
    %v811 = vadd.f32 %v809, 1.0
    %v812 = vrcp.pop %v810
    %v813 = vmul.f32 1.0, %v812
    %v814 = vrcp.pop %v811
    %v815 = vmul.f32 1.0, %v814
    %v816 = vtanh.pop %v803
    %v818 = vrot.slane %v714, 6
    %v820 = vmul.f32 %v813, %v818
    %822 = vrot.lane.b32.xlu0 %v816, 64
    %v823 = vpop.permute.xlu0 %822
    %v825 = vmul.f32 %v813, %v823
    %827 = vrot.lane.b32.xlu0 %v825, 64
    %v828 = vpop.permute.xlu0 %827
    %v830 = vadd.f32 %v820, %v828
    %v831 = vtanh.pop %v830
    %833 = vrot.lane.b32.xlu0 %v831, 64
    %v834 = vpop.permute.xlu0 %833
    %v836 = vmul.f32 %v815, %v834
    %v838 = vrot.slane %v836, 6
    %v839 = vsel %vm284, %v838, 0
    %841 = vmatprep.subr.mxu0 %v369
    %842 = vmatpush1.msra.mxu0 %v368
    %843 = vmatprep.subr.mxu0 %v371
    %844 = vmatpush1.msra.mxu0 %v370
    %845 = vmatprep.subr.mxu0 %v373
    %846 = vmatpush1.msra.mxu0 %v372
    %847 = vmatprep.subr.mxu0 %v375
    %848 = vmatpush1.msra.mxu0 %v374
    %849 = vmatprep.subr.mxu0 %v377
    %850 = vmatpush1.msra.mxu0 %v376
    %851 = vmatprep.subr.mxu0 %v379
    %852 = vmatpush1.msra.mxu0 %v378
    %853 = vmatprep.subr.mxu0 %v381
    %854 = vmatpush1.msra.mxu0 %v380
    %855 = vmatprep.subr.mxu0 %v383
    %856 = vmatpush1.msra.mxu0 %v382
    %857 = vmatprep.subr.mxu0 0.0
    %858 = vmatpush1.msra.mxu0 0.0
    %859 = vmatprep.subr.mxu0 0.0
    %860 = vmatpush1.msra.mxu0 0.0
    %861 = vmatprep.subr.mxu0 0.0
    %862 = vmatpush1.msra.mxu0 0.0
    %863 = vmatprep.subr.mxu0 0.0
    %864 = vmatpush1.msra.mxu0 0.0
    %865 = vmatprep.subr.mxu0 0.0
    %866 = vmatpush1.msra.mxu0 0.0
    %867 = vmatprep.subr.mxu0 0.0
    %868 = vmatpush1.msra.mxu0 0.0
    %869 = vmatprep.subr.mxu0 0.0
    %870 = vmatpush1.msra.mxu0 0.0
    %871 = vmatprep.subr.mxu0 0.0
    %872 = vmatpush1.msra.mxu0 0.0
    %873 = vmatprep.subr.mxu0 0.0
    %874 = vmatpush1.msra.mxu0 0.0
    %875 = vmatprep.subr.mxu0 0.0
    %876 = vmatpush1.msra.mxu0 0.0
    %877 = vmatprep.subr.mxu0 0.0
    %878 = vmatpush1.msra.mxu0 0.0
    %879 = vmatprep.subr.mxu0 0.0
    %880 = vmatpush1.msra.mxu0 0.0
    %881 = vmatprep.subr.mxu0 0.0
    %882 = vmatpush1.msra.mxu0 0.0
    %883 = vmatprep.subr.mxu0 0.0
    %884 = vmatpush1.msra.mxu0 0.0
    %885 = vmatprep.subr.mxu0 0.0
    %886 = vmatpush1.msra.mxu0 0.0
    %887 = vmatprep.subr.mxu0 0.0
    %888 = vmatpush1.msra.mxu0 0.0
    %889 = vmatprep.subr.mxu0 0.0
    %890 = vmatpush1.msra.mxu0 0.0
    %891 = vmatprep.subr.mxu0 0.0
    %892 = vmatpush1.msra.mxu0 0.0
    %893 = vmatprep.subr.mxu0 0.0
    %894 = vmatpush1.msra.mxu0 0.0
    %895 = vmatprep.subr.mxu0 0.0
    %896 = vmatpush1.msra.mxu0 0.0
    %897 = vmatprep.subr.mxu0 0.0
    %898 = vmatpush1.msra.mxu0 0.0
    %899 = vmatprep.subr.mxu0 0.0
    %900 = vmatpush1.msra.mxu0 0.0
    %901 = vmatprep.subr.mxu0 0.0
    %902 = vmatpush1.msra.mxu0 0.0
    %903 = vmatprep.subr.mxu0 0.0
    %904 = vmatpush1.msra.mxu0 0.0
    %905 = vmatprep.mubr.f32.mxu0 0.0
    %906 = vmatmul.mubr.f32.gmra.mrb[0].mxu0 %v839
    %v907 = vpop.f32.mrb[0].mxu0
    %v908 = vadd.f32 0.0, %v907
    %v909 = vpop.f32.mrb[0].mxu0
    %v910 = vadd.f32 0.0, %v909
    %911 = vdwg.mxu0
    %v912 = vadd.f32 %v364, %v908
    %v913 = vadd.f32 %v366, %v910
    %v914 = vxor.u32 %v912, 2147483648
    %v915 = vxor.u32 %v913, 2147483648
    %v916 = vmul.f32 %v914, 1.442695
    %v917 = vpow.pop %v916
    %v918 = vmul.f32 %v915, 1.442695
    %v919 = vpow.pop %v918
    %v920 = vadd.f32 %v917, 1.0
    %v921 = vadd.f32 %v919, 1.0
    %v922 = vrcp.pop %v920
    %v923 = vmul.f32 1.0, %v922
    %v924 = vrcp.pop %v921
    %v925 = vmul.f32 1.0, %v924
    %v926 = vtanh.pop %v913
    %v928 = vrot.slane %v830, 6
    %v930 = vmul.f32 %v923, %v928
    %932 = vrot.lane.b32.xlu0 %v926, 64
    %v933 = vpop.permute.xlu0 %932
    %v935 = vmul.f32 %v923, %v933
    %937 = vrot.lane.b32.xlu0 %v935, 64
    %v938 = vpop.permute.xlu0 %937
    %v940 = vadd.f32 %v930, %v938
    %v941 = vtanh.pop %v940
    %943 = vrot.lane.b32.xlu0 %v941, 64
    %v944 = vpop.permute.xlu0 %943
    %v946 = vmul.f32 %v925, %v944
    %v948 = vsel %vm284, %v946, 0
    %950 = vmatprep.subr.mxu0 %v369
    %951 = vmatpush1.msra.mxu0 %v368
    %952 = vmatprep.subr.mxu0 %v371
    %953 = vmatpush1.msra.mxu0 %v370
    %954 = vmatprep.subr.mxu0 %v373
    %955 = vmatpush1.msra.mxu0 %v372
    %956 = vmatprep.subr.mxu0 %v375
    %957 = vmatpush1.msra.mxu0 %v374
    %958 = vmatprep.subr.mxu0 %v377
    %959 = vmatpush1.msra.mxu0 %v376
    %960 = vmatprep.subr.mxu0 %v379
    %961 = vmatpush1.msra.mxu0 %v378
    %962 = vmatprep.subr.mxu0 %v381
    %963 = vmatpush1.msra.mxu0 %v380
    %964 = vmatprep.subr.mxu0 %v383
    %965 = vmatpush1.msra.mxu0 %v382
    %966 = vmatprep.subr.mxu0 0.0
    %967 = vmatpush1.msra.mxu0 0.0
    %968 = vmatprep.subr.mxu0 0.0
    %969 = vmatpush1.msra.mxu0 0.0
    %970 = vmatprep.subr.mxu0 0.0
    %971 = vmatpush1.msra.mxu0 0.0
    %972 = vmatprep.subr.mxu0 0.0
    %973 = vmatpush1.msra.mxu0 0.0
    %974 = vmatprep.subr.mxu0 0.0
    %975 = vmatpush1.msra.mxu0 0.0
    %976 = vmatprep.subr.mxu0 0.0
    %977 = vmatpush1.msra.mxu0 0.0
    %978 = vmatprep.subr.mxu0 0.0
    %979 = vmatpush1.msra.mxu0 0.0
    %980 = vmatprep.subr.mxu0 0.0
    %981 = vmatpush1.msra.mxu0 0.0
    %982 = vmatprep.subr.mxu0 0.0
    %983 = vmatpush1.msra.mxu0 0.0
    %984 = vmatprep.subr.mxu0 0.0
    %985 = vmatpush1.msra.mxu0 0.0
    %986 = vmatprep.subr.mxu0 0.0
    %987 = vmatpush1.msra.mxu0 0.0
    %988 = vmatprep.subr.mxu0 0.0
    %989 = vmatpush1.msra.mxu0 0.0
    %990 = vmatprep.subr.mxu0 0.0
    %991 = vmatpush1.msra.mxu0 0.0
    %992 = vmatprep.subr.mxu0 0.0
    %993 = vmatpush1.msra.mxu0 0.0
    %994 = vmatprep.subr.mxu0 0.0
    %995 = vmatpush1.msra.mxu0 0.0
    %996 = vmatprep.subr.mxu0 0.0
    %997 = vmatpush1.msra.mxu0 0.0
    %998 = vmatprep.subr.mxu0 0.0
    %999 = vmatpush1.msra.mxu0 0.0
    %1000 = vmatprep.subr.mxu0 0.0
    %1001 = vmatpush1.msra.mxu0 0.0
    %1002 = vmatprep.subr.mxu0 0.0
    %1003 = vmatpush1.msra.mxu0 0.0
    %1004 = vmatprep.subr.mxu0 0.0
    %1005 = vmatpush1.msra.mxu0 0.0
    %1006 = vmatprep.subr.mxu0 0.0
    %1007 = vmatpush1.msra.mxu0 0.0
    %1008 = vmatprep.subr.mxu0 0.0
    %1009 = vmatpush1.msra.mxu0 0.0
    %1010 = vmatprep.subr.mxu0 0.0
    %1011 = vmatpush1.msra.mxu0 0.0
    %1012 = vmatprep.subr.mxu0 0.0
    %1013 = vmatpush1.msra.mxu0 0.0
    %1014 = vmatprep.mubr.f32.mxu0 0.0
    %1015 = vmatmul.mubr.f32.gmra.mrb[0].mxu0 %v948
    %v1016 = vpop.f32.mrb[0].mxu0
    %v1017 = vadd.f32 0.0, %v1016
    %v1018 = vpop.f32.mrb[0].mxu0
    %v1019 = vadd.f32 0.0, %v1018
    %1020 = vdwg.mxu0
    %v1023 = vrot.slane %v1017, 6
    %v1024 = vrot.slane %v1019, 6
    %v1027 = vadd.f32 %v364, %v1023
    %v1028 = vadd.f32 %v366, %v1024
    %v1029 = vxor.u32 %v1027, 2147483648
    %v1030 = vxor.u32 %v1028, 2147483648
    %v1031 = vmul.f32 %v1029, 1.442695
    %v1032 = vpow.pop %v1031
    %v1033 = vmul.f32 %v1030, 1.442695
    %v1034 = vpow.pop %v1033
    %v1035 = vadd.f32 %v1032, 1.0
    %v1036 = vadd.f32 %v1034, 1.0
    %v1037 = vrcp.pop %v1035
    %v1038 = vmul.f32 1.0, %v1037
    %v1039 = vrcp.pop %v1036
    %v1040 = vmul.f32 1.0, %v1039
    %v1041 = vtanh.pop %v1028
    %v1043 = vrot.slane %v940, 6
    %v1045 = vmul.f32 %v1038, %v1043
    %1047 = vrot.lane.b32.xlu0 %v1041, 64
    %v1048 = vpop.permute.xlu0 %1047
    %v1050 = vmul.f32 %v1038, %v1048
    %1052 = vrot.lane.b32.xlu0 %v1050, 64
    %v1053 = vpop.permute.xlu0 %1052
    %v1055 = vadd.f32 %v1045, %v1053
    %v1056 = vtanh.pop %v1055
    %1058 = vrot.lane.b32.xlu0 %v1056, 64
    %v1059 = vpop.permute.xlu0 %1058
    %v1061 = vmul.f32 %v1040, %v1059
    %v1063 = vrot.slane %v1061, 2
    %v1064 = vsel %vm284, %v1063, 0
    %1066 = vmatprep.subr.mxu0 %v369
    %1067 = vmatpush1.msra.mxu0 %v368
    %1068 = vmatprep.subr.mxu0 %v371
    %1069 = vmatpush1.msra.mxu0 %v370
    %1070 = vmatprep.subr.mxu0 %v373
    %1071 = vmatpush1.msra.mxu0 %v372
    %1072 = vmatprep.subr.mxu0 %v375
    %1073 = vmatpush1.msra.mxu0 %v374
    %1074 = vmatprep.subr.mxu0 %v377
    %1075 = vmatpush1.msra.mxu0 %v376
    %1076 = vmatprep.subr.mxu0 %v379
    %1077 = vmatpush1.msra.mxu0 %v378
    %1078 = vmatprep.subr.mxu0 %v381
    %1079 = vmatpush1.msra.mxu0 %v380
    %1080 = vmatprep.subr.mxu0 %v383
    %1081 = vmatpush1.msra.mxu0 %v382
    %1082 = vmatprep.subr.mxu0 0.0
    %1083 = vmatpush1.msra.mxu0 0.0
    %1084 = vmatprep.subr.mxu0 0.0
    %1085 = vmatpush1.msra.mxu0 0.0
    %1086 = vmatprep.subr.mxu0 0.0
    %1087 = vmatpush1.msra.mxu0 0.0
    %1088 = vmatprep.subr.mxu0 0.0
    %1089 = vmatpush1.msra.mxu0 0.0
    %1090 = vmatprep.subr.mxu0 0.0
    %1091 = vmatpush1.msra.mxu0 0.0
    %1092 = vmatprep.subr.mxu0 0.0
    %1093 = vmatpush1.msra.mxu0 0.0
    %1094 = vmatprep.subr.mxu0 0.0
    %1095 = vmatpush1.msra.mxu0 0.0
    %1096 = vmatprep.subr.mxu0 0.0
    %1097 = vmatpush1.msra.mxu0 0.0
    %1098 = vmatprep.subr.mxu0 0.0
    %1099 = vmatpush1.msra.mxu0 0.0
    %1100 = vmatprep.subr.mxu0 0.0
    %1101 = vmatpush1.msra.mxu0 0.0
    %1102 = vmatprep.subr.mxu0 0.0
    %1103 = vmatpush1.msra.mxu0 0.0
    %1104 = vmatprep.subr.mxu0 0.0
    %1105 = vmatpush1.msra.mxu0 0.0
    %1106 = vmatprep.subr.mxu0 0.0
    %1107 = vmatpush1.msra.mxu0 0.0
    %1108 = vmatprep.subr.mxu0 0.0
    %1109 = vmatpush1.msra.mxu0 0.0
    %1110 = vmatprep.subr.mxu0 0.0
    %1111 = vmatpush1.msra.mxu0 0.0
    %1112 = vmatprep.subr.mxu0 0.0
    %1113 = vmatpush1.msra.mxu0 0.0
    %1114 = vmatprep.subr.mxu0 0.0
    %1115 = vmatpush1.msra.mxu0 0.0
    %1116 = vmatprep.subr.mxu0 0.0
    %1117 = vmatpush1.msra.mxu0 0.0
    %1118 = vmatprep.subr.mxu0 0.0
    %1119 = vmatpush1.msra.mxu0 0.0
    %1120 = vmatprep.subr.mxu0 0.0
    %1121 = vmatpush1.msra.mxu0 0.0
    %1122 = vmatprep.subr.mxu0 0.0
    %1123 = vmatpush1.msra.mxu0 0.0
    %1124 = vmatprep.subr.mxu0 0.0
    %1125 = vmatpush1.msra.mxu0 0.0
    %1126 = vmatprep.subr.mxu0 0.0
    %1127 = vmatpush1.msra.mxu0 0.0
    %1128 = vmatprep.subr.mxu0 0.0
    %1129 = vmatpush1.msra.mxu0 0.0
    %1130 = vmatprep.mubr.f32.mxu0 0.0
    %1131 = vmatmul.mubr.f32.gmra.mrb[0].mxu0 %v1064
    %v1132 = vpop.f32.mrb[0].mxu0
    %v1133 = vadd.f32 0.0, %v1132
    %v1134 = vpop.f32.mrb[0].mxu0
    %v1135 = vadd.f32 0.0, %v1134
    %1136 = vdwg.mxu0
    %v1139 = vrot.slane %v1133, 4
    %v1140 = vrot.slane %v1135, 4
    %v1143 = vadd.f32 %v364, %v1139
    %v1144 = vadd.f32 %v366, %v1140
    %v1145 = vxor.u32 %v1143, 2147483648
    %v1146 = vxor.u32 %v1144, 2147483648
    %v1147 = vmul.f32 %v1145, 1.442695
    %v1148 = vpow.pop %v1147
    %v1149 = vmul.f32 %v1146, 1.442695
    %v1150 = vpow.pop %v1149
    %v1151 = vadd.f32 %v1148, 1.0
    %v1152 = vadd.f32 %v1150, 1.0
    %v1153 = vrcp.pop %v1151
    %v1154 = vmul.f32 1.0, %v1153
    %v1155 = vrcp.pop %v1152
    %v1156 = vmul.f32 1.0, %v1155
    %v1157 = vtanh.pop %v1144
    %v1159 = vrot.slane %v1055, 6
    %v1161 = vmul.f32 %v1154, %v1159
    %1163 = vrot.lane.b32.xlu0 %v1157, 64
    %v1164 = vpop.permute.xlu0 %1163
    %v1166 = vmul.f32 %v1154, %v1164
    %1168 = vrot.lane.b32.xlu0 %v1166, 64
    %v1169 = vpop.permute.xlu0 %1168
    %v1171 = vadd.f32 %v1161, %v1169
    %v1172 = vtanh.pop %v1171
    %1174 = vrot.lane.b32.xlu0 %v1172, 64
    %v1175 = vpop.permute.xlu0 %1174
    %v1177 = vmul.f32 %v1156, %v1175
    %v1179 = vrot.slane %v1177, 4
    %v1180 = vsel %vm284, %v1179, 0
    %1182 = vmatprep.subr.mxu0 %v369
    %1183 = vmatpush1.msra.mxu0 %v368
    %1184 = vmatprep.subr.mxu0 %v371
    %1185 = vmatpush1.msra.mxu0 %v370
    %1186 = vmatprep.subr.mxu0 %v373
    %1187 = vmatpush1.msra.mxu0 %v372
    %1188 = vmatprep.subr.mxu0 %v375
    %1189 = vmatpush1.msra.mxu0 %v374
    %1190 = vmatprep.subr.mxu0 %v377
    %1191 = vmatpush1.msra.mxu0 %v376
    %1192 = vmatprep.subr.mxu0 %v379
    %1193 = vmatpush1.msra.mxu0 %v378
    %1194 = vmatprep.subr.mxu0 %v381
    %1195 = vmatpush1.msra.mxu0 %v380
    %1196 = vmatprep.subr.mxu0 %v383
    %1197 = vmatpush1.msra.mxu0 %v382
    %1198 = vmatprep.subr.mxu0 0.0
    %1199 = vmatpush1.msra.mxu0 0.0
    %1200 = vmatprep.subr.mxu0 0.0
    %1201 = vmatpush1.msra.mxu0 0.0
    %1202 = vmatprep.subr.mxu0 0.0
    %1203 = vmatpush1.msra.mxu0 0.0
    %1204 = vmatprep.subr.mxu0 0.0
    %1205 = vmatpush1.msra.mxu0 0.0
    %1206 = vmatprep.subr.mxu0 0.0
    %1207 = vmatpush1.msra.mxu0 0.0
    %1208 = vmatprep.subr.mxu0 0.0
    %1209 = vmatpush1.msra.mxu0 0.0
    %1210 = vmatprep.subr.mxu0 0.0
    %1211 = vmatpush1.msra.mxu0 0.0
    %1212 = vmatprep.subr.mxu0 0.0
    %1213 = vmatpush1.msra.mxu0 0.0
    %1214 = vmatprep.subr.mxu0 0.0
    %1215 = vmatpush1.msra.mxu0 0.0
    %1216 = vmatprep.subr.mxu0 0.0
    %1217 = vmatpush1.msra.mxu0 0.0
    %1218 = vmatprep.subr.mxu0 0.0
    %1219 = vmatpush1.msra.mxu0 0.0
    %1220 = vmatprep.subr.mxu0 0.0
    %1221 = vmatpush1.msra.mxu0 0.0
    %1222 = vmatprep.subr.mxu0 0.0
    %1223 = vmatpush1.msra.mxu0 0.0
    %1224 = vmatprep.subr.mxu0 0.0
    %1225 = vmatpush1.msra.mxu0 0.0
    %1226 = vmatprep.subr.mxu0 0.0
    %1227 = vmatpush1.msra.mxu0 0.0
    %1228 = vmatprep.subr.mxu0 0.0
    %1229 = vmatpush1.msra.mxu0 0.0
    %1230 = vmatprep.subr.mxu0 0.0
    %1231 = vmatpush1.msra.mxu0 0.0
    %1232 = vmatprep.subr.mxu0 0.0
    %1233 = vmatpush1.msra.mxu0 0.0
    %1234 = vmatprep.subr.mxu0 0.0
    %1235 = vmatpush1.msra.mxu0 0.0
    %1236 = vmatprep.subr.mxu0 0.0
    %1237 = vmatpush1.msra.mxu0 0.0
    %1238 = vmatprep.subr.mxu0 0.0
    %1239 = vmatpush1.msra.mxu0 0.0
    %1240 = vmatprep.subr.mxu0 0.0
    %1241 = vmatpush1.msra.mxu0 0.0
    %1242 = vmatprep.subr.mxu0 0.0
    %1243 = vmatpush1.msra.mxu0 0.0
    %1244 = vmatprep.subr.mxu0 0.0
    %1245 = vmatpush1.msra.mxu0 0.0
    %1246 = vmatprep.mubr.f32.mxu0 0.0
    %1247 = vmatmul.mubr.f32.gmra.mrb[0].mxu0 %v1180
    %v1248 = vpop.f32.mrb[0].mxu0
    %v1249 = vadd.f32 0.0, %v1248
    %v1250 = vpop.f32.mrb[0].mxu0
    %v1251 = vadd.f32 0.0, %v1250
    %1252 = vdwg.mxu0
    %v1255 = vrot.slane %v1249, 2
    %v1256 = vrot.slane %v1251, 2
    %v1259 = vadd.f32 %v364, %v1255
    %v1260 = vadd.f32 %v366, %v1256
    %v1261 = vxor.u32 %v1259, 2147483648
    %v1262 = vxor.u32 %v1260, 2147483648
    %v1263 = vmul.f32 %v1261, 1.442695
    %v1264 = vpow.pop %v1263
    %v1265 = vmul.f32 %v1262, 1.442695
    %v1266 = vpow.pop %v1265
    %v1267 = vadd.f32 %v1264, 1.0
    %v1268 = vadd.f32 %v1266, 1.0
    %v1269 = vrcp.pop %v1267
    %v1270 = vmul.f32 1.0, %v1269
    %v1271 = vrcp.pop %v1268
    %v1272 = vmul.f32 1.0, %v1271
    %v1273 = vtanh.pop %v1260
    %v1275 = vrot.slane %v1171, 6
    %v1277 = vmul.f32 %v1270, %v1275
    %1279 = vrot.lane.b32.xlu0 %v1273, 64
    %v1280 = vpop.permute.xlu0 %1279
    %v1282 = vmul.f32 %v1270, %v1280
    %1284 = vrot.lane.b32.xlu0 %v1282, 64
    %v1285 = vpop.permute.xlu0 %1284
    %v1287 = vadd.f32 %v1277, %v1285
    %v1288 = vtanh.pop %v1287
    %1290 = vrot.lane.b32.xlu0 %v1288, 64
    %v1291 = vpop.permute.xlu0 %1290
    %v1293 = vmul.f32 %v1272, %v1291
    %vm1294 = vcmask 1041408
    %v1295 = vsel %vm1294, %v489, %v604
    %v1296 = vsel %vm83, %v1295, %v720
    %vm1297 = vcmask 1045504
    %v1298 = vsel %vm1297, %v1296, %v836
    %v1299 = vsel %vm1294, %v946, %v1061
    %v1300 = vsel %vm83, %v1299, %v1177
    %v1301 = vsel %vm1297, %v1300, %v1293
    %v1303 = vrot.slane %v1293, 6
    %v1305 = vrot.slane %v1177, 2
    %v1307 = vrot.slane %v1061, 6
    %v1309 = vrot.slane %v946, 2
    %v1312 = vrot.slane %v720, 2
    %v1314 = vrot.slane %v604, 6
    %v1316 = vrot.slane %v489, 2
    %v1318 = vsel %vm1294, %v1303, %v1305
    %v1319 = vsel %vm83, %v1318, %v1307
    %v1320 = vsel %vm1297, %v1319, %v1309
    %v1321 = vsel %vm1294, %v838, %v1312
    %v1322 = vsel %vm83, %v1321, %v1314
    %v1323 = vsel %vm1297, %v1322, %v1316
    %v1324 = vsel %vm252, %v1298, %v1320
    %v1325 = vsel %vm252, %v1301, %v1323
    %1326 = vmatprep.subr.mxu0 0.0
    %1327 = vmatpush1.msra.mxu0 %v1324
    %1328 = vmatprep.subr.mxu0 0.0
    %1329 = vmatpush1.msra.mxu0 %v1325
    %1330 = vmatprep.subr.mxu0 0.0
    %1331 = vmatpush1.msra.mxu0 0.0
    %1332 = vmatprep.subr.mxu0 0.0
    %1333 = vmatpush1.msra.mxu0 0.0
    %1334 = vmatprep.subr.mxu0 0.0
    %1335 = vmatpush1.msra.mxu0 0.0
    %1336 = vmatprep.subr.mxu0 0.0
    %1337 = vmatpush1.msra.mxu0 0.0
    %1338 = vmatprep.subr.mxu0 0.0
    %1339 = vmatpush1.msra.mxu0 0.0
    %1340 = vmatprep.subr.mxu0 0.0
    %1341 = vmatpush1.msra.mxu0 0.0
    %1342 = vmatprep.subr.mxu0 0.0
    %1343 = vmatpush1.msra.mxu0 0.0
    %1344 = vmatprep.subr.mxu0 0.0
    %1345 = vmatpush1.msra.mxu0 0.0
    %1346 = vmatprep.subr.mxu0 0.0
    %1347 = vmatpush1.msra.mxu0 0.0
    %1348 = vmatprep.subr.mxu0 0.0
    %1349 = vmatpush1.msra.mxu0 0.0
    %1350 = vmatprep.subr.mxu0 0.0
    %1351 = vmatpush1.msra.mxu0 0.0
    %1352 = vmatprep.subr.mxu0 0.0
    %1353 = vmatpush1.msra.mxu0 0.0
    %1354 = vmatprep.subr.mxu0 0.0
    %1355 = vmatpush1.msra.mxu0 0.0
    %1356 = vmatprep.subr.mxu0 0.0
    %1357 = vmatpush1.msra.mxu0 0.0
    %1358 = vmatprep.subr.mxu0 0.0
    %1359 = vmatpush1.msra.mxu0 0.0
    %1360 = vmatprep.subr.mxu0 0.0
    %1361 = vmatpush1.msra.mxu0 0.0
    %1362 = vmatprep.subr.mxu0 0.0
    %1363 = vmatpush1.msra.mxu0 0.0
    %1364 = vmatprep.subr.mxu0 0.0
    %1365 = vmatpush1.msra.mxu0 0.0
    %1366 = vmatprep.subr.mxu0 0.0
    %1367 = vmatpush1.msra.mxu0 0.0
    %1368 = vmatprep.subr.mxu0 0.0
    %1369 = vmatpush1.msra.mxu0 0.0
    %1370 = vmatprep.subr.mxu0 0.0
    %1371 = vmatpush1.msra.mxu0 0.0
    %1372 = vmatprep.subr.mxu0 0.0
    %1373 = vmatpush1.msra.mxu0 0.0
    %1374 = vmatprep.subr.mxu0 0.0
    %1375 = vmatpush1.msra.mxu0 0.0
    %1376 = vmatprep.subr.mxu0 0.0
    %1377 = vmatpush1.msra.mxu0 0.0
    %1378 = vmatprep.subr.mxu0 0.0
    %1379 = vmatpush1.msra.mxu0 0.0
    %1380 = vmatprep.subr.mxu0 0.0
    %1381 = vmatpush1.msra.mxu0 0.0
    %1382 = vmatprep.subr.mxu0 0.0
    %1383 = vmatpush1.msra.mxu0 0.0
    %1384 = vmatprep.subr.mxu0 0.0
    %1385 = vmatpush1.msra.mxu0 0.0
    %1386 = vmatprep.subr.mxu0 0.0
    %1387 = vmatpush1.msra.mxu0 0.0
    %1388 = vmatprep.subr.mxu0 0.0
    %1389 = vmatpush1.msra.mxu0 0.0
    %1390 = vmatprep.mubr.f32.mxu0 0.0
    %1391 = vmatmul.mubr.f32.gmra.mrb[0].mxu0 %v164
    %v1392 = vpop.f32.mrb[0].mxu0
    %v1393 = vadd.f32 0.0, %v1392
    %v1394 = vpop.f32.mrb[0].mxu0
    %1395 = vmatprep.mubr.f32.mxu0 0.0
    %1396 = vmatmul.mubr.f32.gmra.mrb[0].mxu0 %v167
    %v1397 = vpop.f32.mrb[0].mxu0
    %v1398 = vadd.f32 0.0, %v1397
    %v1399 = vpop.f32.mrb[0].mxu0
    %1400 = vdwg.mxu0
    %1403 = vrot.lane.b32.xlu0 %v1393, 64
    %v1404 = vpop.permute.xlu0 %1403
    %1405 = vrot.lane.b32.xlu0 %v1398, 64
    %v1406 = vpop.permute.xlu0 %1405
    %v1409 = vsel %vm284, %v1324, %v1404
    %v1410 = vsel %vm284, %v1325, %v1406
    %v1411 = vld [vmem:[#allocation2 + $0x110] sm:$0xff]
    %v1412 = vld [vmem:[#allocation2 + $0x118] sm:$0xff]
    %v1413 = vld [vmem:[#allocation2 + $0x120] sm:$0xff]
    %v1414 = vld [vmem:[#allocation2 + $0x128] sm:$0xff]
    %v1415 = vld [vmem:[#allocation2 + $0x130] sm:$0xff]
    %v1416 = vld [vmem:[#allocation2 + $0x138] sm:$0xff]
    %v1417 = vld [vmem:[#allocation2 + $0x140] sm:$0xff]
    %v1418 = vld [vmem:[#allocation2 + $0x148] sm:$0xff]
    %v1419 = vld [vmem:[#allocation2 + $0x150] sm:$0xff]
    %v1420 = vld [vmem:[#allocation2 + $0x158] sm:$0xff]
    %v1421 = vld [vmem:[#allocation2 + $0x160] sm:$0xff]
    %v1422 = vld [vmem:[#allocation2 + $0x168] sm:$0xff]
    %v1423 = vld [vmem:[#allocation2 + $0x170] sm:$0xff]
    %v1424 = vld [vmem:[#allocation2 + $0x178] sm:$0xff]
    %v1425 = vld [vmem:[#allocation2 + $0x180] sm:$0xff]
    %v1426 = vld [vmem:[#allocation2 + $0x188] sm:$0xff]
    %v1427 = vld [vmem:[#allocation2 + $0x190] sm:$0xff]
    %v1428 = vld [vmem:[#allocation2 + $0x198] sm:$0xff]
    %v1429 = vld [vmem:[#allocation2 + $0x1a0] sm:$0xff]
    %v1430 = vld [vmem:[#allocation2 + $0x1a8] sm:$0xff]
    %v1431 = vld [vmem:[#allocation2 + $0x1b0] sm:$0xff]
    %v1432 = vld [vmem:[#allocation2 + $0x1b8] sm:$0xff]
    %v1433 = vld [vmem:[#allocation2 + $0x1c0] sm:$0xff]
    %v1434 = vld [vmem:[#allocation2 + $0x1c8] sm:$0xff]
    %v1435 = vld [vmem:[#allocation2 + $0x1d0] sm:$0xff]
    %v1436 = vld [vmem:[#allocation2 + $0x1d8] sm:$0xff]
    %v1437 = vld [vmem:[#allocation2 + $0x1e0] sm:$0xff]
    %v1438 = vld [vmem:[#allocation2 + $0x1e8] sm:$0xff]
    %v1439 = vld [vmem:[#allocation2 + $0x1f0] sm:$0xff]
    %v1440 = vld [vmem:[#allocation2 + $0x1f8] sm:$0xff]
    %v1441 = vld [vmem:[#allocation2 + $0x200] sm:$0xff]
    %v1442 = vld [vmem:[#allocation2 + $0x208] sm:$0xff]
    %s1443 = scalar_lea.vmem [#allocation5], 2
    %v1444 = vld [vmem:[%s1443] ss:$8 sm:$0x3]
    %v1446 = vlaneseq
    %v1447 = vshrl.u32 %v1446, 7
    %v1448 = vsub.s32 0, %v1447
    %v1449 = vrot.slane %v1444, %v1448
    %v1450 = vlaneseq
    %v1451 = vshrl.u32 %v1450, 7
    %v1452 = vsub.s32 1, %v1451
    %v1453 = vrot.slane %v1444, %v1452
    %1456 = vmatprep.subr.mxu0 %v1412
    %1457 = vmatpush1.msra.mxu0 %v1411
    %1458 = vmatprep.subr.mxu0 %v1414
    %1459 = vmatpush1.msra.mxu0 %v1413
    %1460 = vmatprep.subr.mxu0 %v1416
    %1461 = vmatpush1.msra.mxu0 %v1415
    %1462 = vmatprep.subr.mxu0 %v1418
    %1463 = vmatpush1.msra.mxu0 %v1417
    %1464 = vmatprep.subr.mxu0 %v1420
    %1465 = vmatpush1.msra.mxu0 %v1419
    %1466 = vmatprep.subr.mxu0 %v1422
    %1467 = vmatpush1.msra.mxu0 %v1421
    %1468 = vmatprep.subr.mxu0 %v1424
    %1469 = vmatpush1.msra.mxu0 %v1423
    %1470 = vmatprep.subr.mxu0 %v1426
    %1471 = vmatpush1.msra.mxu0 %v1425
    %1472 = vmatprep.subr.mxu0 %v1428
    %1473 = vmatpush1.msra.mxu0 %v1427
    %1474 = vmatprep.subr.mxu0 %v1430
    %1475 = vmatpush1.msra.mxu0 %v1429
    %1476 = vmatprep.subr.mxu0 %v1432
    %1477 = vmatpush1.msra.mxu0 %v1431
    %1478 = vmatprep.subr.mxu0 %v1434
    %1479 = vmatpush1.msra.mxu0 %v1433
    %1480 = vmatprep.subr.mxu0 %v1436
    %1481 = vmatpush1.msra.mxu0 %v1435
    %1482 = vmatprep.subr.mxu0 %v1438
    %1483 = vmatpush1.msra.mxu0 %v1437
    %1484 = vmatprep.subr.mxu0 %v1440
    %1485 = vmatpush1.msra.mxu0 %v1439
    %1486 = vmatprep.subr.mxu0 %v1442
    %1487 = vmatpush1.msra.mxu0 %v1441
    %1488 = vmatprep.subr.mxu0 0.0
    %1489 = vmatpush1.msra.mxu0 0.0
    %1490 = vmatprep.subr.mxu0 0.0
    %1491 = vmatpush1.msra.mxu0 0.0
    %1492 = vmatprep.subr.mxu0 0.0
    %1493 = vmatpush1.msra.mxu0 0.0
    %1494 = vmatprep.subr.mxu0 0.0
    %1495 = vmatpush1.msra.mxu0 0.0
    %1496 = vmatprep.subr.mxu0 0.0
    %1497 = vmatpush1.msra.mxu0 0.0
    %1498 = vmatprep.subr.mxu0 0.0
    %1499 = vmatpush1.msra.mxu0 0.0
    %1500 = vmatprep.subr.mxu0 0.0
    %1501 = vmatpush1.msra.mxu0 0.0
    %1502 = vmatprep.subr.mxu0 0.0
    %1503 = vmatpush1.msra.mxu0 0.0
    %1504 = vmatprep.subr.mxu0 0.0
    %1505 = vmatpush1.msra.mxu0 0.0
    %1506 = vmatprep.subr.mxu0 0.0
    %1507 = vmatpush1.msra.mxu0 0.0
    %1508 = vmatprep.subr.mxu0 0.0
    %1509 = vmatpush1.msra.mxu0 0.0
    %1510 = vmatprep.subr.mxu0 0.0
    %1511 = vmatpush1.msra.mxu0 0.0
    %1512 = vmatprep.subr.mxu0 0.0
    %1513 = vmatpush1.msra.mxu0 0.0
    %1514 = vmatprep.subr.mxu0 0.0
    %1515 = vmatpush1.msra.mxu0 0.0
    %1516 = vmatprep.subr.mxu0 0.0
    %1517 = vmatpush1.msra.mxu0 0.0
    %1518 = vmatprep.subr.mxu0 0.0
    %1519 = vmatpush1.msra.mxu0 0.0
    %1520 = vmatprep.mubr.f32.mxu0 0.0
    %1521 = vmatmul.mubr.f32.gmra.mrb[0].mxu0 %v1409
    %v1522 = vpop.f32.mrb[0].mxu0
    %v1523 = vadd.f32 %v1449, %v1522
    %v1524 = vpop.f32.mrb[0].mxu0
    %v1525 = vadd.f32 %v1453, %v1524
    %1526 = vmatprep.mubr.f32.mxu0 0.0
    %1527 = vmatmul.mubr.f32.gmra.mrb[0].mxu0 %v1410
    %v1528 = vpop.f32.mrb[0].mxu0
    %v1529 = vadd.f32 %v1449, %v1528
    %v1530 = vpop.f32.mrb[0].mxu0
    %v1531 = vadd.f32 %v1453, %v1530
    %1532 = vdwg.mxu0
    %v1533 = vld [vmem:[#allocation2 + $0x210] sm:$0xff]
    %v1534 = vld [vmem:[#allocation2 + $0x218] sm:$0xff]
    %v1535 = vld [vmem:[#allocation2 + $0x220] sm:$0xff]
    %v1536 = vld [vmem:[#allocation2 + $0x228] sm:$0xff]
    %v1537 = vld [vmem:[#allocation2 + $0x230] sm:$0xff]
    %v1538 = vld [vmem:[#allocation2 + $0x238] sm:$0xff]
    %v1539 = vld [vmem:[#allocation2 + $0x240] sm:$0xff]
    %v1540 = vld [vmem:[#allocation2 + $0x248] sm:$0xff]
    %v1541 = vld [vmem:[#allocation2 + $0x250] sm:$0xff]
    %v1542 = vld [vmem:[#allocation2 + $0x258] sm:$0xff]
    %v1543 = vld [vmem:[#allocation2 + $0x260] sm:$0xff]
    %v1544 = vld [vmem:[#allocation2 + $0x268] sm:$0xff]
    %v1545 = vld [vmem:[#allocation2 + $0x270] sm:$0xff]
    %v1546 = vld [vmem:[#allocation2 + $0x278] sm:$0xff]
    %v1547 = vld [vmem:[#allocation2 + $0x280] sm:$0xff]
    %v1548 = vld [vmem:[#allocation2 + $0x288] sm:$0xff]
    %1549 = vmatprep.subr.mxu0 %v1534
    %1550 = vmatpush1.msra.mxu0 %v1533
    %1551 = vmatprep.subr.mxu0 %v1536
    %1552 = vmatpush1.msra.mxu0 %v1535
    %1553 = vmatprep.subr.mxu0 %v1538
    %1554 = vmatpush1.msra.mxu0 %v1537
    %1555 = vmatprep.subr.mxu0 %v1540
    %1556 = vmatpush1.msra.mxu0 %v1539
    %1557 = vmatprep.subr.mxu0 %v1542
    %1558 = vmatpush1.msra.mxu0 %v1541
    %1559 = vmatprep.subr.mxu0 %v1544
    %1560 = vmatpush1.msra.mxu0 %v1543
    %1561 = vmatprep.subr.mxu0 %v1546
    %1562 = vmatpush1.msra.mxu0 %v1545
    %1563 = vmatprep.subr.mxu0 %v1548
    %1564 = vmatpush1.msra.mxu0 %v1547
    %1565 = vmatprep.subr.mxu0 0.0
    %1566 = vmatpush1.msra.mxu0 0.0
    %1567 = vmatprep.subr.mxu0 0.0
    %1568 = vmatpush1.msra.mxu0 0.0
    %1569 = vmatprep.subr.mxu0 0.0
    %1570 = vmatpush1.msra.mxu0 0.0
    %1571 = vmatprep.subr.mxu0 0.0
    %1572 = vmatpush1.msra.mxu0 0.0
    %1573 = vmatprep.subr.mxu0 0.0
    %1574 = vmatpush1.msra.mxu0 0.0
    %1575 = vmatprep.subr.mxu0 0.0
    %1576 = vmatpush1.msra.mxu0 0.0
    %1577 = vmatprep.subr.mxu0 0.0
    %1578 = vmatpush1.msra.mxu0 0.0
    %1579 = vmatprep.subr.mxu0 0.0
    %1580 = vmatpush1.msra.mxu0 0.0
    %1581 = vmatprep.subr.mxu0 0.0
    %1582 = vmatpush1.msra.mxu0 0.0
    %1583 = vmatprep.subr.mxu0 0.0
    %1584 = vmatpush1.msra.mxu0 0.0
    %1585 = vmatprep.subr.mxu0 0.0
    %1586 = vmatpush1.msra.mxu0 0.0
    %1587 = vmatprep.subr.mxu0 0.0
    %1588 = vmatpush1.msra.mxu0 0.0
    %1589 = vmatprep.subr.mxu0 0.0
    %1590 = vmatpush1.msra.mxu0 0.0
    %1591 = vmatprep.subr.mxu0 0.0
    %1592 = vmatpush1.msra.mxu0 0.0
    %1593 = vmatprep.subr.mxu0 0.0
    %1594 = vmatpush1.msra.mxu0 0.0
    %1595 = vmatprep.subr.mxu0 0.0
    %1596 = vmatpush1.msra.mxu0 0.0
    %1597 = vmatprep.subr.mxu0 0.0
    %1598 = vmatpush1.msra.mxu0 0.0
    %1599 = vmatprep.subr.mxu0 0.0
    %1600 = vmatpush1.msra.mxu0 0.0
    %1601 = vmatprep.subr.mxu0 0.0
    %1602 = vmatpush1.msra.mxu0 0.0
    %1603 = vmatprep.subr.mxu0 0.0
    %1604 = vmatpush1.msra.mxu0 0.0
    %1605 = vmatprep.subr.mxu0 0.0
    %1606 = vmatpush1.msra.mxu0 0.0
    %1607 = vmatprep.subr.mxu0 0.0
    %1608 = vmatpush1.msra.mxu0 0.0
    %1609 = vmatprep.subr.mxu0 0.0
    %1610 = vmatpush1.msra.mxu0 0.0
    %1611 = vmatprep.subr.mxu0 0.0
    %1612 = vmatpush1.msra.mxu0 0.0
    %1613 = vmatprep.mubr.f32.mxu0 0.0
    %1614 = vmatmul.mubr.f32.gmra.mrb[0].mxu0 %v385
    %v1615 = vpop.f32.mrb[0].mxu0
    %v1616 = vadd.f32 0.0, %v1615
    %v1617 = vpop.f32.mrb[0].mxu0
    %v1618 = vadd.f32 0.0, %v1617
    %1619 = vdwg.mxu0
    %v1620 = vadd.f32 %v1523, %v1616
    %v1621 = vadd.f32 %v1525, %v1618
    %v1622 = vxor.u32 %v1620, 2147483648
    %v1623 = vxor.u32 %v1621, 2147483648
    %v1624 = vmul.f32 %v1622, 1.442695
    %v1625 = vpow.pop %v1624
    %v1626 = vmul.f32 %v1623, 1.442695
    %v1627 = vpow.pop %v1626
    %v1628 = vadd.f32 %v1625, 1.0
    %v1629 = vadd.f32 %v1627, 1.0
    %v1630 = vrcp.pop %v1628
    %v1631 = vmul.f32 1.0, %v1630
    %v1632 = vrcp.pop %v1629
    %v1633 = vmul.f32 1.0, %v1632
    %v1634 = vtanh.pop %v1621
    %v1635 = vmul.f32 %v1631, 0.0
    %1637 = vrot.lane.b32.xlu0 %v1634, 64
    %v1638 = vpop.permute.xlu0 %1637
    %v1640 = vmul.f32 %v1631, %v1638
    %1642 = vrot.lane.b32.xlu0 %v1640, 64
    %v1643 = vpop.permute.xlu0 %1642
    %v1645 = vadd.f32 %v1635, %v1643
    %v1646 = vtanh.pop %v1645
    %1648 = vrot.lane.b32.xlu0 %v1646, 64
    %v1649 = vpop.permute.xlu0 %1648
    %v1651 = vmul.f32 %v1633, %v1649
    %v1653 = vsel %vm284, %v1651, 0
    %1655 = vmatprep.subr.mxu0 %v1534
    %1656 = vmatpush1.msra.mxu0 %v1533
    %1657 = vmatprep.subr.mxu0 %v1536
    %1658 = vmatpush1.msra.mxu0 %v1535
    %1659 = vmatprep.subr.mxu0 %v1538
    %1660 = vmatpush1.msra.mxu0 %v1537
    %1661 = vmatprep.subr.mxu0 %v1540
    %1662 = vmatpush1.msra.mxu0 %v1539
    %1663 = vmatprep.subr.mxu0 %v1542
    %1664 = vmatpush1.msra.mxu0 %v1541
    %1665 = vmatprep.subr.mxu0 %v1544
    %1666 = vmatpush1.msra.mxu0 %v1543
    %1667 = vmatprep.subr.mxu0 %v1546
    %1668 = vmatpush1.msra.mxu0 %v1545
    %1669 = vmatprep.subr.mxu0 %v1548
    %1670 = vmatpush1.msra.mxu0 %v1547
    %1671 = vmatprep.subr.mxu0 0.0
    %1672 = vmatpush1.msra.mxu0 0.0
    %1673 = vmatprep.subr.mxu0 0.0
    %1674 = vmatpush1.msra.mxu0 0.0
    %1675 = vmatprep.subr.mxu0 0.0
    %1676 = vmatpush1.msra.mxu0 0.0
    %1677 = vmatprep.subr.mxu0 0.0
    %1678 = vmatpush1.msra.mxu0 0.0
    %1679 = vmatprep.subr.mxu0 0.0
    %1680 = vmatpush1.msra.mxu0 0.0
    %1681 = vmatprep.subr.mxu0 0.0
    %1682 = vmatpush1.msra.mxu0 0.0
    %1683 = vmatprep.subr.mxu0 0.0
    %1684 = vmatpush1.msra.mxu0 0.0
    %1685 = vmatprep.subr.mxu0 0.0
    %1686 = vmatpush1.msra.mxu0 0.0
    %1687 = vmatprep.subr.mxu0 0.0
    %1688 = vmatpush1.msra.mxu0 0.0
    %1689 = vmatprep.subr.mxu0 0.0
    %1690 = vmatpush1.msra.mxu0 0.0
    %1691 = vmatprep.subr.mxu0 0.0
    %1692 = vmatpush1.msra.mxu0 0.0
    %1693 = vmatprep.subr.mxu0 0.0
    %1694 = vmatpush1.msra.mxu0 0.0
    %1695 = vmatprep.subr.mxu0 0.0
    %1696 = vmatpush1.msra.mxu0 0.0
    %1697 = vmatprep.subr.mxu0 0.0
    %1698 = vmatpush1.msra.mxu0 0.0
    %1699 = vmatprep.subr.mxu0 0.0
    %1700 = vmatpush1.msra.mxu0 0.0
    %1701 = vmatprep.subr.mxu0 0.0
    %1702 = vmatpush1.msra.mxu0 0.0
    %1703 = vmatprep.subr.mxu0 0.0
    %1704 = vmatpush1.msra.mxu0 0.0
    %1705 = vmatprep.subr.mxu0 0.0
    %1706 = vmatpush1.msra.mxu0 0.0
    %1707 = vmatprep.subr.mxu0 0.0
    %1708 = vmatpush1.msra.mxu0 0.0
    %1709 = vmatprep.subr.mxu0 0.0
    %1710 = vmatpush1.msra.mxu0 0.0
    %1711 = vmatprep.subr.mxu0 0.0
    %1712 = vmatpush1.msra.mxu0 0.0
    %1713 = vmatprep.subr.mxu0 0.0
    %1714 = vmatpush1.msra.mxu0 0.0
    %1715 = vmatprep.subr.mxu0 0.0
    %1716 = vmatpush1.msra.mxu0 0.0
    %1717 = vmatprep.subr.mxu0 0.0
    %1718 = vmatpush1.msra.mxu0 0.0
    %1719 = vmatprep.mubr.f32.mxu0 0.0
    %1720 = vmatmul.mubr.f32.gmra.mrb[0].mxu0 %v1653
    %v1721 = vpop.f32.mrb[0].mxu0
    %v1722 = vadd.f32 0.0, %v1721
    %v1723 = vpop.f32.mrb[0].mxu0
    %v1724 = vadd.f32 0.0, %v1723
    %1725 = vdwg.mxu0
    %v1728 = vrot.slane %v1722, 6
    %v1729 = vrot.slane %v1724, 6
    %v1732 = vadd.f32 %v1523, %v1728
    %v1733 = vadd.f32 %v1525, %v1729
    %v1734 = vxor.u32 %v1732, 2147483648
    %v1735 = vxor.u32 %v1733, 2147483648
    %v1736 = vmul.f32 %v1734, 1.442695
    %v1737 = vpow.pop %v1736
    %v1738 = vmul.f32 %v1735, 1.442695
    %v1739 = vpow.pop %v1738
    %v1740 = vadd.f32 %v1737, 1.0
    %v1741 = vadd.f32 %v1739, 1.0
    %v1742 = vrcp.pop %v1740
    %v1743 = vmul.f32 1.0, %v1742
    %v1744 = vrcp.pop %v1741
    %v1745 = vmul.f32 1.0, %v1744
    %v1746 = vtanh.pop %v1733
    %v1748 = vrot.slane %v1645, 6
    %v1750 = vmul.f32 %v1743, %v1748
    %1752 = vrot.lane.b32.xlu0 %v1746, 64
    %v1753 = vpop.permute.xlu0 %1752
    %v1755 = vmul.f32 %v1743, %v1753
    %1757 = vrot.lane.b32.xlu0 %v1755, 64
    %v1758 = vpop.permute.xlu0 %1757
    %v1760 = vadd.f32 %v1750, %v1758
    %v1761 = vtanh.pop %v1760
    %1763 = vrot.lane.b32.xlu0 %v1761, 64
    %v1764 = vpop.permute.xlu0 %1763
    %v1766 = vmul.f32 %v1745, %v1764
    %v1768 = vrot.slane %v1766, 2
    %v1769 = vsel %vm284, %v1768, 0
    %1771 = vmatprep.subr.mxu0 %v1534
    %1772 = vmatpush1.msra.mxu0 %v1533
    %1773 = vmatprep.subr.mxu0 %v1536
    %1774 = vmatpush1.msra.mxu0 %v1535
    %1775 = vmatprep.subr.mxu0 %v1538
    %1776 = vmatpush1.msra.mxu0 %v1537
    %1777 = vmatprep.subr.mxu0 %v1540
    %1778 = vmatpush1.msra.mxu0 %v1539
    %1779 = vmatprep.subr.mxu0 %v1542
    %1780 = vmatpush1.msra.mxu0 %v1541
    %1781 = vmatprep.subr.mxu0 %v1544
    %1782 = vmatpush1.msra.mxu0 %v1543
    %1783 = vmatprep.subr.mxu0 %v1546
    %1784 = vmatpush1.msra.mxu0 %v1545
    %1785 = vmatprep.subr.mxu0 %v1548
    %1786 = vmatpush1.msra.mxu0 %v1547
    %1787 = vmatprep.subr.mxu0 0.0
    %1788 = vmatpush1.msra.mxu0 0.0
    %1789 = vmatprep.subr.mxu0 0.0
    %1790 = vmatpush1.msra.mxu0 0.0
    %1791 = vmatprep.subr.mxu0 0.0
    %1792 = vmatpush1.msra.mxu0 0.0
    %1793 = vmatprep.subr.mxu0 0.0
    %1794 = vmatpush1.msra.mxu0 0.0
    %1795 = vmatprep.subr.mxu0 0.0
    %1796 = vmatpush1.msra.mxu0 0.0
    %1797 = vmatprep.subr.mxu0 0.0
    %1798 = vmatpush1.msra.mxu0 0.0
    %1799 = vmatprep.subr.mxu0 0.0
    %1800 = vmatpush1.msra.mxu0 0.0
    %1801 = vmatprep.subr.mxu0 0.0
    %1802 = vmatpush1.msra.mxu0 0.0
    %1803 = vmatprep.subr.mxu0 0.0
    %1804 = vmatpush1.msra.mxu0 0.0
    %1805 = vmatprep.subr.mxu0 0.0
    %1806 = vmatpush1.msra.mxu0 0.0
    %1807 = vmatprep.subr.mxu0 0.0
    %1808 = vmatpush1.msra.mxu0 0.0
    %1809 = vmatprep.subr.mxu0 0.0
    %1810 = vmatpush1.msra.mxu0 0.0
    %1811 = vmatprep.subr.mxu0 0.0
    %1812 = vmatpush1.msra.mxu0 0.0
    %1813 = vmatprep.subr.mxu0 0.0
    %1814 = vmatpush1.msra.mxu0 0.0
    %1815 = vmatprep.subr.mxu0 0.0
    %1816 = vmatpush1.msra.mxu0 0.0
    %1817 = vmatprep.subr.mxu0 0.0
    %1818 = vmatpush1.msra.mxu0 0.0
    %1819 = vmatprep.subr.mxu0 0.0
    %1820 = vmatpush1.msra.mxu0 0.0
    %1821 = vmatprep.subr.mxu0 0.0
    %1822 = vmatpush1.msra.mxu0 0.0
    %1823 = vmatprep.subr.mxu0 0.0
    %1824 = vmatpush1.msra.mxu0 0.0
    %1825 = vmatprep.subr.mxu0 0.0
    %1826 = vmatpush1.msra.mxu0 0.0
    %1827 = vmatprep.subr.mxu0 0.0
    %1828 = vmatpush1.msra.mxu0 0.0
    %1829 = vmatprep.subr.mxu0 0.0
    %1830 = vmatpush1.msra.mxu0 0.0
    %1831 = vmatprep.subr.mxu0 0.0
    %1832 = vmatpush1.msra.mxu0 0.0
    %1833 = vmatprep.subr.mxu0 0.0
    %1834 = vmatpush1.msra.mxu0 0.0
    %1835 = vmatprep.mubr.f32.mxu0 0.0
    %1836 = vmatmul.mubr.f32.gmra.mrb[0].mxu0 %v1769
    %v1837 = vpop.f32.mrb[0].mxu0
    %v1838 = vadd.f32 0.0, %v1837
    %v1839 = vpop.f32.mrb[0].mxu0
    %v1840 = vadd.f32 0.0, %v1839
    %1841 = vdwg.mxu0
    %v1844 = vrot.slane %v1838, 4
    %v1845 = vrot.slane %v1840, 4
    %v1848 = vadd.f32 %v1523, %v1844
    %v1849 = vadd.f32 %v1525, %v1845
    %v1850 = vxor.u32 %v1848, 2147483648
    %v1851 = vxor.u32 %v1849, 2147483648
    %v1852 = vmul.f32 %v1850, 1.442695
    %v1853 = vpow.pop %v1852
    %v1854 = vmul.f32 %v1851, 1.442695
    %v1855 = vpow.pop %v1854
    %v1856 = vadd.f32 %v1853, 1.0
    %v1857 = vadd.f32 %v1855, 1.0
    %v1858 = vrcp.pop %v1856
    %v1859 = vmul.f32 1.0, %v1858
    %v1860 = vrcp.pop %v1857
    %v1861 = vmul.f32 1.0, %v1860
    %v1862 = vtanh.pop %v1849
    %v1864 = vrot.slane %v1760, 6
    %v1866 = vmul.f32 %v1859, %v1864
    %1868 = vrot.lane.b32.xlu0 %v1862, 64
    %v1869 = vpop.permute.xlu0 %1868
    %v1871 = vmul.f32 %v1859, %v1869
    %1873 = vrot.lane.b32.xlu0 %v1871, 64
    %v1874 = vpop.permute.xlu0 %1873
    %v1876 = vadd.f32 %v1866, %v1874
    %v1877 = vtanh.pop %v1876
    %1879 = vrot.lane.b32.xlu0 %v1877, 64
    %v1880 = vpop.permute.xlu0 %1879
    %v1882 = vmul.f32 %v1861, %v1880
    %v1884 = vrot.slane %v1882, 4
    %v1885 = vsel %vm284, %v1884, 0
    %1887 = vmatprep.subr.mxu0 %v1534
    %1888 = vmatpush1.msra.mxu0 %v1533
    %1889 = vmatprep.subr.mxu0 %v1536
    %1890 = vmatpush1.msra.mxu0 %v1535
    %1891 = vmatprep.subr.mxu0 %v1538
    %1892 = vmatpush1.msra.mxu0 %v1537
    %1893 = vmatprep.subr.mxu0 %v1540
    %1894 = vmatpush1.msra.mxu0 %v1539
    %1895 = vmatprep.subr.mxu0 %v1542
    %1896 = vmatpush1.msra.mxu0 %v1541
    %1897 = vmatprep.subr.mxu0 %v1544
    %1898 = vmatpush1.msra.mxu0 %v1543
    %1899 = vmatprep.subr.mxu0 %v1546
    %1900 = vmatpush1.msra.mxu0 %v1545
    %1901 = vmatprep.subr.mxu0 %v1548
    %1902 = vmatpush1.msra.mxu0 %v1547
    %1903 = vmatprep.subr.mxu0 0.0
    %1904 = vmatpush1.msra.mxu0 0.0
    %1905 = vmatprep.subr.mxu0 0.0
    %1906 = vmatpush1.msra.mxu0 0.0
    %1907 = vmatprep.subr.mxu0 0.0
    %1908 = vmatpush1.msra.mxu0 0.0
    %1909 = vmatprep.subr.mxu0 0.0
    %1910 = vmatpush1.msra.mxu0 0.0
    %1911 = vmatprep.subr.mxu0 0.0
    %1912 = vmatpush1.msra.mxu0 0.0
    %1913 = vmatprep.subr.mxu0 0.0
    %1914 = vmatpush1.msra.mxu0 0.0
    %1915 = vmatprep.subr.mxu0 0.0
    %1916 = vmatpush1.msra.mxu0 0.0
    %1917 = vmatprep.subr.mxu0 0.0
    %1918 = vmatpush1.msra.mxu0 0.0
    %1919 = vmatprep.subr.mxu0 0.0
    %1920 = vmatpush1.msra.mxu0 0.0
    %1921 = vmatprep.subr.mxu0 0.0
    %1922 = vmatpush1.msra.mxu0 0.0
    %1923 = vmatprep.subr.mxu0 0.0
    %1924 = vmatpush1.msra.mxu0 0.0
    %1925 = vmatprep.subr.mxu0 0.0
    %1926 = vmatpush1.msra.mxu0 0.0
    %1927 = vmatprep.subr.mxu0 0.0
    %1928 = vmatpush1.msra.mxu0 0.0
    %1929 = vmatprep.subr.mxu0 0.0
    %1930 = vmatpush1.msra.mxu0 0.0
    %1931 = vmatprep.subr.mxu0 0.0
    %1932 = vmatpush1.msra.mxu0 0.0
    %1933 = vmatprep.subr.mxu0 0.0
    %1934 = vmatpush1.msra.mxu0 0.0
    %1935 = vmatprep.subr.mxu0 0.0
    %1936 = vmatpush1.msra.mxu0 0.0
    %1937 = vmatprep.subr.mxu0 0.0
    %1938 = vmatpush1.msra.mxu0 0.0
    %1939 = vmatprep.subr.mxu0 0.0
    %1940 = vmatpush1.msra.mxu0 0.0
    %1941 = vmatprep.subr.mxu0 0.0
    %1942 = vmatpush1.msra.mxu0 0.0
    %1943 = vmatprep.subr.mxu0 0.0
    %1944 = vmatpush1.msra.mxu0 0.0
    %1945 = vmatprep.subr.mxu0 0.0
    %1946 = vmatpush1.msra.mxu0 0.0
    %1947 = vmatprep.subr.mxu0 0.0
    %1948 = vmatpush1.msra.mxu0 0.0
    %1949 = vmatprep.subr.mxu0 0.0
    %1950 = vmatpush1.msra.mxu0 0.0
    %1951 = vmatprep.mubr.f32.mxu0 0.0
    %1952 = vmatmul.mubr.f32.gmra.mrb[0].mxu0 %v1885
    %v1953 = vpop.f32.mrb[0].mxu0
    %v1954 = vadd.f32 0.0, %v1953
    %v1955 = vpop.f32.mrb[0].mxu0
    %v1956 = vadd.f32 0.0, %v1955
    %1957 = vdwg.mxu0
    %v1960 = vrot.slane %v1954, 2
    %v1961 = vrot.slane %v1956, 2
    %v1964 = vadd.f32 %v1523, %v1960
    %v1965 = vadd.f32 %v1525, %v1961
    %v1966 = vxor.u32 %v1964, 2147483648
    %v1967 = vxor.u32 %v1965, 2147483648
    %v1968 = vmul.f32 %v1966, 1.442695
    %v1969 = vpow.pop %v1968
    %v1970 = vmul.f32 %v1967, 1.442695
    %v1971 = vpow.pop %v1970
    %v1972 = vadd.f32 %v1969, 1.0
    %v1973 = vadd.f32 %v1971, 1.0
    %v1974 = vrcp.pop %v1972
    %v1975 = vmul.f32 1.0, %v1974
    %v1976 = vrcp.pop %v1973
    %v1977 = vmul.f32 1.0, %v1976
    %v1978 = vtanh.pop %v1965
    %v1980 = vrot.slane %v1876, 6
    %v1982 = vmul.f32 %v1975, %v1980
    %1984 = vrot.lane.b32.xlu0 %v1978, 64
    %v1985 = vpop.permute.xlu0 %1984
    %v1987 = vmul.f32 %v1975, %v1985
    %1989 = vrot.lane.b32.xlu0 %v1987, 64
    %v1990 = vpop.permute.xlu0 %1989
    %v1992 = vadd.f32 %v1982, %v1990
    %v1993 = vtanh.pop %v1992
    %1995 = vrot.lane.b32.xlu0 %v1993, 64
    %v1996 = vpop.permute.xlu0 %1995
    %v1998 = vmul.f32 %v1977, %v1996
    %v2000 = vrot.slane %v1998, 6
    %v2001 = vsel %vm284, %v2000, 0
    %2003 = vmatprep.subr.mxu0 %v1534
    %2004 = vmatpush1.msra.mxu0 %v1533
    %2005 = vmatprep.subr.mxu0 %v1536
    %2006 = vmatpush1.msra.mxu0 %v1535
    %2007 = vmatprep.subr.mxu0 %v1538
    %2008 = vmatpush1.msra.mxu0 %v1537
    %2009 = vmatprep.subr.mxu0 %v1540
    %2010 = vmatpush1.msra.mxu0 %v1539
    %2011 = vmatprep.subr.mxu0 %v1542
    %2012 = vmatpush1.msra.mxu0 %v1541
    %2013 = vmatprep.subr.mxu0 %v1544
    %2014 = vmatpush1.msra.mxu0 %v1543
    %2015 = vmatprep.subr.mxu0 %v1546
    %2016 = vmatpush1.msra.mxu0 %v1545
    %2017 = vmatprep.subr.mxu0 %v1548
    %2018 = vmatpush1.msra.mxu0 %v1547
    %2019 = vmatprep.subr.mxu0 0.0
    %2020 = vmatpush1.msra.mxu0 0.0
    %2021 = vmatprep.subr.mxu0 0.0
    %2022 = vmatpush1.msra.mxu0 0.0
    %2023 = vmatprep.subr.mxu0 0.0
    %2024 = vmatpush1.msra.mxu0 0.0
    %2025 = vmatprep.subr.mxu0 0.0
    %2026 = vmatpush1.msra.mxu0 0.0
    %2027 = vmatprep.subr.mxu0 0.0
    %2028 = vmatpush1.msra.mxu0 0.0
    %2029 = vmatprep.subr.mxu0 0.0
    %2030 = vmatpush1.msra.mxu0 0.0
    %2031 = vmatprep.subr.mxu0 0.0
    %2032 = vmatpush1.msra.mxu0 0.0
    %2033 = vmatprep.subr.mxu0 0.0
    %2034 = vmatpush1.msra.mxu0 0.0
    %2035 = vmatprep.subr.mxu0 0.0
    %2036 = vmatpush1.msra.mxu0 0.0
    %2037 = vmatprep.subr.mxu0 0.0
    %2038 = vmatpush1.msra.mxu0 0.0
    %2039 = vmatprep.subr.mxu0 0.0
    %2040 = vmatpush1.msra.mxu0 0.0
    %2041 = vmatprep.subr.mxu0 0.0
    %2042 = vmatpush1.msra.mxu0 0.0
    %2043 = vmatprep.subr.mxu0 0.0
    %2044 = vmatpush1.msra.mxu0 0.0
    %2045 = vmatprep.subr.mxu0 0.0
    %2046 = vmatpush1.msra.mxu0 0.0
    %2047 = vmatprep.subr.mxu0 0.0
    %2048 = vmatpush1.msra.mxu0 0.0
    %2049 = vmatprep.subr.mxu0 0.0
    %2050 = vmatpush1.msra.mxu0 0.0
    %2051 = vmatprep.subr.mxu0 0.0
    %2052 = vmatpush1.msra.mxu0 0.0
    %2053 = vmatprep.subr.mxu0 0.0
    %2054 = vmatpush1.msra.mxu0 0.0
    %2055 = vmatprep.subr.mxu0 0.0
    %2056 = vmatpush1.msra.mxu0 0.0
    %2057 = vmatprep.subr.mxu0 0.0
    %2058 = vmatpush1.msra.mxu0 0.0
    %2059 = vmatprep.subr.mxu0 0.0
    %2060 = vmatpush1.msra.mxu0 0.0
    %2061 = vmatprep.subr.mxu0 0.0
    %2062 = vmatpush1.msra.mxu0 0.0
    %2063 = vmatprep.subr.mxu0 0.0
    %2064 = vmatpush1.msra.mxu0 0.0
    %2065 = vmatprep.subr.mxu0 0.0
    %2066 = vmatpush1.msra.mxu0 0.0
    %2067 = vmatprep.mubr.f32.mxu0 0.0
    %2068 = vmatmul.mubr.f32.gmra.mrb[0].mxu0 %v2001
    %v2069 = vpop.f32.mrb[0].mxu0
    %v2070 = vadd.f32 0.0, %v2069
    %v2071 = vpop.f32.mrb[0].mxu0
    %v2072 = vadd.f32 0.0, %v2071
    %2073 = vdwg.mxu0
    %v2074 = vadd.f32 %v1529, %v2070
    %v2075 = vadd.f32 %v1531, %v2072
    %v2076 = vxor.u32 %v2074, 2147483648
    %v2077 = vxor.u32 %v2075, 2147483648
    %v2078 = vmul.f32 %v2076, 1.442695
    %v2079 = vpow.pop %v2078
    %v2080 = vmul.f32 %v2077, 1.442695
    %v2081 = vpow.pop %v2080
    %v2082 = vadd.f32 %v2079, 1.0
    %v2083 = vadd.f32 %v2081, 1.0
    %v2084 = vrcp.pop %v2082
    %v2085 = vmul.f32 1.0, %v2084
    %v2086 = vrcp.pop %v2083
    %v2087 = vmul.f32 1.0, %v2086
    %v2088 = vtanh.pop %v2075
    %v2090 = vrot.slane %v1992, 6
    %v2092 = vmul.f32 %v2085, %v2090
    %2094 = vrot.lane.b32.xlu0 %v2088, 64
    %v2095 = vpop.permute.xlu0 %2094
    %v2097 = vmul.f32 %v2085, %v2095
    %2099 = vrot.lane.b32.xlu0 %v2097, 64
    %v2100 = vpop.permute.xlu0 %2099
    %v2102 = vadd.f32 %v2092, %v2100
    %v2103 = vtanh.pop %v2102
    %2105 = vrot.lane.b32.xlu0 %v2103, 64
    %v2106 = vpop.permute.xlu0 %2105
    %v2108 = vmul.f32 %v2087, %v2106
    %v2110 = vsel %vm284, %v2108, 0
    %2112 = vmatprep.subr.mxu0 %v1534
    %2113 = vmatpush1.msra.mxu0 %v1533
    %2114 = vmatprep.subr.mxu0 %v1536
    %2115 = vmatpush1.msra.mxu0 %v1535
    %2116 = vmatprep.subr.mxu0 %v1538
    %2117 = vmatpush1.msra.mxu0 %v1537
    %2118 = vmatprep.subr.mxu0 %v1540
    %2119 = vmatpush1.msra.mxu0 %v1539
    %2120 = vmatprep.subr.mxu0 %v1542
    %2121 = vmatpush1.msra.mxu0 %v1541
    %2122 = vmatprep.subr.mxu0 %v1544
    %2123 = vmatpush1.msra.mxu0 %v1543
    %2124 = vmatprep.subr.mxu0 %v1546
    %2125 = vmatpush1.msra.mxu0 %v1545
    %2126 = vmatprep.subr.mxu0 %v1548
    %2127 = vmatpush1.msra.mxu0 %v1547
    %2128 = vmatprep.subr.mxu0 0.0
    %2129 = vmatpush1.msra.mxu0 0.0
    %2130 = vmatprep.subr.mxu0 0.0
    %2131 = vmatpush1.msra.mxu0 0.0
    %2132 = vmatprep.subr.mxu0 0.0
    %2133 = vmatpush1.msra.mxu0 0.0
    %2134 = vmatprep.subr.mxu0 0.0
    %2135 = vmatpush1.msra.mxu0 0.0
    %2136 = vmatprep.subr.mxu0 0.0
    %2137 = vmatpush1.msra.mxu0 0.0
    %2138 = vmatprep.subr.mxu0 0.0
    %2139 = vmatpush1.msra.mxu0 0.0
    %2140 = vmatprep.subr.mxu0 0.0
    %2141 = vmatpush1.msra.mxu0 0.0
    %2142 = vmatprep.subr.mxu0 0.0
    %2143 = vmatpush1.msra.mxu0 0.0
    %2144 = vmatprep.subr.mxu0 0.0
    %2145 = vmatpush1.msra.mxu0 0.0
    %2146 = vmatprep.subr.mxu0 0.0
    %2147 = vmatpush1.msra.mxu0 0.0
    %2148 = vmatprep.subr.mxu0 0.0
    %2149 = vmatpush1.msra.mxu0 0.0
    %2150 = vmatprep.subr.mxu0 0.0
    %2151 = vmatpush1.msra.mxu0 0.0
    %2152 = vmatprep.subr.mxu0 0.0
    %2153 = vmatpush1.msra.mxu0 0.0
    %2154 = vmatprep.subr.mxu0 0.0
    %2155 = vmatpush1.msra.mxu0 0.0
    %2156 = vmatprep.subr.mxu0 0.0
    %2157 = vmatpush1.msra.mxu0 0.0
    %2158 = vmatprep.subr.mxu0 0.0
    %2159 = vmatpush1.msra.mxu0 0.0
    %2160 = vmatprep.subr.mxu0 0.0
    %2161 = vmatpush1.msra.mxu0 0.0
    %2162 = vmatprep.subr.mxu0 0.0
    %2163 = vmatpush1.msra.mxu0 0.0
    %2164 = vmatprep.subr.mxu0 0.0
    %2165 = vmatpush1.msra.mxu0 0.0
    %2166 = vmatprep.subr.mxu0 0.0
    %2167 = vmatpush1.msra.mxu0 0.0
    %2168 = vmatprep.subr.mxu0 0.0
    %2169 = vmatpush1.msra.mxu0 0.0
    %2170 = vmatprep.subr.mxu0 0.0
    %2171 = vmatpush1.msra.mxu0 0.0
    %2172 = vmatprep.subr.mxu0 0.0
    %2173 = vmatpush1.msra.mxu0 0.0
    %2174 = vmatprep.subr.mxu0 0.0
    %2175 = vmatpush1.msra.mxu0 0.0
    %2176 = vmatprep.mubr.f32.mxu0 0.0
    %2177 = vmatmul.mubr.f32.gmra.mrb[0].mxu0 %v2110
    %v2178 = vpop.f32.mrb[0].mxu0
    %v2179 = vadd.f32 0.0, %v2178
    %v2180 = vpop.f32.mrb[0].mxu0
    %v2181 = vadd.f32 0.0, %v2180
    %2182 = vdwg.mxu0
    %v2185 = vrot.slane %v2179, 6
    %v2186 = vrot.slane %v2181, 6
    %v2189 = vadd.f32 %v1529, %v2185
    %v2190 = vadd.f32 %v1531, %v2186
    %v2191 = vxor.u32 %v2189, 2147483648
    %v2192 = vxor.u32 %v2190, 2147483648
    %v2193 = vmul.f32 %v2191, 1.442695
    %v2194 = vpow.pop %v2193
    %v2195 = vmul.f32 %v2192, 1.442695
    %v2196 = vpow.pop %v2195
    %v2197 = vadd.f32 %v2194, 1.0
    %v2198 = vadd.f32 %v2196, 1.0
    %v2199 = vrcp.pop %v2197
    %v2200 = vmul.f32 1.0, %v2199
    %v2201 = vrcp.pop %v2198
    %v2202 = vmul.f32 1.0, %v2201
    %v2203 = vtanh.pop %v2190
    %v2205 = vrot.slane %v2102, 6
    %v2207 = vmul.f32 %v2200, %v2205
    %2209 = vrot.lane.b32.xlu0 %v2203, 64
    %v2210 = vpop.permute.xlu0 %2209
    %v2212 = vmul.f32 %v2200, %v2210
    %2214 = vrot.lane.b32.xlu0 %v2212, 64
    %v2215 = vpop.permute.xlu0 %2214
    %v2217 = vadd.f32 %v2207, %v2215
    %v2218 = vtanh.pop %v2217
    %2220 = vrot.lane.b32.xlu0 %v2218, 64
    %v2221 = vpop.permute.xlu0 %2220
    %v2223 = vmul.f32 %v2202, %v2221
    %v2225 = vrot.slane %v2223, 2
    %v2226 = vsel %vm284, %v2225, 0
    %2228 = vmatprep.subr.mxu0 %v1534
    %2229 = vmatpush1.msra.mxu0 %v1533
    %2230 = vmatprep.subr.mxu0 %v1536
    %2231 = vmatpush1.msra.mxu0 %v1535
    %2232 = vmatprep.subr.mxu0 %v1538
    %2233 = vmatpush1.msra.mxu0 %v1537
    %2234 = vmatprep.subr.mxu0 %v1540
    %2235 = vmatpush1.msra.mxu0 %v1539
    %2236 = vmatprep.subr.mxu0 %v1542
    %2237 = vmatpush1.msra.mxu0 %v1541
    %2238 = vmatprep.subr.mxu0 %v1544
    %2239 = vmatpush1.msra.mxu0 %v1543
    %2240 = vmatprep.subr.mxu0 %v1546
    %2241 = vmatpush1.msra.mxu0 %v1545
    %2242 = vmatprep.subr.mxu0 %v1548
    %2243 = vmatpush1.msra.mxu0 %v1547
    %2244 = vmatprep.subr.mxu0 0.0
    %2245 = vmatpush1.msra.mxu0 0.0
    %2246 = vmatprep.subr.mxu0 0.0
    %2247 = vmatpush1.msra.mxu0 0.0
    %2248 = vmatprep.subr.mxu0 0.0
    %2249 = vmatpush1.msra.mxu0 0.0
    %2250 = vmatprep.subr.mxu0 0.0
    %2251 = vmatpush1.msra.mxu0 0.0
    %2252 = vmatprep.subr.mxu0 0.0
    %2253 = vmatpush1.msra.mxu0 0.0
    %2254 = vmatprep.subr.mxu0 0.0
    %2255 = vmatpush1.msra.mxu0 0.0
    %2256 = vmatprep.subr.mxu0 0.0
    %2257 = vmatpush1.msra.mxu0 0.0
    %2258 = vmatprep.subr.mxu0 0.0
    %2259 = vmatpush1.msra.mxu0 0.0
    %2260 = vmatprep.subr.mxu0 0.0
    %2261 = vmatpush1.msra.mxu0 0.0
    %2262 = vmatprep.subr.mxu0 0.0
    %2263 = vmatpush1.msra.mxu0 0.0
    %2264 = vmatprep.subr.mxu0 0.0
    %2265 = vmatpush1.msra.mxu0 0.0
    %2266 = vmatprep.subr.mxu0 0.0
    %2267 = vmatpush1.msra.mxu0 0.0
    %2268 = vmatprep.subr.mxu0 0.0
    %2269 = vmatpush1.msra.mxu0 0.0
    %2270 = vmatprep.subr.mxu0 0.0
    %2271 = vmatpush1.msra.mxu0 0.0
    %2272 = vmatprep.subr.mxu0 0.0
    %2273 = vmatpush1.msra.mxu0 0.0
    %2274 = vmatprep.subr.mxu0 0.0
    %2275 = vmatpush1.msra.mxu0 0.0
    %2276 = vmatprep.subr.mxu0 0.0
    %2277 = vmatpush1.msra.mxu0 0.0
    %2278 = vmatprep.subr.mxu0 0.0
    %2279 = vmatpush1.msra.mxu0 0.0
    %2280 = vmatprep.subr.mxu0 0.0
    %2281 = vmatpush1.msra.mxu0 0.0
    %2282 = vmatprep.subr.mxu0 0.0
    %2283 = vmatpush1.msra.mxu0 0.0
    %2284 = vmatprep.subr.mxu0 0.0
    %2285 = vmatpush1.msra.mxu0 0.0
    %2286 = vmatprep.subr.mxu0 0.0
    %2287 = vmatpush1.msra.mxu0 0.0
    %2288 = vmatprep.subr.mxu0 0.0
    %2289 = vmatpush1.msra.mxu0 0.0
    %2290 = vmatprep.subr.mxu0 0.0
    %2291 = vmatpush1.msra.mxu0 0.0
    %2292 = vmatprep.mubr.f32.mxu0 0.0
    %2293 = vmatmul.mubr.f32.gmra.mrb[0].mxu0 %v2226
    %v2294 = vpop.f32.mrb[0].mxu0
    %v2295 = vadd.f32 0.0, %v2294
    %v2296 = vpop.f32.mrb[0].mxu0
    %v2297 = vadd.f32 0.0, %v2296
    %2298 = vdwg.mxu0
    %v2301 = vrot.slane %v2295, 4
    %v2302 = vrot.slane %v2297, 4
    %v2305 = vadd.f32 %v1529, %v2301
    %v2306 = vadd.f32 %v1531, %v2302
    %v2307 = vxor.u32 %v2305, 2147483648
    %v2308 = vxor.u32 %v2306, 2147483648
    %v2309 = vmul.f32 %v2307, 1.442695
    %v2310 = vpow.pop %v2309
    %v2311 = vmul.f32 %v2308, 1.442695
    %v2312 = vpow.pop %v2311
    %v2313 = vadd.f32 %v2310, 1.0
    %v2314 = vadd.f32 %v2312, 1.0
    %v2315 = vrcp.pop %v2313
    %v2316 = vmul.f32 1.0, %v2315
    %v2317 = vrcp.pop %v2314
    %v2318 = vmul.f32 1.0, %v2317
    %v2319 = vtanh.pop %v2306
    %v2321 = vrot.slane %v2217, 6
    %v2323 = vmul.f32 %v2316, %v2321
    %2325 = vrot.lane.b32.xlu0 %v2319, 64
    %v2326 = vpop.permute.xlu0 %2325
    %v2328 = vmul.f32 %v2316, %v2326
    %2330 = vrot.lane.b32.xlu0 %v2328, 64
    %v2331 = vpop.permute.xlu0 %2330
    %v2333 = vadd.f32 %v2323, %v2331
    %v2334 = vtanh.pop %v2333
    %2336 = vrot.lane.b32.xlu0 %v2334, 64
    %v2337 = vpop.permute.xlu0 %2336
    %v2339 = vmul.f32 %v2318, %v2337
    %v2341 = vrot.slane %v2339, 4
    %v2342 = vsel %vm284, %v2341, 0
    %2344 = vmatprep.subr.mxu0 %v1534
    %2345 = vmatpush1.msra.mxu0 %v1533
    %2346 = vmatprep.subr.mxu0 %v1536
    %2347 = vmatpush1.msra.mxu0 %v1535
    %2348 = vmatprep.subr.mxu0 %v1538
    %2349 = vmatpush1.msra.mxu0 %v1537
    %2350 = vmatprep.subr.mxu0 %v1540
    %2351 = vmatpush1.msra.mxu0 %v1539
    %2352 = vmatprep.subr.mxu0 %v1542
    %2353 = vmatpush1.msra.mxu0 %v1541
    %2354 = vmatprep.subr.mxu0 %v1544
    %2355 = vmatpush1.msra.mxu0 %v1543
    %2356 = vmatprep.subr.mxu0 %v1546
    %2357 = vmatpush1.msra.mxu0 %v1545
    %2358 = vmatprep.subr.mxu0 %v1548
    %2359 = vmatpush1.msra.mxu0 %v1547
    %2360 = vmatprep.subr.mxu0 0.0
    %2361 = vmatpush1.msra.mxu0 0.0
    %2362 = vmatprep.subr.mxu0 0.0
    %2363 = vmatpush1.msra.mxu0 0.0
    %2364 = vmatprep.subr.mxu0 0.0
    %2365 = vmatpush1.msra.mxu0 0.0
    %2366 = vmatprep.subr.mxu0 0.0
    %2367 = vmatpush1.msra.mxu0 0.0
    %2368 = vmatprep.subr.mxu0 0.0
    %2369 = vmatpush1.msra.mxu0 0.0
    %2370 = vmatprep.subr.mxu0 0.0
    %2371 = vmatpush1.msra.mxu0 0.0
    %2372 = vmatprep.subr.mxu0 0.0
    %2373 = vmatpush1.msra.mxu0 0.0
    %2374 = vmatprep.subr.mxu0 0.0
    %2375 = vmatpush1.msra.mxu0 0.0
    %2376 = vmatprep.subr.mxu0 0.0
    %2377 = vmatpush1.msra.mxu0 0.0
    %2378 = vmatprep.subr.mxu0 0.0
    %2379 = vmatpush1.msra.mxu0 0.0
    %2380 = vmatprep.subr.mxu0 0.0
    %2381 = vmatpush1.msra.mxu0 0.0
    %2382 = vmatprep.subr.mxu0 0.0
    %2383 = vmatpush1.msra.mxu0 0.0
    %2384 = vmatprep.subr.mxu0 0.0
    %2385 = vmatpush1.msra.mxu0 0.0
    %2386 = vmatprep.subr.mxu0 0.0
    %2387 = vmatpush1.msra.mxu0 0.0
    %2388 = vmatprep.subr.mxu0 0.0
    %2389 = vmatpush1.msra.mxu0 0.0
    %2390 = vmatprep.subr.mxu0 0.0
    %2391 = vmatpush1.msra.mxu0 0.0
    %2392 = vmatprep.subr.mxu0 0.0
    %2393 = vmatpush1.msra.mxu0 0.0
    %2394 = vmatprep.subr.mxu0 0.0
    %2395 = vmatpush1.msra.mxu0 0.0
    %2396 = vmatprep.subr.mxu0 0.0
    %2397 = vmatpush1.msra.mxu0 0.0
    %2398 = vmatprep.subr.mxu0 0.0
    %2399 = vmatpush1.msra.mxu0 0.0
    %2400 = vmatprep.subr.mxu0 0.0
    %2401 = vmatpush1.msra.mxu0 0.0
    %2402 = vmatprep.subr.mxu0 0.0
    %2403 = vmatpush1.msra.mxu0 0.0
    %2404 = vmatprep.subr.mxu0 0.0
    %2405 = vmatpush1.msra.mxu0 0.0
    %2406 = vmatprep.subr.mxu0 0.0
    %2407 = vmatpush1.msra.mxu0 0.0
    %2408 = vmatprep.mubr.f32.mxu0 0.0
    %2409 = vmatmul.mubr.f32.gmra.mrb[0].mxu0 %v2342
    %v2410 = vpop.f32.mrb[0].mxu0
    %v2411 = vadd.f32 0.0, %v2410
    %v2412 = vpop.f32.mrb[0].mxu0
    %v2413 = vadd.f32 0.0, %v2412
    %2414 = vdwg.mxu0
    %v2417 = vrot.slane %v2411, 2
    %v2418 = vrot.slane %v2413, 2
    %v2421 = vadd.f32 %v1529, %v2417
    %v2422 = vadd.f32 %v1531, %v2418
    %v2423 = vxor.u32 %v2421, 2147483648
    %v2424 = vxor.u32 %v2422, 2147483648
    %v2425 = vmul.f32 %v2423, 1.442695
    %v2426 = vpow.pop %v2425
    %v2427 = vmul.f32 %v2424, 1.442695
    %v2428 = vpow.pop %v2427
    %v2429 = vadd.f32 %v2426, 1.0
    %v2430 = vadd.f32 %v2428, 1.0
    %v2431 = vrcp.pop %v2429
    %v2432 = vmul.f32 1.0, %v2431
    %v2433 = vrcp.pop %v2430
    %v2434 = vmul.f32 1.0, %v2433
    %v2435 = vtanh.pop %v2422
    %v2437 = vrot.slane %v2333, 6
    %v2439 = vmul.f32 %v2432, %v2437
    %2441 = vrot.lane.b32.xlu0 %v2435, 64
    %v2442 = vpop.permute.xlu0 %2441
    %v2444 = vmul.f32 %v2432, %v2442
    %2446 = vrot.lane.b32.xlu0 %v2444, 64
    %v2447 = vpop.permute.xlu0 %2446
    %v2449 = vadd.f32 %v2439, %v2447
    %v2450 = vtanh.pop %v2449
    %2452 = vrot.lane.b32.xlu0 %v2450, 64
    %v2453 = vpop.permute.xlu0 %2452
    %v2455 = vmul.f32 %v2434, %v2453
    %v2456 = vsel %vm1294, %v1651, %v1766
    %v2457 = vsel %vm83, %v2456, %v1882
    %v2458 = vsel %vm1297, %v2457, %v1998
    %v2459 = vsel %vm1294, %v2108, %v2223
    %v2460 = vsel %vm83, %v2459, %v2339
    %v2461 = vsel %vm1297, %v2460, %v2455
    %v2463 = vrot.slane %v2455, 6
    %v2465 = vrot.slane %v2339, 2
    %v2467 = vrot.slane %v2223, 6
    %v2469 = vrot.slane %v2108, 2
    %v2472 = vrot.slane %v1882, 2
    %v2474 = vrot.slane %v1766, 6
    %v2476 = vrot.slane %v1651, 2
    %v2478 = vsel %vm1294, %v2463, %v2465
    %v2479 = vsel %vm83, %v2478, %v2467
    %v2480 = vsel %vm1297, %v2479, %v2469
    %v2481 = vsel %vm1294, %v2000, %v2472
    %v2482 = vsel %vm83, %v2481, %v2474
    %v2483 = vsel %vm1297, %v2482, %v2476
    %v2484 = vsel %vm252, %v2458, %v2480
    %v2485 = vsel %vm252, %v2461, %v2483
    %v2486 = vsel %vm284, %v2484, 0.0
    %2487 = vadd.xlane.f32.xlu0 %v2486
    %v2488 = vpop.xlane.xlu0 %2487
    %v2489 = vsel %vm284, %v2485, 0.0
    %2490 = vadd.xlane.f32.xlu0 %v2489
    %v2491 = vpop.xlane.xlu0 %2490
    %v2492 = vrcp.pop 64.0
    %v2493 = vmul.f32 %v2488, %v2492
    %v2494 = vmul.f32 %v2491, %v2492
    %v2495 = vsub.f32 %v2484, %v2493
    %v2496 = vsub.f32 %v2485, %v2494
    %v2497 = vmul.f32 %v2495, %v2495
    %v2498 = vmul.f32 %v2496, %v2496
    %v2499 = vsel %vm284, %v2497, 0.0
    %2500 = vadd.xlane.f32.xlu0 %v2499
    %v2501 = vpop.xlane.xlu0 %2500
    %v2502 = vsel %vm284, %v2498, 0.0
    %2503 = vadd.xlane.f32.xlu0 %v2502
    %v2504 = vpop.xlane.xlu0 %2503
    %v2505 = vmul.f32 %v2501, %v2492
    %v2506 = vmul.f32 %v2504, %v2492
    %v2507 = vadd.f32 %v2505, 1e-05
    %v2508 = vadd.f32 %v2506, 1e-05
    %v2509 = vrsqrt.pop %v2507
    %v2510 = vrsqrt.pop %v2508
    %v2511 = vmul.f32 %v2495, %v2509
    %v2512 = vmul.f32 %v2496, %v2510
    %v2513 = vld [vmem:[#allocation5 + $0x3] ss:$0 sm:$0xff]
    %v2514 = vmul.f32 %v2511, %v2513
    %v2515 = vmul.f32 %v2512, %v2513
    %v2516 = vld [vmem:[#allocation5 + $0x4] ss:$0 sm:$0xff]
    %v2517 = vadd.f32 %v2514, %v2516
    %v2518 = vadd.f32 %v2515, %v2516
    %v2519 = vld [vmem:[#allocation2 + $0x290] sm:$0xff]
    %v2520 = vld [vmem:[#allocation2 + $0x2a0] sm:$0xff]
    %v2521 = vld [vmem:[#allocation2 + $0x2b0] sm:$0xff]
    %v2522 = vld [vmem:[#allocation2 + $0x2c0] sm:$0xff]
    %v2523 = vld [vmem:[#allocation2 + $0x2d0] sm:$0xff]
    %v2524 = vld [vmem:[#allocation2 + $0x2e0] sm:$0xff]
    %v2525 = vld [vmem:[#allocation2 + $0x2f0] sm:$0xff]
    %v2526 = vld [vmem:[#allocation2 + $0x300] sm:$0xff]
    %v2527 = vld [vmem:[#allocation5 + $0x5] ss:$0 sm:$0xff]
    %v2529 = vsel %vm284, %v2517, 0
    %v2532 = vsel %vm284, %v2518, 0
    %2534 = vmatprep.subr.mxu0 0.0
    %2535 = vmatpush1.msra.mxu0 %v2519
    %2536 = vmatprep.subr.mxu0 0.0
    %2537 = vmatpush1.msra.mxu0 %v2520
    %2538 = vmatprep.subr.mxu0 0.0
    %2539 = vmatpush1.msra.mxu0 %v2521
    %2540 = vmatprep.subr.mxu0 0.0
    %2541 = vmatpush1.msra.mxu0 %v2522
    %2542 = vmatprep.subr.mxu0 0.0
    %2543 = vmatpush1.msra.mxu0 %v2523
    %2544 = vmatprep.subr.mxu0 0.0
    %2545 = vmatpush1.msra.mxu0 %v2524
    %2546 = vmatprep.subr.mxu0 0.0
    %2547 = vmatpush1.msra.mxu0 %v2525
    %2548 = vmatprep.subr.mxu0 0.0
    %2549 = vmatpush1.msra.mxu0 %v2526
    %2550 = vmatprep.subr.mxu0 0.0
    %2551 = vmatpush1.msra.mxu0 0.0
    %2552 = vmatprep.subr.mxu0 0.0
    %2553 = vmatpush1.msra.mxu0 0.0
    %2554 = vmatprep.subr.mxu0 0.0
    %2555 = vmatpush1.msra.mxu0 0.0
    %2556 = vmatprep.subr.mxu0 0.0
    %2557 = vmatpush1.msra.mxu0 0.0
    %2558 = vmatprep.subr.mxu0 0.0
    %2559 = vmatpush1.msra.mxu0 0.0
    %2560 = vmatprep.subr.mxu0 0.0
    %2561 = vmatpush1.msra.mxu0 0.0
    %2562 = vmatprep.subr.mxu0 0.0
    %2563 = vmatpush1.msra.mxu0 0.0
    %2564 = vmatprep.subr.mxu0 0.0
    %2565 = vmatpush1.msra.mxu0 0.0
    %2566 = vmatprep.subr.mxu0 0.0
    %2567 = vmatpush1.msra.mxu0 0.0
    %2568 = vmatprep.subr.mxu0 0.0
    %2569 = vmatpush1.msra.mxu0 0.0
    %2570 = vmatprep.subr.mxu0 0.0
    %2571 = vmatpush1.msra.mxu0 0.0
    %2572 = vmatprep.subr.mxu0 0.0
    %2573 = vmatpush1.msra.mxu0 0.0
    %2574 = vmatprep.subr.mxu0 0.0
    %2575 = vmatpush1.msra.mxu0 0.0
    %2576 = vmatprep.subr.mxu0 0.0
    %2577 = vmatpush1.msra.mxu0 0.0
    %2578 = vmatprep.subr.mxu0 0.0
    %2579 = vmatpush1.msra.mxu0 0.0
    %2580 = vmatprep.subr.mxu0 0.0
    %2581 = vmatpush1.msra.mxu0 0.0
    %2582 = vmatprep.subr.mxu0 0.0
    %2583 = vmatpush1.msra.mxu0 0.0
    %2584 = vmatprep.subr.mxu0 0.0
    %2585 = vmatpush1.msra.mxu0 0.0
    %2586 = vmatprep.subr.mxu0 0.0
    %2587 = vmatpush1.msra.mxu0 0.0
    %2588 = vmatprep.subr.mxu0 0.0
    %2589 = vmatpush1.msra.mxu0 0.0
    %2590 = vmatprep.subr.mxu0 0.0
    %2591 = vmatpush1.msra.mxu0 0.0
    %2592 = vmatprep.subr.mxu0 0.0
    %2593 = vmatpush1.msra.mxu0 0.0
    %2594 = vmatprep.subr.mxu0 0.0
    %2595 = vmatpush1.msra.mxu0 0.0
    %2596 = vmatprep.subr.mxu0 0.0
    %2597 = vmatpush1.msra.mxu0 0.0
    %2598 = vmatprep.mubr.f32.mxu0 0.0
    %2599 = vmatmul.mubr.f32.gmra.mrb[0].mxu0 %v2529
    %v2600 = vpop.f32.mrb[0].mxu0
    %v2601 = vadd.f32 %v2527, %v2600
    %v2602 = vpop.f32.mrb[0].mxu0
    %2603 = vmatprep.mubr.f32.mxu0 0.0
    %2604 = vmatmul.mubr.f32.gmra.mrb[0].mxu0 %v2532
    %v2605 = vpop.f32.mrb[0].mxu0
    %v2606 = vadd.f32 %v2527, %v2605
    %v2607 = vpop.f32.mrb[0].mxu0
    %2608 = vdwg.mxu0
    %v2609 = vtanh.pop %v2601
    %v2610 = vtanh.pop %v2606
    %v2611 = vld [vmem:[#allocation5 + $0x6] ss:$0 sm:$0xff]
    %v2612 = vmul.f32 %v2609, %v2611
    %v2613 = vmul.f32 %v2610, %v2611
    %v2614 = vsel %vm284, %v2612, 0.0
    %2615 = vadd.xlane.f32.xlu0 %v2614
    %v2616 = vpop.xlane.xlu0 %2615
    %v2617 = vsel %vm284, %v2613, 0.0
    %2618 = vadd.xlane.f32.xlu0 %v2617
    %v2619 = vpop.xlane.xlu0 %2618
    %v2620 = vld [vmem:[#allocation5 + $0x7] ss:$0 sm:$0xff]
    %v2621 = vadd.f32 %v2616, %v2620
    %v2622 = vadd.f32 %v2619, %v2620
    %2624 = vset.pattern.permute.xlu0 0
    %2625 = vperm.xlu0 %2624, %v2621
    %v2626 = vpop.permute.xlu0 %2625
    %2629 = vset.pattern.permute.xlu0 0
    %2630 = vperm.xlu0 %2629, %v2622
    %v2631 = vpop.permute.xlu0 %2630
    %v2633 = vsel %vm66, %v2626, -inf
    %v2634 = vsel %vm67, %v2631, -inf
    %vm2635 = vcmask 15360
    %v2636 = vsel %vm2635, %v2633, -inf
    %v2637 = vsel %vm2635, %v2634, -inf
    %v2638 = vmax.f32 %v2636, %v2637
    %v2639 = vrot.slane %v2638, 4
    %v2640 = vmax.f32 %v2638, %v2639
    %v2641 = vrot.slane %v2640, 2
    %v2642 = vmax.f32 %v2640, %v2641
    %v2643 = vrot.slane %v2642, 1
    %v2644 = vmax.f32 %v2642, %v2643
    %v2645 = vmul.f32 %v70, %v2644
    %v2646 = vmul.f32 %v71, %v2644
    %v2647 = vsel %vm2635, %v2645, 0.0
    %2648 = vadd.xlane.f32.xlu0 %v2647
    %v2649 = vpop.xlane.xlu0 %2648
    %v2650 = vsel %vm2635, %v2646, 0.0
    %2651 = vadd.xlane.f32.xlu0 %v2650
    %v2652 = vpop.xlane.xlu0 %2651
    %v2653 = vsub.f32 %v2621, %v2649
    %v2654 = vsub.f32 %v2622, %v2652
    %v2655 = vmul.f32 %v2653, 1.442695
    %v2656 = vpow.pop %v2655
    %v2657 = vmul.f32 %v2654, 1.442695
    %v2658 = vpow.pop %v2657
    %v2660 = vsel %vm162, %v65, 0
    %2662 = vmatprep.subr.mxu0 0.0
    %2663 = vmatpush1.msra.mxu0 %v2656
    %2664 = vmatprep.subr.mxu0 0.0
    %2665 = vmatpush1.msra.mxu0 %v2658
    %2666 = vmatprep.subr.mxu0 0.0
    %2667 = vmatpush1.msra.mxu0 0.0
    %2668 = vmatprep.subr.mxu0 0.0
    %2669 = vmatpush1.msra.mxu0 0.0
    %2670 = vmatprep.subr.mxu0 0.0
    %2671 = vmatpush1.msra.mxu0 0.0
    %2672 = vmatprep.subr.mxu0 0.0
    %2673 = vmatpush1.msra.mxu0 0.0
    %2674 = vmatprep.subr.mxu0 0.0
    %2675 = vmatpush1.msra.mxu0 0.0
    %2676 = vmatprep.subr.mxu0 0.0
    %2677 = vmatpush1.msra.mxu0 0.0
    %2678 = vmatprep.subr.mxu0 0.0
    %2679 = vmatpush1.msra.mxu0 0.0
    %2680 = vmatprep.subr.mxu0 0.0
    %2681 = vmatpush1.msra.mxu0 0.0
    %2682 = vmatprep.subr.mxu0 0.0
    %2683 = vmatpush1.msra.mxu0 0.0
    %2684 = vmatprep.subr.mxu0 0.0
    %2685 = vmatpush1.msra.mxu0 0.0
    %2686 = vmatprep.subr.mxu0 0.0
    %2687 = vmatpush1.msra.mxu0 0.0
    %2688 = vmatprep.subr.mxu0 0.0
    %2689 = vmatpush1.msra.mxu0 0.0
    %2690 = vmatprep.subr.mxu0 0.0
    %2691 = vmatpush1.msra.mxu0 0.0
    %2692 = vmatprep.subr.mxu0 0.0
    %2693 = vmatpush1.msra.mxu0 0.0
    %2694 = vmatprep.subr.mxu0 0.0
    %2695 = vmatpush1.msra.mxu0 0.0
    %2696 = vmatprep.subr.mxu0 0.0
    %2697 = vmatpush1.msra.mxu0 0.0
    %2698 = vmatprep.subr.mxu0 0.0
    %2699 = vmatpush1.msra.mxu0 0.0
    %2700 = vmatprep.subr.mxu0 0.0
    %2701 = vmatpush1.msra.mxu0 0.0
    %2702 = vmatprep.subr.mxu0 0.0
    %2703 = vmatpush1.msra.mxu0 0.0
    %2704 = vmatprep.subr.mxu0 0.0
    %2705 = vmatpush1.msra.mxu0 0.0
    %2706 = vmatprep.subr.mxu0 0.0
    %2707 = vmatpush1.msra.mxu0 0.0
    %2708 = vmatprep.subr.mxu0 0.0
    %2709 = vmatpush1.msra.mxu0 0.0
    %2710 = vmatprep.subr.mxu0 0.0
    %2711 = vmatpush1.msra.mxu0 0.0
    %2712 = vmatprep.subr.mxu0 0.0
    %2713 = vmatpush1.msra.mxu0 0.0
    %2714 = vmatprep.subr.mxu0 0.0
    %2715 = vmatpush1.msra.mxu0 0.0
    %2716 = vmatprep.subr.mxu0 0.0
    %2717 = vmatpush1.msra.mxu0 0.0
    %2718 = vmatprep.subr.mxu0 0.0
    %2719 = vmatpush1.msra.mxu0 0.0
    %2720 = vmatprep.subr.mxu0 0.0
    %2721 = vmatpush1.msra.mxu0 0.0
    %2722 = vmatprep.subr.mxu0 0.0
    %2723 = vmatpush1.msra.mxu0 0.0
    %2724 = vmatprep.subr.mxu0 0.0
    %2725 = vmatpush1.msra.mxu0 0.0
    %2726 = vmatprep.mubr.f32.mxu0 0.0
    %2727 = vmatmul.mubr.f32.gmra.mrb[0].mxu0 %v2660
    %v2728 = vpop.f32.mrb[0].mxu0
    %v2729 = vadd.f32 0.0, %v2728
    %v2730 = vpop.f32.mrb[0].mxu0
    %2731 = vdwg.mxu0
    %2733 = vset.pattern.permute.xlu0 0
    %2734 = vperm.xlu0 %2733, %v2656
    %v2735 = vpop.permute.xlu0 %2734
    %2738 = vset.pattern.permute.xlu0 0
    %2739 = vperm.xlu0 %2738, %v2658
    %v2740 = vpop.permute.xlu0 %2739
    %v2742 = vmul.f32 %v2735, %v2517
    %v2743 = vmul.f32 %v2740, %v2518
    %2744 = vmatprep.subr.mxu0 0.0
    %2745 = vmatpush1.msra.mxu0 %v2742
    %2746 = vmatprep.subr.mxu0 0.0
    %2747 = vmatpush1.msra.mxu0 %v2743
    %2748 = vmatprep.subr.mxu0 0.0
    %2749 = vmatpush1.msra.mxu0 0.0
    %2750 = vmatprep.subr.mxu0 0.0
    %2751 = vmatpush1.msra.mxu0 0.0
    %2752 = vmatprep.subr.mxu0 0.0
    %2753 = vmatpush1.msra.mxu0 0.0
    %2754 = vmatprep.subr.mxu0 0.0
    %2755 = vmatpush1.msra.mxu0 0.0
    %2756 = vmatprep.subr.mxu0 0.0
    %2757 = vmatpush1.msra.mxu0 0.0
    %2758 = vmatprep.subr.mxu0 0.0
    %2759 = vmatpush1.msra.mxu0 0.0
    %2760 = vmatprep.subr.mxu0 0.0
    %2761 = vmatpush1.msra.mxu0 0.0
    %2762 = vmatprep.subr.mxu0 0.0
    %2763 = vmatpush1.msra.mxu0 0.0
    %2764 = vmatprep.subr.mxu0 0.0
    %2765 = vmatpush1.msra.mxu0 0.0
    %2766 = vmatprep.subr.mxu0 0.0
    %2767 = vmatpush1.msra.mxu0 0.0
    %2768 = vmatprep.subr.mxu0 0.0
    %2769 = vmatpush1.msra.mxu0 0.0
    %2770 = vmatprep.subr.mxu0 0.0
    %2771 = vmatpush1.msra.mxu0 0.0
    %2772 = vmatprep.subr.mxu0 0.0
    %2773 = vmatpush1.msra.mxu0 0.0
    %2774 = vmatprep.subr.mxu0 0.0
    %2775 = vmatpush1.msra.mxu0 0.0
    %2776 = vmatprep.subr.mxu0 0.0
    %2777 = vmatpush1.msra.mxu0 0.0
    %2778 = vmatprep.subr.mxu0 0.0
    %2779 = vmatpush1.msra.mxu0 0.0
    %2780 = vmatprep.subr.mxu0 0.0
    %2781 = vmatpush1.msra.mxu0 0.0
    %2782 = vmatprep.subr.mxu0 0.0
    %2783 = vmatpush1.msra.mxu0 0.0
    %2784 = vmatprep.subr.mxu0 0.0
    %2785 = vmatpush1.msra.mxu0 0.0
    %2786 = vmatprep.subr.mxu0 0.0
    %2787 = vmatpush1.msra.mxu0 0.0
    %2788 = vmatprep.subr.mxu0 0.0
    %2789 = vmatpush1.msra.mxu0 0.0
    %2790 = vmatprep.subr.mxu0 0.0
    %2791 = vmatpush1.msra.mxu0 0.0
    %2792 = vmatprep.subr.mxu0 0.0
    %2793 = vmatpush1.msra.mxu0 0.0
    %2794 = vmatprep.subr.mxu0 0.0
    %2795 = vmatpush1.msra.mxu0 0.0
    %2796 = vmatprep.subr.mxu0 0.0
    %2797 = vmatpush1.msra.mxu0 0.0
    %2798 = vmatprep.subr.mxu0 0.0
    %2799 = vmatpush1.msra.mxu0 0.0
    %2800 = vmatprep.subr.mxu0 0.0
    %2801 = vmatpush1.msra.mxu0 0.0
    %2802 = vmatprep.subr.mxu0 0.0
    %2803 = vmatpush1.msra.mxu0 0.0
    %2804 = vmatprep.subr.mxu0 0.0
    %2805 = vmatpush1.msra.mxu0 0.0
    %2806 = vmatprep.subr.mxu0 0.0
    %2807 = vmatpush1.msra.mxu0 0.0
    %2808 = vmatprep.mubr.f32.mxu0 0.0
    %2809 = vmatmul.mubr.f32.gmra.mrb[0].mxu0 %v2660
    %v2810 = vpop.f32.mrb[0].mxu0
    %v2811 = vadd.f32 0.0, %v2810
    %v2812 = vpop.f32.mrb[0].mxu0
    %2813 = vdwg.mxu0
    %v2814 = vrcp.pop %v2729
    %2816 = vset.pattern.permute.xlu0 0
    %2817 = vperm.xlu0 %2816, %v2814
    %v2818 = vpop.permute.xlu0 %2817
    %v2820 = vmul.f32 %v2811, %v2818
    %v2821 = vld [vmem:[#allocation2 + $0x310] sm:$0xff]
    %v2822 = vld [vmem:[#allocation2 + $0x320] sm:$0xff]
    %v2823 = vld [vmem:[#allocation2 + $0x330] sm:$0xff]
    %v2824 = vld [vmem:[#allocation2 + $0x340] sm:$0xff]
    %v2825 = vld [vmem:[#allocation2 + $0x350] sm:$0xff]
    %v2826 = vld [vmem:[#allocation2 + $0x360] sm:$0xff]
    %v2827 = vld [vmem:[#allocation2 + $0x370] sm:$0xff]
    %v2828 = vld [vmem:[#allocation2 + $0x380] sm:$0xff]
    %v2829 = vld [vmem:[#allocation5 + $0x10] ss:$0 sm:$0xff]
    %v2831 = vsel %vm284, %v2820, 0
    %2833 = vmatprep.subr.mxu0 0.0
    %2834 = vmatpush1.msra.mxu0 %v2821
    %2835 = vmatprep.subr.mxu0 0.0
    %2836 = vmatpush1.msra.mxu0 %v2822
    %2837 = vmatprep.subr.mxu0 0.0
    %2838 = vmatpush1.msra.mxu0 %v2823
    %2839 = vmatprep.subr.mxu0 0.0
    %2840 = vmatpush1.msra.mxu0 %v2824
    %2841 = vmatprep.subr.mxu0 0.0
    %2842 = vmatpush1.msra.mxu0 %v2825
    %2843 = vmatprep.subr.mxu0 0.0
    %2844 = vmatpush1.msra.mxu0 %v2826
    %2845 = vmatprep.subr.mxu0 0.0
    %2846 = vmatpush1.msra.mxu0 %v2827
    %2847 = vmatprep.subr.mxu0 0.0
    %2848 = vmatpush1.msra.mxu0 %v2828
    %2849 = vmatprep.subr.mxu0 0.0
    %2850 = vmatpush1.msra.mxu0 0.0
    %2851 = vmatprep.subr.mxu0 0.0
    %2852 = vmatpush1.msra.mxu0 0.0
    %2853 = vmatprep.subr.mxu0 0.0
    %2854 = vmatpush1.msra.mxu0 0.0
    %2855 = vmatprep.subr.mxu0 0.0
    %2856 = vmatpush1.msra.mxu0 0.0
    %2857 = vmatprep.subr.mxu0 0.0
    %2858 = vmatpush1.msra.mxu0 0.0
    %2859 = vmatprep.subr.mxu0 0.0
    %2860 = vmatpush1.msra.mxu0 0.0
    %2861 = vmatprep.subr.mxu0 0.0
    %2862 = vmatpush1.msra.mxu0 0.0
    %2863 = vmatprep.subr.mxu0 0.0
    %2864 = vmatpush1.msra.mxu0 0.0
    %2865 = vmatprep.subr.mxu0 0.0
    %2866 = vmatpush1.msra.mxu0 0.0
    %2867 = vmatprep.subr.mxu0 0.0
    %2868 = vmatpush1.msra.mxu0 0.0
    %2869 = vmatprep.subr.mxu0 0.0
    %2870 = vmatpush1.msra.mxu0 0.0
    %2871 = vmatprep.subr.mxu0 0.0
    %2872 = vmatpush1.msra.mxu0 0.0
    %2873 = vmatprep.subr.mxu0 0.0
    %2874 = vmatpush1.msra.mxu0 0.0
    %2875 = vmatprep.subr.mxu0 0.0
    %2876 = vmatpush1.msra.mxu0 0.0
    %2877 = vmatprep.subr.mxu0 0.0
    %2878 = vmatpush1.msra.mxu0 0.0
    %2879 = vmatprep.subr.mxu0 0.0
    %2880 = vmatpush1.msra.mxu0 0.0
    %2881 = vmatprep.subr.mxu0 0.0
    %2882 = vmatpush1.msra.mxu0 0.0
    %2883 = vmatprep.subr.mxu0 0.0
    %2884 = vmatpush1.msra.mxu0 0.0
    %2885 = vmatprep.subr.mxu0 0.0
    %2886 = vmatpush1.msra.mxu0 0.0
    %2887 = vmatprep.subr.mxu0 0.0
    %2888 = vmatpush1.msra.mxu0 0.0
    %2889 = vmatprep.subr.mxu0 0.0
    %2890 = vmatpush1.msra.mxu0 0.0
    %2891 = vmatprep.subr.mxu0 0.0
    %2892 = vmatpush1.msra.mxu0 0.0
    %2893 = vmatprep.subr.mxu0 0.0
    %2894 = vmatpush1.msra.mxu0 0.0
    %2895 = vmatprep.subr.mxu0 0.0
    %2896 = vmatpush1.msra.mxu0 0.0
    %2897 = vmatprep.mubr.f32.mxu0 0.0
    %2898 = vmatmul.mubr.f32.gmra.mrb[0].mxu0 %v2831
    %v2899 = vpop.f32.mrb[0].mxu0
    %v2900 = vadd.f32 %v2829, %v2899
    %v2901 = vpop.f32.mrb[0].mxu0
    %2902 = vdwg.mxu0
    %v2903 = vmax.f32 %v2900, 0.0
    %v2904 = vld [vmem:[#allocation2 + $0x390] sm:$0xff]
    %v2905 = vld [vmem:[#allocation2 + $0x3a0] sm:$0xff]
    %v2906 = vld [vmem:[#allocation2 + $0x3b0] sm:$0xff]
    %v2907 = vld [vmem:[#allocation2 + $0x3c0] sm:$0xff]
    %v2908 = vld [vmem:[#allocation5 + $0x11] ss:$0 sm:$0xff]
    %v2910 = vsel %vm252, %v2903, 0
    %2912 = vmatprep.subr.mxu0 0.0
    %2913 = vmatpush1.msra.mxu0 %v2904
    %2914 = vmatprep.subr.mxu0 0.0
    %2915 = vmatpush1.msra.mxu0 %v2905
    %2916 = vmatprep.subr.mxu0 0.0
    %2917 = vmatpush1.msra.mxu0 %v2906
    %2918 = vmatprep.subr.mxu0 0.0
    %2919 = vmatpush1.msra.mxu0 %v2907
    %2920 = vmatprep.subr.mxu0 0.0
    %2921 = vmatpush1.msra.mxu0 0.0
    %2922 = vmatprep.subr.mxu0 0.0
    %2923 = vmatpush1.msra.mxu0 0.0
    %2924 = vmatprep.subr.mxu0 0.0
    %2925 = vmatpush1.msra.mxu0 0.0
    %2926 = vmatprep.subr.mxu0 0.0
    %2927 = vmatpush1.msra.mxu0 0.0
    %2928 = vmatprep.subr.mxu0 0.0
    %2929 = vmatpush1.msra.mxu0 0.0
    %2930 = vmatprep.subr.mxu0 0.0
    %2931 = vmatpush1.msra.mxu0 0.0
    %2932 = vmatprep.subr.mxu0 0.0
    %2933 = vmatpush1.msra.mxu0 0.0
    %2934 = vmatprep.subr.mxu0 0.0
    %2935 = vmatpush1.msra.mxu0 0.0
    %2936 = vmatprep.subr.mxu0 0.0
    %2937 = vmatpush1.msra.mxu0 0.0
    %2938 = vmatprep.subr.mxu0 0.0
    %2939 = vmatpush1.msra.mxu0 0.0
    %2940 = vmatprep.subr.mxu0 0.0
    %2941 = vmatpush1.msra.mxu0 0.0
    %2942 = vmatprep.subr.mxu0 0.0
    %2943 = vmatpush1.msra.mxu0 0.0
    %2944 = vmatprep.subr.mxu0 0.0
    %2945 = vmatpush1.msra.mxu0 0.0
    %2946 = vmatprep.subr.mxu0 0.0
    %2947 = vmatpush1.msra.mxu0 0.0
    %2948 = vmatprep.subr.mxu0 0.0
    %2949 = vmatpush1.msra.mxu0 0.0
    %2950 = vmatprep.subr.mxu0 0.0
    %2951 = vmatpush1.msra.mxu0 0.0
    %2952 = vmatprep.subr.mxu0 0.0
    %2953 = vmatpush1.msra.mxu0 0.0
    %2954 = vmatprep.subr.mxu0 0.0
    %2955 = vmatpush1.msra.mxu0 0.0
    %2956 = vmatprep.subr.mxu0 0.0
    %2957 = vmatpush1.msra.mxu0 0.0
    %2958 = vmatprep.subr.mxu0 0.0
    %2959 = vmatpush1.msra.mxu0 0.0
    %2960 = vmatprep.subr.mxu0 0.0
    %2961 = vmatpush1.msra.mxu0 0.0
    %2962 = vmatprep.subr.mxu0 0.0
    %2963 = vmatpush1.msra.mxu0 0.0
    %2964 = vmatprep.subr.mxu0 0.0
    %2965 = vmatpush1.msra.mxu0 0.0
    %2966 = vmatprep.subr.mxu0 0.0
    %2967 = vmatpush1.msra.mxu0 0.0
    %2968 = vmatprep.subr.mxu0 0.0
    %2969 = vmatpush1.msra.mxu0 0.0
    %2970 = vmatprep.subr.mxu0 0.0
    %2971 = vmatpush1.msra.mxu0 0.0
    %2972 = vmatprep.subr.mxu0 0.0
    %2973 = vmatpush1.msra.mxu0 0.0
    %2974 = vmatprep.subr.mxu0 0.0
    %2975 = vmatpush1.msra.mxu0 0.0
    %2976 = vmatprep.mubr.f32.mxu0 0.0
    %2977 = vmatmul.mubr.f32.gmra.mrb[0].mxu0 %v2910
    %v2978 = vpop.f32.mrb[0].mxu0
    %v2979 = vadd.f32 %v2908, %v2978
    %v2980 = vpop.f32.mrb[0].mxu0
    %2981 = vdwg.mxu0
    %v2982 = vmax.f32 %v2979, 0.0
    %v2983 = vld [vmem:[#allocation2 + $0x3d0] sm:$0xff]
    %v2984 = vld [vmem:[#allocation2 + $0x3e0] sm:$0xff]
    %v2985 = vld [vmem:[#allocation5 + $0x12] ss:$0 sm:$0xff]
    %v2987 = vsel %vm162, %v2982, 0
    %2989 = vmatprep.subr.mxu0 0.0
    %2990 = vmatpush1.msra.mxu0 %v2983
    %2991 = vmatprep.subr.mxu0 0.0
    %2992 = vmatpush1.msra.mxu0 %v2984
    %2993 = vmatprep.subr.mxu0 0.0
    %2994 = vmatpush1.msra.mxu0 0.0
    %2995 = vmatprep.subr.mxu0 0.0
    %2996 = vmatpush1.msra.mxu0 0.0
    %2997 = vmatprep.subr.mxu0 0.0
    %2998 = vmatpush1.msra.mxu0 0.0
    %2999 = vmatprep.subr.mxu0 0.0
    %3000 = vmatpush1.msra.mxu0 0.0
    %3001 = vmatprep.subr.mxu0 0.0
    %3002 = vmatpush1.msra.mxu0 0.0
    %3003 = vmatprep.subr.mxu0 0.0
    %3004 = vmatpush1.msra.mxu0 0.0
    %3005 = vmatprep.subr.mxu0 0.0
    %3006 = vmatpush1.msra.mxu0 0.0
    %3007 = vmatprep.subr.mxu0 0.0
    %3008 = vmatpush1.msra.mxu0 0.0
    %3009 = vmatprep.subr.mxu0 0.0
    %3010 = vmatpush1.msra.mxu0 0.0
    %3011 = vmatprep.subr.mxu0 0.0
    %3012 = vmatpush1.msra.mxu0 0.0
    %3013 = vmatprep.subr.mxu0 0.0
    %3014 = vmatpush1.msra.mxu0 0.0
    %3015 = vmatprep.subr.mxu0 0.0
    %3016 = vmatpush1.msra.mxu0 0.0
    %3017 = vmatprep.subr.mxu0 0.0
    %3018 = vmatpush1.msra.mxu0 0.0
    %3019 = vmatprep.subr.mxu0 0.0
    %3020 = vmatpush1.msra.mxu0 0.0
    %3021 = vmatprep.subr.mxu0 0.0
    %3022 = vmatpush1.msra.mxu0 0.0
    %3023 = vmatprep.subr.mxu0 0.0
    %3024 = vmatpush1.msra.mxu0 0.0
    %3025 = vmatprep.subr.mxu0 0.0
    %3026 = vmatpush1.msra.mxu0 0.0
    %3027 = vmatprep.subr.mxu0 0.0
    %3028 = vmatpush1.msra.mxu0 0.0
    %3029 = vmatprep.subr.mxu0 0.0
    %3030 = vmatpush1.msra.mxu0 0.0
    %3031 = vmatprep.subr.mxu0 0.0
    %3032 = vmatpush1.msra.mxu0 0.0
    %3033 = vmatprep.subr.mxu0 0.0
    %3034 = vmatpush1.msra.mxu0 0.0
    %3035 = vmatprep.subr.mxu0 0.0
    %3036 = vmatpush1.msra.mxu0 0.0
    %3037 = vmatprep.subr.mxu0 0.0
    %3038 = vmatpush1.msra.mxu0 0.0
    %3039 = vmatprep.subr.mxu0 0.0
    %3040 = vmatpush1.msra.mxu0 0.0
    %3041 = vmatprep.subr.mxu0 0.0
    %3042 = vmatpush1.msra.mxu0 0.0
    %3043 = vmatprep.subr.mxu0 0.0
    %3044 = vmatpush1.msra.mxu0 0.0
    %3045 = vmatprep.subr.mxu0 0.0
    %3046 = vmatpush1.msra.mxu0 0.0
    %3047 = vmatprep.subr.mxu0 0.0
    %3048 = vmatpush1.msra.mxu0 0.0
    %3049 = vmatprep.subr.mxu0 0.0
    %3050 = vmatpush1.msra.mxu0 0.0
    %3051 = vmatprep.subr.mxu0 0.0
    %3052 = vmatpush1.msra.mxu0 0.0
    %3053 = vmatprep.mubr.f32.mxu0 0.0
    %3054 = vmatmul.mubr.f32.gmra.mrb[0].mxu0 %v2987
    %v3055 = vpop.f32.mrb[0].mxu0
    %v3056 = vadd.f32 %v2985, %v3055
    %v3057 = vpop.f32.mrb[0].mxu0
    %3058 = vdwg.mxu0
    %v3060 = vrot.slane %v159, 6
    %3061 = vrot.lane.b32.xlu0 %v3060, 96
    %v3062 = vpop.permute.xlu0 %3061
    %v3064 = vadd.f32 %v3056, %v3062
    %vm3065 = vcmask 58368
    %3066 = vst.msk [vmem:[#allocation7] sm:$0x3] %vm3065, %v3064
    // Predicated region
    $region22: #{tpu_custom_call.1} parent=1 // pred_check
      _
    $region23: #{tpu_custom_call.1} parent=1 // pred_check_branch
      %3068 = sbr.rel (0) target = $region25
    $region24: #{tpu_custom_call.1} parent=1 // pred_region
      %s3070 = ssub.s32 32, 32
      %3071 = vsyncadd [#allocation4], %s3070
      %s3073 = sshll.u32 [#allocation7], 4
      %s3074 = int_to_ptr.vmem [resolvable:$true] %s3073
      %3076 = dma.vmem_to_hbm [thread:$0]  %s3074, 32, %s3, [#allocation4]
    $region25: #{tpu_custom_call.1} parent=1 // pred_fallthru
      _
    // Predicated region
    $region26: #{tpu_custom_call.1} parent=1 // pred_check
      _
    $region27: #{tpu_custom_call.1} parent=1 // pred_check_branch
      %3078 = sbr.rel (0) target = $region29
    $region28: #{tpu_custom_call.1} parent=1 // pred_region
      %3079 = dma.done [#allocation4], 32
    $region29: #{tpu_custom_call.1} parent=1 // pred_fallthru
      _
    %3080 = vsyncpa [#allocation3], 1
    %3081 = vsyncpa [#allocation6], 1
    %3082 = vsyncpa [#allocation4], 1

</llo_original>
